<compile_context>
chip_gen: v6e
topology: v6e:2x2x1
jax: 0.10.0
libtpu: 0.0.40
codegen_flags: <defaults>
</compile_context>

<pallas_src>
import math

import jax
import jax.numpy as jnp
from jax import lax
from jax.experimental import pallas as pl
from jax.experimental.pallas import tpu as pltpu

# --- TransformerConfig (defaults from the PyTorch module) ---
D = 64            # projection_dim
H = 2             # num_heads
HD = D // H       # head_dim
INTER = 128       # intermediate_size
EPS = 1e-6
SCALE = HD ** (-0.5)

VMEM_LIMIT = 32 * 1024 * 1024          # explicit scoped-VMEM request (all gens)
VMEM_BUDGET = int(0.7 * VMEM_LIMIT)    # keep block working set under ~70%


def _layernorm(x, gamma, beta):
    mean = jnp.mean(x, axis=-1, keepdims=True)
    var = jnp.mean(jnp.square(x - mean), axis=-1, keepdims=True)
    return (x - mean) * lax.rsqrt(var + EPS) * gamma + beta


def _gelu_tanh(x):
    # gelu(x, approximate='tanh') -- matches the PyTorch MLP
    c = math.sqrt(2.0 / math.pi)
    return 0.5 * x * (1.0 + jnp.tanh(c * (x + 0.044715 * x * x * x)))


# Rows of the coalesced parameter vector (f32, padded to width 3*D = 192):
#   0: ln1 gamma   1: ln1 beta   2: qkv bias (192)   3: out-proj bias
#   4: ln2 gamma   5: ln2 beta   6: mlp bias 1 (128) 7: mlp bias 2
def encoder_layer_kernel(x_ref, wqkv_ref, wo_ref, w1_ref, w2_ref, pvec_ref,
                         o_ref):
    Bt, S, _ = x_ref.shape
    M = Bt * S

    g1 = pvec_ref[0, :D]
    be1 = pvec_ref[1, :D]
    bqkv = pvec_ref[2, :]            # (3*D,)
    bo = pvec_ref[3, :D]
    g2 = pvec_ref[4, :D]
    be2 = pvec_ref[5, :D]
    bm1 = pvec_ref[6, :INTER]
    bm2 = pvec_ref[7, :D]

    x = x_ref[...].reshape(M, D)                         # (M, D) f32

    # ---- LayerNorm 1 (f32 VPU/EUP math) ----
    h = _layernorm(x, g1, be1)

    # ---- Fused QKV projection: one (M,64)x(64,192) bf16 MXU pass ----
    qkv = jnp.dot(h.astype(jnp.bfloat16), wqkv_ref[...],
                  preferred_element_type=jnp.float32) + bqkv
    qkv16 = qkv.astype(jnp.bfloat16).reshape(Bt, S, 3 * D)

    # ---- Multi-head self-attention, batched over the Bt batch elements.
    # Per-head output projection is ACCUMULATED (no lane-dim head concat).
    attn = jnp.zeros((M, D), jnp.float32)
    for hi in range(H):                                  # static unroll (H == 2)
        q16 = qkv16[:, :, hi * HD:(hi + 1) * HD]                # (Bt, S, HD)
        k16 = qkv16[:, :, D + hi * HD:D + (hi + 1) * HD]
        v16 = qkv16[:, :, 2 * D + hi * HD:2 * D + (hi + 1) * HD]

        # scores: contraction folds the K "transpose" into dimension numbers
        s = jnp.einsum('bqd,bkd->bqk', q16, k16,
                       preferred_element_type=jnp.float32) * SCALE  # (Bt,S,S)
        s = s - jnp.max(s, axis=-1, keepdims=True)
        p = jnp.exp(s)                                   # unnormalized, f32
        denom = jnp.sum(p, axis=-1, keepdims=True)       # (Bt, S, 1)

        o_h = jnp.einsum('bqk,bkd->bqd', p.astype(jnp.bfloat16), v16,
                         preferred_element_type=jnp.float32)         # (Bt,S,HD)
        # deferred softmax normalization; reciprocal goes to the EUP slot
        o_h = o_h * pl.reciprocal(denom, approx=True)

        attn = attn + jnp.dot(o_h.reshape(M, HD).astype(jnp.bfloat16),
                              wo_ref[hi],
                              preferred_element_type=jnp.float32)
    attn = attn + bo

    x1 = attn + x                                        # first residual (f32)

    # ---- LayerNorm 2 + MLP ----
    h2 = _layernorm(x1, g2, be2)
    m = jnp.dot(h2.astype(jnp.bfloat16), w1_ref[...],
                preferred_element_type=jnp.float32) + bm1
    m = _gelu_tanh(m)
    m = jnp.dot(m.astype(jnp.bfloat16), w2_ref[...],
                preferred_element_type=jnp.float32) + bm2

    o_ref[...] = (m + x1).reshape(Bt, S, D).astype(o_ref.dtype)


def _vmem_bytes(bt, S):
    """Rough per-step VMEM working-set estimate for block-batch bt."""
    rows = bt * S
    b = 0
    b += 2 * 2 * rows * D * 4            # x in + out blocks, double-buffered
    b += rows * 3 * D * (4 + 2)          # qkv f32 + bf16 copy
    b += bt * S * S * (4 + 2)            # scores f32 + probs bf16 (one head peak)
    b += rows * (4 * D * 4)              # h / attn / x1 / h2 temps (f32)
    b += rows * INTER * (4 + 2)          # MLP intermediate f32 + bf16
    b += 1 << 20                         # params + slack
    return b


def _pick_block_batch(B, S):
    """Largest VMEM-fitting Bt; prefer >=2 grid steps, even step count (v7x),
    and ~8K rows per step to amortize the ~0.35us per-step overhead."""
    divs = [d for d in range(1, B + 1) if B % d == 0]
    fit = [d for d in divs if _vmem_bytes(d, S) <= VMEM_BUDGET] or [1]
    best_d, best_score = fit[0], None
    for d in fit:
        steps = B // d
        rows = d * S
        score = (steps >= 2,              # keep the pipeline (and 2 TCs) busy
                 steps % 2 == 0,          # even split across v7x's TensorCores
                 rows >= 4096,            # big enough block to amortize overhead
                 -abs(rows - 8192))       # aim at ~8K rows (~2 MiB of x) / step
        if best_score is None or score > best_score:
            best_d, best_score = d, score
    return best_d


def prepare_params(params):
    """One-time weight prep (fusion + bf16 casts) -- call once at load time."""
    (g1, be1, wq, bq, wk, bk, wv, bv, wo, bo, g2, be2, w1, bm1, w2, bm2) = params

    wqkv = jnp.concatenate([wq, wk, wv], axis=1).astype(jnp.bfloat16)   # (D, 3D)
    wo_h = wo.reshape(H, HD, D).astype(jnp.bfloat16)                     # (H, HD, D)
    w1b = w1.astype(jnp.bfloat16)                                        # (D, INTER)
    w2b = w2.astype(jnp.bfloat16)                                        # (INTER, D)

    width = 3 * D

    def pad_row(v):
        v = v.reshape(-1).astype(jnp.float32)
        return jnp.pad(v, (0, width - v.shape[0]))

    pvec = jnp.stack([
        pad_row(g1), pad_row(be1),
        pad_row(jnp.concatenate([bq, bk, bv], axis=1)),
        pad_row(bo),
        pad_row(g2), pad_row(be2),
        pad_row(bm1), pad_row(bm2),
    ], axis=0)                                                           # (8, 192)

    return (wqkv, wo_h, w1b, w2b, pvec)


def encoder_layer(x, prepared, block_batch=None):
    """x: (B, S, D) float32.  prepared: output of prepare_params()."""
    wqkv, wo_h, w1b, w2b, pvec = prepared
    B, S, Dd = x.shape
    assert Dd == D
    Bt = _pick_block_batch(B, S) if block_batch is None else block_batch
    assert B % Bt == 0

    in_specs = [pl.BlockSpec((Bt, S, D), lambda b: (b, 0, 0))]
    for p in (wqkv, wo_h, w1b, w2b, pvec):
        # parameters are tiny: load each whole array into VMEM (constant index)
        in_specs.append(pl.BlockSpec(p.shape, lambda b, n=p.ndim: (0,) * n))

    return pl.pallas_call(
        encoder_layer_kernel,
        out_shape=jax.ShapeDtypeStruct((B, S, D), x.dtype),
        grid_spec=pltpu.PrefetchScalarGridSpec(
            num_scalar_prefetch=0,
            grid=(B // Bt,),
            in_specs=in_specs,
            out_specs=pl.BlockSpec((Bt, S, D), lambda b: (b, 0, 0)),
        ),
        compiler_params=pltpu.CompilerParams(
            dimension_semantics=("parallel",),
            vmem_limit_bytes=VMEM_LIMIT),
    )(x, wqkv, wo_h, w1b, w2b, pvec)


def encoder_layer_reference(x, params):
    """Pure-JAX f32 reference (mirrors the PyTorch module in eval mode)."""
    (g1, be1, wq, bq, wk, bk, wv, bv, wo, bo, g2, be2, w1, bm1, w2, bm2) = params
    h = _layernorm(x, g1[0], be1[0])
    q = h @ wq + bq[0]
    k = h @ wk + bk[0]
    v = h @ wv + bv[0]
    B, S, _ = x.shape
    qh = q.reshape(B, S, H, HD).transpose(0, 2, 1, 3)
    kh = k.reshape(B, S, H, HD).transpose(0, 2, 1, 3)
    vh = v.reshape(B, S, H, HD).transpose(0, 2, 1, 3)
    s = jnp.einsum("bhqd,bhkd->bhqk", qh, kh) * SCALE
    p = jax.nn.softmax(s.astype(jnp.float32), axis=-1)
    o = jnp.einsum("bhqk,bhkd->bhqd", p, vh)
    o = o.transpose(0, 2, 1, 3).reshape(B, S, D)
    attn = o @ wo + bo[0]
    x1 = attn + x
    h2 = _layernorm(x1, g2[0], be2[0])
    m = _gelu_tanh(h2 @ w1 + bm1[0]) @ w2 + bm2[0]
    return m + x1


if __name__ == "__main__":
    B, S = 8, 32          # small test; picker -> Bt=4 (128 rows/step, 2 steps)
    key = jax.random.PRNGKey(0)
    ks = jax.random.split(key, 24)

    x = jax.random.normal(ks[0], (B, S, D), jnp.float32)

    def w(k, i, o):
        return 0.05 * jax.random.normal(k, (i, o), jnp.float32)

    def b(k, o):
        return 0.01 * jax.random.normal(k, (1, o), jnp.float32)

    params = [
        # LayerNorm 1
        1.0 + 0.1 * jax.random.normal(ks[1], (1, D), jnp.float32),
        0.1 * jax.random.normal(ks[2], (1, D), jnp.float32),
        # q/k/v/out projections (stored as (in, out))
        w(ks[3], D, D), b(ks[4], D),
        w(ks[5], D, D), b(ks[6], D),
        w(ks[7], D, D), b(ks[8], D),
        w(ks[9], D, D), b(ks[10], D),
        # LayerNorm 2
        1.0 + 0.1 * jax.random.normal(ks[11], (1, D), jnp.float32),
        0.1 * jax.random.normal(ks[12], (1, D), jnp.float32),
        # MLP
        w(ks[13], D, INTER), b(ks[14], INTER),
        w(ks[15], INTER, D), b(ks[16], D),
    ]

    prepared = prepare_params(params)          # one-time weight fusion / casts
    out = jax.block_until_ready(encoder_layer(x, prepared))
    ref = encoder_layer_reference(x, params)

    assert out.shape == (B, S, D)
    max_err = jnp.max(jnp.abs(out - ref))
    # bf16 MXU inputs + approx reciprocal -> relaxed tolerance vs f32 reference
    assert jnp.allclose(out, ref, atol=3e-2, rtol=3e-2), f"max err {max_err}"

    print("KERNEL_OK")
</pallas_src>

<mosaic_0001>
module attributes {stable_mosaic.version = 11 : i64} {
  func.func @encoder_layer_kernel(%arg0: i32, %arg1: memref<4x32x64xf32, #tpu.memory_space<vmem>>, %arg2: memref<64x192xbf16, #tpu.memory_space<vmem>>, %arg3: memref<2x32x64xbf16, #tpu.memory_space<vmem>>, %arg4: memref<64x128xbf16, #tpu.memory_space<vmem>>, %arg5: memref<128x64xbf16, #tpu.memory_space<vmem>>, %arg6: memref<8x192xf32, #tpu.memory_space<vmem>>, %arg7: memref<4x32x64xf32, #tpu.memory_space<vmem>>) attributes {dimension_semantics = [#tpu.dimension_semantics<parallel>], iteration_bounds = array<i64: 2>, scalar_prefetch = 0 : i64, scratch_operands = 0 : i64, tpu.core_type = #tpu.core_type<tc>, window_params = [{transform_indices = @transform_0, window_bounds = array<i64: 4, 32, 64>}, {pipeline_mode = #tpu.pipeline_mode<synchronous>, transform_indices = @transform_1, window_bounds = array<i64: 64, 192>}, {pipeline_mode = #tpu.pipeline_mode<synchronous>, transform_indices = @transform_2, window_bounds = array<i64: 2, 32, 64>}, {pipeline_mode = #tpu.pipeline_mode<synchronous>, transform_indices = @transform_3, window_bounds = array<i64: 64, 128>}, {pipeline_mode = #tpu.pipeline_mode<synchronous>, transform_indices = @transform_4, window_bounds = array<i64: 128, 64>}, {pipeline_mode = #tpu.pipeline_mode<synchronous>, transform_indices = @transform_5, window_bounds = array<i64: 8, 192>}, {transform_indices = @transform_6, window_bounds = array<i64: 4, 32, 64>}]} {
    %c0 = arith.constant 0 : index
    %c0_0 = arith.constant 0 : index
    %0 = vector.load %arg6[%c0, %c0_0] : memref<8x192xf32, #tpu.memory_space<vmem>>, vector<1x64xf32>
    %1 = vector.shape_cast %0 : vector<1x64xf32> to vector<64xf32>
    %c1 = arith.constant 1 : index
    %c0_1 = arith.constant 0 : index
    %2 = vector.load %arg6[%c1, %c0_1] : memref<8x192xf32, #tpu.memory_space<vmem>>, vector<1x64xf32>
    %3 = vector.shape_cast %2 : vector<1x64xf32> to vector<64xf32>
    %c2 = arith.constant 2 : index
    %c0_2 = arith.constant 0 : index
    %4 = vector.load %arg6[%c2, %c0_2] : memref<8x192xf32, #tpu.memory_space<vmem>>, vector<1x192xf32>
    %5 = vector.shape_cast %4 : vector<1x192xf32> to vector<192xf32>
    %c3 = arith.constant 3 : index
    %c0_3 = arith.constant 0 : index
    %6 = vector.load %arg6[%c3, %c0_3] : memref<8x192xf32, #tpu.memory_space<vmem>>, vector<1x64xf32>
    %7 = vector.shape_cast %6 : vector<1x64xf32> to vector<64xf32>
    %c4 = arith.constant 4 : index
    %c0_4 = arith.constant 0 : index
    %8 = vector.load %arg6[%c4, %c0_4] : memref<8x192xf32, #tpu.memory_space<vmem>>, vector<1x64xf32>
    %9 = vector.shape_cast %8 : vector<1x64xf32> to vector<64xf32>
    %c5 = arith.constant 5 : index
    %c0_5 = arith.constant 0 : index
    %10 = vector.load %arg6[%c5, %c0_5] : memref<8x192xf32, #tpu.memory_space<vmem>>, vector<1x64xf32>
    %11 = vector.shape_cast %10 : vector<1x64xf32> to vector<64xf32>
    %c6 = arith.constant 6 : index
    %c0_6 = arith.constant 0 : index
    %12 = vector.load %arg6[%c6, %c0_6] : memref<8x192xf32, #tpu.memory_space<vmem>>, vector<1x128xf32>
    %13 = vector.shape_cast %12 : vector<1x128xf32> to vector<128xf32>
    %c7 = arith.constant 7 : index
    %c0_7 = arith.constant 0 : index
    %14 = vector.load %arg6[%c7, %c0_7] : memref<8x192xf32, #tpu.memory_space<vmem>>, vector<1x64xf32>
    %15 = vector.shape_cast %14 : vector<1x64xf32> to vector<64xf32>
    %c0_8 = arith.constant 0 : index
    %c0_9 = arith.constant 0 : index
    %c0_10 = arith.constant 0 : index
    %16 = vector.load %arg1[%c0_8, %c0_9, %c0_10] : memref<4x32x64xf32, #tpu.memory_space<vmem>>, vector<4x32x64xf32>
    %17 = vector.shape_cast %16 : vector<4x32x64xf32> to vector<128x64xf32>
    %cst = arith.constant dense<0.000000e+00> : vector<128xf32>
    %18 = vector.multi_reduction <add>, %17, %cst [1] : vector<128x64xf32> to vector<128xf32>
    %19 = vector.shape_cast %18 : vector<128xf32> to vector<128x1xf32>
    %cst_11 = arith.constant 6.400000e+01 : f32
    %20 = vector.broadcast %cst_11 : f32 to vector<128x1xf32>
    %21 = arith.divf %19, %20 : vector<128x1xf32>
    %22 = vector.broadcast %21 : vector<128x1xf32> to vector<128x64xf32>
    %23 = arith.subf %17, %22 : vector<128x64xf32>
    %24 = arith.mulf %23, %23 : vector<128x64xf32>
    %cst_12 = arith.constant dense<0.000000e+00> : vector<128xf32>
    %25 = vector.multi_reduction <add>, %24, %cst_12 [1] : vector<128x64xf32> to vector<128xf32>
    %26 = vector.shape_cast %25 : vector<128xf32> to vector<128x1xf32>
    %cst_13 = arith.constant 6.400000e+01 : f32
    %27 = vector.broadcast %cst_13 : f32 to vector<128x1xf32>
    %28 = arith.divf %26, %27 : vector<128x1xf32>
    %29 = vector.broadcast %21 : vector<128x1xf32> to vector<128x64xf32>
    %30 = arith.subf %17, %29 : vector<128x64xf32>
    %cst_14 = arith.constant 9.99999997E-7 : f32
    %31 = vector.broadcast %cst_14 : f32 to vector<128x1xf32>
    %32 = arith.addf %28, %31 : vector<128x1xf32>
    %33 = math.rsqrt %32 : vector<128x1xf32>
    %34 = vector.broadcast %33 : vector<128x1xf32> to vector<128x64xf32>
    %35 = arith.mulf %30, %34 : vector<128x64xf32>
    %36 = vector.shape_cast %1 : vector<64xf32> to vector<1x64xf32>
    %37 = vector.broadcast %36 : vector<1x64xf32> to vector<128x64xf32>
    %38 = arith.mulf %35, %37 : vector<128x64xf32>
    %39 = vector.shape_cast %3 : vector<64xf32> to vector<1x64xf32>
    %40 = vector.broadcast %39 : vector<1x64xf32> to vector<128x64xf32>
    %41 = arith.addf %38, %40 : vector<128x64xf32>
    %42 = arith.truncf %41 : vector<128x64xf32> to vector<128x64xbf16>
    %c0_15 = arith.constant 0 : index
    %c0_16 = arith.constant 0 : index
    %43 = vector.load %arg2[%c0_15, %c0_16] : memref<64x192xbf16, #tpu.memory_space<vmem>>, vector<64x192xbf16>
    %cst_17 = arith.constant dense<0.000000e+00> : vector<128x192xf32>
    %44 = tpu.matmul %42, %43, %cst_17 {dimension_numbers = #tpu.dot_dimension_numbers<[1], [0], [0], [1], [0, 0, 1, 1], [], []>} : vector<128x64xbf16>, vector<64x192xbf16>, vector<128x192xf32> -> vector<128x192xf32>
    %45 = vector.shape_cast %5 : vector<192xf32> to vector<1x192xf32>
    %46 = vector.broadcast %45 : vector<1x192xf32> to vector<128x192xf32>
    %47 = arith.addf %44, %46 : vector<128x192xf32>
    %48 = arith.truncf %47 : vector<128x192xf32> to vector<128x192xbf16>
    %49 = vector.shape_cast %48 : vector<128x192xbf16> to vector<4x32x192xbf16>
    %cst_18 = arith.constant 0.000000e+00 : f32
    %50 = vector.broadcast %cst_18 : f32 to vector<128x64xf32>
    %51 = vector.extract_strided_slice %49 {offsets = [0, 0, 0], sizes = [4, 32, 32], strides = [1, 1, 1]} : vector<4x32x192xbf16> to vector<4x32x32xbf16>
    %52 = vector.extract_strided_slice %49 {offsets = [0, 0, 64], sizes = [4, 32, 32], strides = [1, 1, 1]} : vector<4x32x192xbf16> to vector<4x32x32xbf16>
    %53 = vector.extract_strided_slice %49 {offsets = [0, 0, 128], sizes = [4, 32, 32], strides = [1, 1, 1]} : vector<4x32x192xbf16> to vector<4x32x32xbf16>
    "tpu.trace_start"() <{level = 10 : i32, message = "bqd,bkd->bqk"}> : () -> ()
    %cst_19 = arith.constant dense<0.000000e+00> : vector<4x32x32xf32>
    %54 = tpu.matmul %51, %52, %cst_19 {dimension_numbers = #tpu.dot_dimension_numbers<[2], [2], [1], [1], [0, 0, 0, 1, 1, 1], [0], [0]>} : vector<4x32x32xbf16>, vector<4x32x32xbf16>, vector<4x32x32xf32> -> vector<4x32x32xf32>
    "tpu.trace_stop"() : () -> ()
    %cst_20 = arith.constant 0.176776692 : f32
    %55 = vector.broadcast %cst_20 : f32 to vector<4x32x32xf32>
    %56 = arith.mulf %54, %55 : vector<4x32x32xf32>
    %cst_21 = arith.constant dense<0xFF800000> : vector<4x32xf32>
    %57 = vector.multi_reduction <maximumf>, %56, %cst_21 [2] : vector<4x32x32xf32> to vector<4x32xf32>
    %58 = vector.shape_cast %57 : vector<4x32xf32> to vector<4x32x1xf32>
    %59 = vector.broadcast %58 : vector<4x32x1xf32> to vector<4x32x32xf32>
    %60 = arith.subf %56, %59 : vector<4x32x32xf32>
    %61 = math.exp %60 : vector<4x32x32xf32>
    %cst_22 = arith.constant dense<0.000000e+00> : vector<4x32xf32>
    %62 = vector.multi_reduction <add>, %61, %cst_22 [2] : vector<4x32x32xf32> to vector<4x32xf32>
    %63 = vector.shape_cast %62 : vector<4x32xf32> to vector<4x32x1xf32>
    %64 = arith.truncf %61 : vector<4x32x32xf32> to vector<4x32x32xbf16>
    "tpu.trace_start"() <{level = 10 : i32, message = "bqk,bkd->bqd"}> : () -> ()
    %cst_23 = arith.constant dense<0.000000e+00> : vector<4x32x32xf32>
    %65 = tpu.matmul %64, %53, %cst_23 {dimension_numbers = #tpu.dot_dimension_numbers<[2], [1], [1], [2], [0, 0, 0, 1, 1, 2], [0], [0]>} : vector<4x32x32xbf16>, vector<4x32x32xbf16>, vector<4x32x32xf32> -> vector<4x32x32xf32>
    "tpu.trace_stop"() : () -> ()
    %66 = tpu.reciprocal %63 {approx = true} : vector<4x32x1xf32> -> vector<4x32x1xf32>
    %67 = vector.broadcast %66 : vector<4x32x1xf32> to vector<4x32x32xf32>
    %68 = arith.mulf %65, %67 : vector<4x32x32xf32>
    %69 = vector.shape_cast %68 : vector<4x32x32xf32> to vector<128x32xf32>
    %70 = arith.truncf %69 : vector<128x32xf32> to vector<128x32xbf16>
    %c0_24 = arith.constant 0 : index
    %c0_25 = arith.constant 0 : index
    %c0_26 = arith.constant 0 : index
    %71 = vector.load %arg3[%c0_24, %c0_25, %c0_26] : memref<2x32x64xbf16, #tpu.memory_space<vmem>>, vector<1x32x64xbf16>
    %72 = vector.shape_cast %71 : vector<1x32x64xbf16> to vector<32x64xbf16>
    %cst_27 = arith.constant dense<0.000000e+00> : vector<128x64xf32>
    %73 = tpu.matmul %70, %72, %cst_27 {dimension_numbers = #tpu.dot_dimension_numbers<[1], [0], [0], [1], [0, 0, 1, 1], [], []>} : vector<128x32xbf16>, vector<32x64xbf16>, vector<128x64xf32> -> vector<128x64xf32>
    %74 = arith.addf %50, %73 : vector<128x64xf32>
    %75 = vector.extract_strided_slice %49 {offsets = [0, 0, 32], sizes = [4, 32, 32], strides = [1, 1, 1]} : vector<4x32x192xbf16> to vector<4x32x32xbf16>
    %76 = vector.extract_strided_slice %49 {offsets = [0, 0, 96], sizes = [4, 32, 32], strides = [1, 1, 1]} : vector<4x32x192xbf16> to vector<4x32x32xbf16>
    %77 = vector.extract_strided_slice %49 {offsets = [0, 0, 160], sizes = [4, 32, 32], strides = [1, 1, 1]} : vector<4x32x192xbf16> to vector<4x32x32xbf16>
    "tpu.trace_start"() <{level = 10 : i32, message = "bqd,bkd->bqk"}> : () -> ()
    %cst_28 = arith.constant dense<0.000000e+00> : vector<4x32x32xf32>
    %78 = tpu.matmul %75, %76, %cst_28 {dimension_numbers = #tpu.dot_dimension_numbers<[2], [2], [1], [1], [0, 0, 0, 1, 1, 1], [0], [0]>} : vector<4x32x32xbf16>, vector<4x32x32xbf16>, vector<4x32x32xf32> -> vector<4x32x32xf32>
    "tpu.trace_stop"() : () -> ()
    %cst_29 = arith.constant 0.176776692 : f32
    %79 = vector.broadcast %cst_29 : f32 to vector<4x32x32xf32>
    %80 = arith.mulf %78, %79 : vector<4x32x32xf32>
    %cst_30 = arith.constant dense<0xFF800000> : vector<4x32xf32>
    %81 = vector.multi_reduction <maximumf>, %80, %cst_30 [2] : vector<4x32x32xf32> to vector<4x32xf32>
    %82 = vector.shape_cast %81 : vector<4x32xf32> to vector<4x32x1xf32>
    %83 = vector.broadcast %82 : vector<4x32x1xf32> to vector<4x32x32xf32>
    %84 = arith.subf %80, %83 : vector<4x32x32xf32>
    %85 = math.exp %84 : vector<4x32x32xf32>
    %cst_31 = arith.constant dense<0.000000e+00> : vector<4x32xf32>
    %86 = vector.multi_reduction <add>, %85, %cst_31 [2] : vector<4x32x32xf32> to vector<4x32xf32>
    %87 = vector.shape_cast %86 : vector<4x32xf32> to vector<4x32x1xf32>
    %88 = arith.truncf %85 : vector<4x32x32xf32> to vector<4x32x32xbf16>
    "tpu.trace_start"() <{level = 10 : i32, message = "bqk,bkd->bqd"}> : () -> ()
    %cst_32 = arith.constant dense<0.000000e+00> : vector<4x32x32xf32>
    %89 = tpu.matmul %88, %77, %cst_32 {dimension_numbers = #tpu.dot_dimension_numbers<[2], [1], [1], [2], [0, 0, 0, 1, 1, 2], [0], [0]>} : vector<4x32x32xbf16>, vector<4x32x32xbf16>, vector<4x32x32xf32> -> vector<4x32x32xf32>
    "tpu.trace_stop"() : () -> ()
    %90 = tpu.reciprocal %87 {approx = true} : vector<4x32x1xf32> -> vector<4x32x1xf32>
    %91 = vector.broadcast %90 : vector<4x32x1xf32> to vector<4x32x32xf32>
    %92 = arith.mulf %89, %91 : vector<4x32x32xf32>
    %93 = vector.shape_cast %92 : vector<4x32x32xf32> to vector<128x32xf32>
    %94 = arith.truncf %93 : vector<128x32xf32> to vector<128x32xbf16>
    %c1_33 = arith.constant 1 : index
    %c0_34 = arith.constant 0 : index
    %c0_35 = arith.constant 0 : index
    %95 = vector.load %arg3[%c1_33, %c0_34, %c0_35] : memref<2x32x64xbf16, #tpu.memory_space<vmem>>, vector<1x32x64xbf16>
    %96 = vector.shape_cast %95 : vector<1x32x64xbf16> to vector<32x64xbf16>
    %cst_36 = arith.constant dense<0.000000e+00> : vector<128x64xf32>
    %97 = tpu.matmul %94, %96, %cst_36 {dimension_numbers = #tpu.dot_dimension_numbers<[1], [0], [0], [1], [0, 0, 1, 1], [], []>} : vector<128x32xbf16>, vector<32x64xbf16>, vector<128x64xf32> -> vector<128x64xf32>
    %98 = arith.addf %74, %97 : vector<128x64xf32>
    %99 = vector.shape_cast %7 : vector<64xf32> to vector<1x64xf32>
    %100 = vector.broadcast %99 : vector<1x64xf32> to vector<128x64xf32>
    %101 = arith.addf %98, %100 : vector<128x64xf32>
    %102 = arith.addf %101, %17 : vector<128x64xf32>
    %cst_37 = arith.constant dense<0.000000e+00> : vector<128xf32>
    %103 = vector.multi_reduction <add>, %102, %cst_37 [1] : vector<128x64xf32> to vector<128xf32>
    %104 = vector.shape_cast %103 : vector<128xf32> to vector<128x1xf32>
    %cst_38 = arith.constant 6.400000e+01 : f32
    %105 = vector.broadcast %cst_38 : f32 to vector<128x1xf32>
    %106 = arith.divf %104, %105 : vector<128x1xf32>
    %107 = vector.broadcast %106 : vector<128x1xf32> to vector<128x64xf32>
    %108 = arith.subf %102, %107 : vector<128x64xf32>
    %109 = arith.mulf %108, %108 : vector<128x64xf32>
    %cst_39 = arith.constant dense<0.000000e+00> : vector<128xf32>
    %110 = vector.multi_reduction <add>, %109, %cst_39 [1] : vector<128x64xf32> to vector<128xf32>
    %111 = vector.shape_cast %110 : vector<128xf32> to vector<128x1xf32>
    %cst_40 = arith.constant 6.400000e+01 : f32
    %112 = vector.broadcast %cst_40 : f32 to vector<128x1xf32>
    %113 = arith.divf %111, %112 : vector<128x1xf32>
    %114 = vector.broadcast %106 : vector<128x1xf32> to vector<128x64xf32>
    %115 = arith.subf %102, %114 : vector<128x64xf32>
    %cst_41 = arith.constant 9.99999997E-7 : f32
    %116 = vector.broadcast %cst_41 : f32 to vector<128x1xf32>
    %117 = arith.addf %113, %116 : vector<128x1xf32>
    %118 = math.rsqrt %117 : vector<128x1xf32>
    %119 = vector.broadcast %118 : vector<128x1xf32> to vector<128x64xf32>
    %120 = arith.mulf %115, %119 : vector<128x64xf32>
    %121 = vector.shape_cast %9 : vector<64xf32> to vector<1x64xf32>
    %122 = vector.broadcast %121 : vector<1x64xf32> to vector<128x64xf32>
    %123 = arith.mulf %120, %122 : vector<128x64xf32>
    %124 = vector.shape_cast %11 : vector<64xf32> to vector<1x64xf32>
    %125 = vector.broadcast %124 : vector<1x64xf32> to vector<128x64xf32>
    %126 = arith.addf %123, %125 : vector<128x64xf32>
    %127 = arith.truncf %126 : vector<128x64xf32> to vector<128x64xbf16>
    %c0_42 = arith.constant 0 : index
    %c0_43 = arith.constant 0 : index
    %128 = vector.load %arg4[%c0_42, %c0_43] : memref<64x128xbf16, #tpu.memory_space<vmem>>, vector<64x128xbf16>
    %cst_44 = arith.constant dense<0.000000e+00> : vector<128x128xf32>
    %129 = tpu.matmul %127, %128, %cst_44 {dimension_numbers = #tpu.dot_dimension_numbers<[1], [0], [0], [1], [0, 0, 1, 1], [], []>} : vector<128x64xbf16>, vector<64x128xbf16>, vector<128x128xf32> -> vector<128x128xf32>
    %130 = vector.shape_cast %13 : vector<128xf32> to vector<1x128xf32>
    %131 = vector.broadcast %130 : vector<1x128xf32> to vector<128x128xf32>
    %132 = arith.addf %129, %131 : vector<128x128xf32>
    %cst_45 = arith.constant 5.000000e-01 : f32
    %133 = vector.broadcast %cst_45 : f32 to vector<128x128xf32>
    %134 = arith.mulf %133, %132 : vector<128x128xf32>
    %cst_46 = arith.constant 4.471500e-02 : f32
    %135 = vector.broadcast %cst_46 : f32 to vector<128x128xf32>
    %136 = arith.mulf %135, %132 : vector<128x128xf32>
    %137 = arith.mulf %136, %132 : vector<128x128xf32>
    %138 = arith.mulf %137, %132 : vector<128x128xf32>
    %139 = arith.addf %132, %138 : vector<128x128xf32>
    %cst_47 = arith.constant 0.797884583 : f32
    %140 = vector.broadcast %cst_47 : f32 to vector<128x128xf32>
    %141 = arith.mulf %140, %139 : vector<128x128xf32>
    %142 = math.tanh %141 : vector<128x128xf32>
    %cst_48 = arith.constant 1.000000e+00 : f32
    %143 = vector.broadcast %cst_48 : f32 to vector<128x128xf32>
    %144 = arith.addf %143, %142 : vector<128x128xf32>
    %145 = arith.mulf %134, %144 : vector<128x128xf32>
    %146 = arith.truncf %145 : vector<128x128xf32> to vector<128x128xbf16>
    %c0_49 = arith.constant 0 : index
    %c0_50 = arith.constant 0 : index
    %147 = vector.load %arg5[%c0_49, %c0_50] : memref<128x64xbf16, #tpu.memory_space<vmem>>, vector<128x64xbf16>
    %cst_51 = arith.constant dense<0.000000e+00> : vector<128x64xf32>
    %148 = tpu.matmul %146, %147, %cst_51 {dimension_numbers = #tpu.dot_dimension_numbers<[1], [0], [0], [1], [0, 0, 1, 1], [], []>} : vector<128x128xbf16>, vector<128x64xbf16>, vector<128x64xf32> -> vector<128x64xf32>
    %149 = vector.shape_cast %15 : vector<64xf32> to vector<1x64xf32>
    %150 = vector.broadcast %149 : vector<1x64xf32> to vector<128x64xf32>
    %151 = arith.addf %148, %150 : vector<128x64xf32>
    %152 = arith.addf %151, %102 : vector<128x64xf32>
    %153 = vector.shape_cast %152 : vector<128x64xf32> to vector<4x32x64xf32>
    %c0_52 = arith.constant 0 : index
    %c0_53 = arith.constant 0 : index
    %c0_54 = arith.constant 0 : index
    %154 = vector.load %arg7[%c0_52, %c0_53, %c0_54] : memref<4x32x64xf32, #tpu.memory_space<vmem>>, vector<4x32x64xf32>
    tpu.vector_store %arg7[%c0_52, %c0_53, %c0_54], %153 {strides = array<i32>} : memref<4x32x64xf32, #tpu.memory_space<vmem>>, vector<4x32x64xf32>,
    return
  }
  func.func @transform_0(%arg0: i32) -> (i32, i32, i32) {
    %c0_i32 = arith.constant 0 : i32
    %c0_i32_0 = arith.constant 0 : i32
    %c0_i32_1 = arith.constant 0 : i32
    return %arg0, %c0_i32, %c0_i32_0 : i32, i32, i32
  }
  func.func @transform_1(%arg0: i32) -> (i32, i32) {
    %c0_i32 = arith.constant 0 : i32
    %c0_i32_0 = arith.constant 0 : i32
    %c0_i32_1 = arith.constant 0 : i32
    return %c0_i32, %c0_i32_0 : i32, i32
  }
  func.func @transform_2(%arg0: i32) -> (i32, i32, i32) {
    %c0_i32 = arith.constant 0 : i32
    %c0_i32_0 = arith.constant 0 : i32
    %c0_i32_1 = arith.constant 0 : i32
    %c0_i32_2 = arith.constant 0 : i32
    return %c0_i32, %c0_i32_0, %c0_i32_1 : i32, i32, i32
  }
  func.func @transform_3(%arg0: i32) -> (i32, i32) {
    %c0_i32 = arith.constant 0 : i32
    %c0_i32_0 = arith.constant 0 : i32
    %c0_i32_1 = arith.constant 0 : i32
    return %c0_i32, %c0_i32_0 : i32, i32
  }
  func.func @transform_4(%arg0: i32) -> (i32, i32) {
    %c0_i32 = arith.constant 0 : i32
    %c0_i32_0 = arith.constant 0 : i32
    %c0_i32_1 = arith.constant 0 : i32
    return %c0_i32, %c0_i32_0 : i32, i32
  }
  func.func @transform_5(%arg0: i32) -> (i32, i32) {
    %c0_i32 = arith.constant 0 : i32
    %c0_i32_0 = arith.constant 0 : i32
    %c0_i32_1 = arith.constant 0 : i32
    return %c0_i32, %c0_i32_0 : i32, i32
  }
  func.func @transform_6(%arg0: i32) -> (i32, i32, i32) {
    %c0_i32 = arith.constant 0 : i32
    %c0_i32_0 = arith.constant 0 : i32
    %c0_i32_1 = arith.constant 0 : i32
    return %arg0, %c0_i32, %c0_i32_0 : i32, i32, i32
  }
}

</mosaic_0001>

<llo_original>
// kernel: tpu_custom_call.1
$region0: #{tpu_custom_call.1}
  #allocation0 [shape = 'u32[]', space=smem, size = 0x4, offset = 0x4, fixed_abs, tag = 'smem constant byte address 0x4 - core index']
  #allocation1 [shape = 'u32[144,128]{1,0:T(1,128)}', space=vmem, size = 0x12000, scoped, tag = 'internal scratch']
  %s0 = inlined_call_operand.hbm [shape: f32[8,32,64], index: 0, kind: input, shape index: {}]
  %s1 = inlined_call_operand.vmem [shape: bf16[64,192], index: 1, kind: input, shape index: {}]
  %s2 = inlined_call_operand.vmem [shape: bf16[2,32,64], index: 2, kind: input, shape index: {}]
  %s3 = inlined_call_operand.hbm [shape: bf16[64,128], index: 3, kind: input, shape index: {}]
  %s4 = inlined_call_operand.vmem [shape: bf16[128,64], index: 4, kind: input, shape index: {}]
  %s5 = inlined_call_operand.hbm [shape: f32[8,192], index: 5, kind: input, shape index: {}]
  %s6 = inlined_call_operand.hbm [shape: f32[8,32,64], index: 6, kind: output, shape index: {}]
  %s7 = sld [smem:[#allocation0]]
  $region69: #{tpu_custom_call.1} parent=0
    _
  %s9 = ssub.s32 1, %s7
  %s10 = scalar_select 0, %s9, %s7
  $region1: #{tpu_custom_call.1} parent=0
    #allocation2 [shape = 'u8[131072]{0}', space=vmem, size = 0x20000, scoped, tag = 'input window, operand 0']
    #allocation3 [shape = 's32[2]{0}', space=sflag, size = 0x8, scoped, tag = 'scoped memory for tpu_custom_call.1']
    #allocation4 [shape = 's32[2]{0}', space=sflag, size = 0x8, scoped, tag = 'scoped memory for tpu_custom_call.1']
    #allocation5 [shape = 'u8[16384]{0}', space=vmem, size = 0x4000, scoped, tag = 'input window, operand 3, single buffered']
    #allocation6 [shape = 's32[1]{0}', space=sflag, size = 0x4, scoped, tag = 'scoped memory for tpu_custom_call.1']
    #allocation7 [shape = 'u8[8192]{0}', space=vmem, size = 0x2000, scoped, tag = 'input window, operand 5, single buffered']
    #allocation8 [shape = 'u8[131072]{0}', space=vmem, size = 0x20000, scoped, tag = 'output window, operand 0']
    %11 = vsyncpa [#allocation3], 0
    %s12 = scalar_lea.sflag [#allocation3], 1
    %13 = vsyncpa %s12, 0
    %14 = vsyncpa [#allocation6], 0
    %15 = vsyncpa [#allocation4], 0
    %s16 = scalar_lea.sflag [#allocation4], 1
    %17 = vsyncpa %s16, 0
    loop: start=0, step=1, limit=4
    $region2: #{tpu_custom_call.1} parent=1 // loop_pre_header
      _
    $region3: #{tpu_custom_call.1} parent=1 // loop_header
      %s19 = sphi 0, %s23
      %p20 = scmp.ge.s32.totalorder %s19, 4
      %s29 = sphi 0, %s31
      %s32 = sphi 0, %s29
      %s33 = sphi 0, %s32
      %s49 = sphi 0, %s33
      %s53 = sphi 0, %s53
      %s55 = sphi 0, %s53
      %s56 = sphi 0, %s55
      %s70 = sphi 0, %s56
      %s74 = sphi 0, %s74
      %s76 = sphi 0, %s74
      %s77 = sphi 0, %s76
      %s91 = sphi 0, %s77
      %s95 = sphi 0, %s95
      %s97 = sphi 0, %s95
      %s98 = sphi 0, %s97
      %s112 = sphi 0, %s98
      %s116 = sphi 0, %s116
      %s118 = sphi 0, %s116
      %s119 = sphi 0, %s118
      %s133 = sphi 0, %s119
      %s137 = sphi 0, %s137
      %s139 = sphi 0, %s137
      %s140 = sphi 0, %s139
      %s154 = sphi 0, %s140
      %s160 = sphi 0, %s162
      %s163 = sphi 0, %s160
      %s164 = sphi 0, %s163
      %s180 = sphi 0, %s164
    $region4: #{tpu_custom_call.1} parent=1 // loop_header_branch
      %22 = sbr.rel (%p20) target = $region8
    $region5: #{tpu_custom_call.1} parent=1 // loop_body
      %s24 = ssub.s32 %s19, 1
      %s25 = ssub.s32 %s19, 2
      %s26 = sadd.s32 %s19, 1
      %s27 = ssub.s32 %s19, %s26
      %p28 = scmp.eq.s32.totalorder %s27, 0
      %s30 = sadd.s32 %s29, 1
      %s31 = scalar_select %p28, %s29, %s30
      %p34 = pneg %p28
      %p35 = scmp.eq.s32.totalorder %s19, 1
      %p36 = por %p34, %p35
      %p37 = scmp.ne.s32.totalorder %s29, %s32
      %p38 = scmp.eq.s32.totalorder %s19, 0
      %p39 = por %p37, %p38
      %p40 = scmp.ne.s32.totalorder %s29, %s32
      %p41 = scmp.eq.s32.totalorder %s24, 1
      %p42 = por %p40, %p41
      %p43 = scmp.ne.s32.totalorder %s32, %s33
      %p44 = scmp.eq.s32.totalorder %s24, 0
      %p45 = por %p43, %p44
      %p46 = scmp.ne.s32.totalorder %s32, %s33
      %p47 = scmp.eq.s32.totalorder %s25, 1
      %p48 = por %p46, %p47
      %p50 = scmp.ne.s32.totalorder %s33, %s49
      %p51 = scmp.eq.s32.totalorder %s25, 0
      %p52 = por %p50, %p51
      %s54 = sadd.s32 %s53, 1
      %p57 = scmp.eq.s32.totalorder %s19, 1
      %p58 = scmp.ne.s32.totalorder %s53, %s55
      %p59 = scmp.eq.s32.totalorder %s19, 0
      %p60 = por %p58, %p59
      %p61 = scmp.ne.s32.totalorder %s53, %s55
      %p62 = scmp.eq.s32.totalorder %s24, 1
      %p63 = por %p61, %p62
      %p64 = scmp.ne.s32.totalorder %s55, %s56
      %p65 = scmp.eq.s32.totalorder %s24, 0
      %p66 = por %p64, %p65
      %p67 = scmp.ne.s32.totalorder %s55, %s56
      %p68 = scmp.eq.s32.totalorder %s25, 1
      %p69 = por %p67, %p68
      %p71 = scmp.ne.s32.totalorder %s56, %s70
      %p72 = scmp.eq.s32.totalorder %s25, 0
      %p73 = por %p71, %p72
      %s75 = sadd.s32 %s74, 1
      %p78 = scmp.eq.s32.totalorder %s19, 1
      %p79 = scmp.ne.s32.totalorder %s74, %s76
      %p80 = scmp.eq.s32.totalorder %s19, 0
      %p81 = por %p79, %p80
      %p82 = scmp.ne.s32.totalorder %s74, %s76
      %p83 = scmp.eq.s32.totalorder %s24, 1
      %p84 = por %p82, %p83
      %p85 = scmp.ne.s32.totalorder %s76, %s77
      %p86 = scmp.eq.s32.totalorder %s24, 0
      %p87 = por %p85, %p86
      %p88 = scmp.ne.s32.totalorder %s76, %s77
      %p89 = scmp.eq.s32.totalorder %s25, 1
      %p90 = por %p88, %p89
      %p92 = scmp.ne.s32.totalorder %s77, %s91
      %p93 = scmp.eq.s32.totalorder %s25, 0
      %p94 = por %p92, %p93
      %s96 = sadd.s32 %s95, 1
      %p99 = scmp.eq.s32.totalorder %s19, 1
      %p100 = scmp.ne.s32.totalorder %s95, %s97
      %p101 = scmp.eq.s32.totalorder %s19, 0
      %p102 = por %p100, %p101
      %p103 = scmp.ne.s32.totalorder %s95, %s97
      %p104 = scmp.eq.s32.totalorder %s24, 1
      %p105 = por %p103, %p104
      %p106 = scmp.ne.s32.totalorder %s97, %s98
      %p107 = scmp.eq.s32.totalorder %s24, 0
      %p108 = por %p106, %p107
      %p109 = scmp.ne.s32.totalorder %s97, %s98
      %p110 = scmp.eq.s32.totalorder %s25, 1
      %p111 = por %p109, %p110
      %p113 = scmp.ne.s32.totalorder %s98, %s112
      %p114 = scmp.eq.s32.totalorder %s25, 0
      %p115 = por %p113, %p114
      %s117 = sadd.s32 %s116, 1
      %p120 = scmp.eq.s32.totalorder %s19, 1
      %p121 = scmp.ne.s32.totalorder %s116, %s118
      %p122 = scmp.eq.s32.totalorder %s19, 0
      %p123 = por %p121, %p122
      %p124 = scmp.ne.s32.totalorder %s116, %s118
      %p125 = scmp.eq.s32.totalorder %s24, 1
      %p126 = por %p124, %p125
      %p127 = scmp.ne.s32.totalorder %s118, %s119
      %p128 = scmp.eq.s32.totalorder %s24, 0
      %p129 = por %p127, %p128
      %p130 = scmp.ne.s32.totalorder %s118, %s119
      %p131 = scmp.eq.s32.totalorder %s25, 1
      %p132 = por %p130, %p131
      %p134 = scmp.ne.s32.totalorder %s119, %s133
      %p135 = scmp.eq.s32.totalorder %s25, 0
      %p136 = por %p134, %p135
      %s138 = sadd.s32 %s137, 1
      %p141 = scmp.eq.s32.totalorder %s19, 1
      %p142 = scmp.ne.s32.totalorder %s137, %s139
      %p143 = scmp.eq.s32.totalorder %s19, 0
      %p144 = por %p142, %p143
      %p145 = scmp.ne.s32.totalorder %s137, %s139
      %p146 = scmp.eq.s32.totalorder %s24, 1
      %p147 = por %p145, %p146
      %p148 = scmp.ne.s32.totalorder %s139, %s140
      %p149 = scmp.eq.s32.totalorder %s24, 0
      %p150 = por %p148, %p149
      %p151 = scmp.ne.s32.totalorder %s139, %s140
      %p152 = scmp.eq.s32.totalorder %s25, 1
      %p153 = por %p151, %p152
      %p155 = scmp.ne.s32.totalorder %s140, %s154
      %p156 = scmp.eq.s32.totalorder %s25, 0
      %p157 = por %p155, %p156
      %s158 = ssub.s32 %s19, %s26
      %p159 = scmp.eq.s32.totalorder %s158, 0
      %s161 = sadd.s32 %s160, 1
      %s162 = scalar_select %p159, %s160, %s161
      %p165 = pneg %p159
      %p166 = scmp.eq.s32.totalorder %s19, 1
      %p167 = por %p165, %p166
      %p168 = scmp.ne.s32.totalorder %s160, %s163
      %p169 = scmp.eq.s32.totalorder %s19, 0
      %p170 = por %p168, %p169
      %p171 = scmp.ne.s32.totalorder %s160, %s163
      %p172 = scmp.eq.s32.totalorder %s24, 1
      %p173 = por %p171, %p172
      %p174 = scmp.ne.s32.totalorder %s163, %s164
      %p175 = scmp.eq.s32.totalorder %s24, 0
      %p176 = por %p174, %p175
      %p177 = scmp.ne.s32.totalorder %s163, %s164
      %p178 = scmp.eq.s32.totalorder %s25, 1
      %p179 = por %p177, %p178
      %p181 = scmp.ne.s32.totalorder %s164, %s180
      %p182 = scmp.eq.s32.totalorder %s25, 0
      %p183 = por %p181, %p182
      %p184 = scmp.le.s32.totalorder 1, %s19
      %p185 = scmp.lt.s32.totalorder %s19, 3
      %p186 = pnand %p184, %p185
      %p187 = pneg %p186
      // Predicated region
      $region9: #{tpu_custom_call.1} parent=5 // pred_check
        _
      $region10: #{tpu_custom_call.1} parent=5 // pred_check_branch
        %189 = sbr.rel (%p186) target = $region12
      $region11: #{tpu_custom_call.1} parent=5 // pred_region
        %s190 = ssub.s32 %s19, 1
        // Predicated region
        $region13: #{tpu_custom_call.1} parent=11 // pred_check
          %p191 = pneg %p66
        $region14: #{tpu_custom_call.1} parent=11 // pred_check_branch
          %193 = sbr.rel (%p191) target = $region16
        $region15: #{tpu_custom_call.1} parent=11 // pred_region
          _
        $region16: #{tpu_custom_call.1} parent=11 // pred_fallthru
          _
        // Predicated region
        $region17: #{tpu_custom_call.1} parent=11 // pred_check
          %p194 = pneg %p87
        $region18: #{tpu_custom_call.1} parent=11 // pred_check_branch
          %196 = sbr.rel (%p194) target = $region20
        $region19: #{tpu_custom_call.1} parent=11 // pred_region
          _
        $region20: #{tpu_custom_call.1} parent=11 // pred_fallthru
          _
        // Predicated region
        $region21: #{tpu_custom_call.1} parent=11 // pred_check
          %p197 = pneg %p108
        $region22: #{tpu_custom_call.1} parent=11 // pred_check_branch
          %199 = sbr.rel (%p197) target = $region24
        $region23: #{tpu_custom_call.1} parent=11 // pred_region
          %s201 = ssub.s32 512, 512
          %202 = vsyncadd [#allocation6], %s201
          %s203 = sshll.u32 [#allocation5], 4
          %s204 = int_to_ptr.vmem [resolvable:$true] %s203
          %209 = dma.hbm_to_vmem [thread:$0]  %s3, 512, %s204, [#allocation6], 64, 64, 4
        $region24: #{tpu_custom_call.1} parent=11 // pred_fallthru
          _
        // Predicated region
        $region25: #{tpu_custom_call.1} parent=11 // pred_check
          %p210 = pneg %p129
        $region26: #{tpu_custom_call.1} parent=11 // pred_check_branch
          %212 = sbr.rel (%p210) target = $region28
        $region27: #{tpu_custom_call.1} parent=11 // pred_region
          _
        $region28: #{tpu_custom_call.1} parent=11 // pred_fallthru
          _
        // Predicated region
        $region29: #{tpu_custom_call.1} parent=11 // pred_check
          %p213 = pneg %p150
        $region30: #{tpu_custom_call.1} parent=11 // pred_check_branch
          %215 = sbr.rel (%p213) target = $region32
        $region31: #{tpu_custom_call.1} parent=11 // pred_region
          %s217 = ssub.s32 256, 256
          %218 = vsyncadd [#allocation6], %s217
          %s220 = sshll.u32 [#allocation7], 4
          %s221 = int_to_ptr.vmem [resolvable:$true] %s220
          %223 = dma.hbm_to_vmem [thread:$0]  %s5, 256, %s221, [#allocation6]
        $region32: #{tpu_custom_call.1} parent=11 // pred_fallthru
          _
      $region12: #{tpu_custom_call.1} parent=5 // pred_fallthru
        _
      %p224 = scmp.lt.s32.totalorder %s19, 2
      // Predicated region
      $region33: #{tpu_custom_call.1} parent=5 // pred_check
        %p225 = pneg %p224
      $region34: #{tpu_custom_call.1} parent=5 // pred_check_branch
        %227 = sbr.rel (%p225) target = $region36
      $region35: #{tpu_custom_call.1} parent=5 // pred_region
        // Predicated region
        $region37: #{tpu_custom_call.1} parent=35 // pred_check
          %p228 = pneg %p39
        $region38: #{tpu_custom_call.1} parent=35 // pred_check_branch
          %230 = sbr.rel (%p228) target = $region40
        $region39: #{tpu_custom_call.1} parent=35 // pred_region
          %s231 = sand.u32 %s29, 1
          %s232 = scalar_lea.sflag [#allocation3], %s231
          %s233 = sand.u32 %s29, 1
          %s234 = smul.addr %s233, 128
          %s235 = scalar_lea.vmem [#allocation2], %s234
          %s236 = smul.u32 4, %s19
          %s238 = ssub.s32 2048, 2048
          %239 = vsyncadd %s232, %s238
          %s240 = smul.addr %s236, 4
          %s241 = smul.addr %s240, 128
          %s242 = scalar_lea.hbm %s0, %s241
          %s243 = sshll.u32 %s235, 4
          %s244 = int_to_ptr.vmem [resolvable:$true] %s243
          %249 = dma.hbm_to_vmem [thread:$0]  %s242, 2048, %s244, %s232, 128, 128, 8
        $region40: #{tpu_custom_call.1} parent=35 // pred_fallthru
          _
      $region36: #{tpu_custom_call.1} parent=5 // pred_fallthru
        _
      %p250 = scmp.le.s32.totalorder 1, %s19
      %p251 = scmp.lt.s32.totalorder %s19, 3
      %p252 = pnand %p250, %p251
      %p253 = pneg %p252
      // Predicated region
      $region41: #{tpu_custom_call.1} parent=5 // pred_check
        _
      $region42: #{tpu_custom_call.1} parent=5 // pred_check_branch
        %255 = sbr.rel (%p252) target = $region44
      $region43: #{tpu_custom_call.1} parent=5 // pred_region
        %s256 = ssub.s32 %s19, 1
        %s257 = sand.u32 %s32, 1
        %s258 = scalar_lea.sflag [#allocation3], %s257
        %s259 = sand.u32 %s32, 1
        %s260 = smul.addr %s259, 128
        %s261 = scalar_lea.vmem [#allocation2], %s260
        // Predicated region
        $region45: #{tpu_custom_call.1} parent=43 // pred_check
          %p262 = pneg %p45
        $region46: #{tpu_custom_call.1} parent=43 // pred_check_branch
          %264 = sbr.rel (%p262) target = $region48
        $region47: #{tpu_custom_call.1} parent=43 // pred_region
          %265 = dma.done %s258, 2048
        $region48: #{tpu_custom_call.1} parent=43 // pred_fallthru
          _
        // Predicated region
        $region49: #{tpu_custom_call.1} parent=43 // pred_check
          %p266 = pneg %p108
        $region50: #{tpu_custom_call.1} parent=43 // pred_check_branch
          %268 = sbr.rel (%p266) target = $region52
        $region51: #{tpu_custom_call.1} parent=43 // pred_region
          %269 = dma.done [#allocation6], 512
        $region52: #{tpu_custom_call.1} parent=43 // pred_fallthru
          _
        // Predicated region
        $region53: #{tpu_custom_call.1} parent=43 // pred_check
          %p270 = pneg %p150
        $region54: #{tpu_custom_call.1} parent=43 // pred_check_branch
          %272 = sbr.rel (%p270) target = $region56
        $region55: #{tpu_custom_call.1} parent=43 // pred_region
          %273 = dma.done [#allocation6], 256
        $region56: #{tpu_custom_call.1} parent=43 // pred_fallthru
          _
        %s274 = sand.u32 %s32, 1
        %s275 = scalar_lea.sflag [#allocation3], %s274
        %s276 = sand.u32 %s32, 1
        %s277 = smul.addr %s276, 128
        %s278 = scalar_lea.vmem [#allocation2], %s277
        %p279 = pneg %p45
        %p280 = pneg %p42
        %p281 = pneg %p66
        %p282 = pneg %p63
        %p283 = pneg %p87
        %p284 = pneg %p84
        %p285 = pneg %p108
        %p286 = pneg %p105
        %p287 = pneg %p129
        %p288 = pneg %p126
        %p289 = pneg %p150
        %p290 = pneg %p147
        %p291 = pneg %p176
        %p292 = pneg %p173
        %s293 = sand.u32 %s163, 1
        %s294 = scalar_lea.sflag [#allocation4], %s293
        %s295 = sand.u32 %s163, 1
        %s296 = smul.addr %s295, 128
        %s297 = scalar_lea.vmem [#allocation8], %s296
        %s298 = smul.u32 4, %s24
        %s299 = smul.u32 4, %s24
        %v301 = vld [vmem:[#allocation7] ss:$0 sm:$0xff]
        %v302 = vld [vmem:[#allocation7 + $0x1] ss:$0 sm:$0xff]
        %s303 = scalar_lea.vmem [#allocation7], 2
        %v304 = vld [vmem:[%s303] ss:$8 sm:$0x3]
        %v305 = vld [vmem:[#allocation7 + $0x3] ss:$0 sm:$0xff]
        %v306 = vld [vmem:[#allocation7 + $0x4] ss:$0 sm:$0xff]
        %v307 = vld [vmem:[#allocation7 + $0x5] ss:$0 sm:$0xff]
        %v308 = vld [vmem:[#allocation7 + $0x6] ss:$0 sm:$0xff]
        %v309 = vld [vmem:[#allocation7 + $0x7] ss:$0 sm:$0xff]
        %v310 = vld [vmem:[%s261] sm:$0xff]
        %v311 = vld [vmem:[%s261 + $0x8] sm:$0xff]
        %v312 = vld [vmem:[%s261 + $0x10] sm:$0xff]
        %v313 = vld [vmem:[%s261 + $0x18] sm:$0xff]
        %v314 = vld [vmem:[%s261 + $0x20] sm:$0xff]
        %v315 = vld [vmem:[%s261 + $0x28] sm:$0xff]
        %v316 = vld [vmem:[%s261 + $0x30] sm:$0xff]
        %v317 = vld [vmem:[%s261 + $0x38] sm:$0xff]
        %v318 = vld [vmem:[%s261 + $0x40] sm:$0xff]
        %v319 = vld [vmem:[%s261 + $0x48] sm:$0xff]
        %v320 = vld [vmem:[%s261 + $0x50] sm:$0xff]
        %v321 = vld [vmem:[%s261 + $0x58] sm:$0xff]
        %v322 = vld [vmem:[%s261 + $0x60] sm:$0xff]
        %v323 = vld [vmem:[%s261 + $0x68] sm:$0xff]
        %v324 = vld [vmem:[%s261 + $0x70] sm:$0xff]
        %v325 = vld [vmem:[%s261 + $0x78] sm:$0xff]
        %vm326 = vcmask 523264
        %v327 = vsel %vm326, %v310, 0.0
        %328 = vadd.xlane.f32.xlu0 %v327
        %v329 = vpop.xlane.xlu0 %328
        %v330 = vsel %vm326, %v311, 0.0
        %331 = vadd.xlane.f32.xlu0 %v330
        %v332 = vpop.xlane.xlu0 %331
        %v333 = vsel %vm326, %v312, 0.0
        %334 = vadd.xlane.f32.xlu0 %v333
        %v335 = vpop.xlane.xlu0 %334
        %v336 = vsel %vm326, %v313, 0.0
        %337 = vadd.xlane.f32.xlu0 %v336
        %v338 = vpop.xlane.xlu0 %337
        %v339 = vsel %vm326, %v314, 0.0
        %340 = vadd.xlane.f32.xlu0 %v339
        %v341 = vpop.xlane.xlu0 %340
        %v342 = vsel %vm326, %v315, 0.0
        %343 = vadd.xlane.f32.xlu0 %v342
        %v344 = vpop.xlane.xlu0 %343
        %v345 = vsel %vm326, %v316, 0.0
        %346 = vadd.xlane.f32.xlu0 %v345
        %v347 = vpop.xlane.xlu0 %346
        %v348 = vsel %vm326, %v317, 0.0
        %349 = vadd.xlane.f32.xlu0 %v348
        %v350 = vpop.xlane.xlu0 %349
        %v351 = vsel %vm326, %v318, 0.0
        %352 = vadd.xlane.f32.xlu0 %v351
        %v353 = vpop.xlane.xlu0 %352
        %v354 = vsel %vm326, %v319, 0.0
        %355 = vadd.xlane.f32.xlu0 %v354
        %v356 = vpop.xlane.xlu0 %355
        %v357 = vsel %vm326, %v320, 0.0
        %358 = vadd.xlane.f32.xlu0 %v357
        %v359 = vpop.xlane.xlu0 %358
        %v360 = vsel %vm326, %v321, 0.0
        %361 = vadd.xlane.f32.xlu0 %v360
        %v362 = vpop.xlane.xlu0 %361
        %v363 = vsel %vm326, %v322, 0.0
        %364 = vadd.xlane.f32.xlu0 %v363
        %v365 = vpop.xlane.xlu0 %364
        %v366 = vsel %vm326, %v323, 0.0
        %367 = vadd.xlane.f32.xlu0 %v366
        %v368 = vpop.xlane.xlu0 %367
        %v369 = vsel %vm326, %v324, 0.0
        %370 = vadd.xlane.f32.xlu0 %v369
        %v371 = vpop.xlane.xlu0 %370
        %v372 = vsel %vm326, %v325, 0.0
        %373 = vadd.xlane.f32.xlu0 %v372
        %v374 = vpop.xlane.xlu0 %373
        %v375 = vrcp.pop 64.0
        %v376 = vmul.f32 %v329, %v375
        %v377 = vmul.f32 %v332, %v375
        %v378 = vmul.f32 %v335, %v375
        %v379 = vmul.f32 %v338, %v375
        %v380 = vmul.f32 %v341, %v375
        %v381 = vmul.f32 %v344, %v375
        %v382 = vmul.f32 %v347, %v375
        %v383 = vmul.f32 %v350, %v375
        %v384 = vmul.f32 %v353, %v375
        %v385 = vmul.f32 %v356, %v375
        %v386 = vmul.f32 %v359, %v375
        %v387 = vmul.f32 %v362, %v375
        %v388 = vmul.f32 %v365, %v375
        %v389 = vmul.f32 %v368, %v375
        %v390 = vmul.f32 %v371, %v375
        %v391 = vmul.f32 %v374, %v375
        %v392 = vsub.f32 %v310, %v376
        %v393 = vsub.f32 %v311, %v377
        %v394 = vsub.f32 %v312, %v378
        %v395 = vsub.f32 %v313, %v379
        %v396 = vsub.f32 %v314, %v380
        %v397 = vsub.f32 %v315, %v381
        %v398 = vsub.f32 %v316, %v382
        %v399 = vsub.f32 %v317, %v383
        %v400 = vsub.f32 %v318, %v384
        %v401 = vsub.f32 %v319, %v385
        %v402 = vsub.f32 %v320, %v386
        %v403 = vsub.f32 %v321, %v387
        %v404 = vsub.f32 %v322, %v388
        %v405 = vsub.f32 %v323, %v389
        %v406 = vsub.f32 %v324, %v390
        %v407 = vsub.f32 %v325, %v391
        %v408 = vmul.f32 %v392, %v392
        %v409 = vmul.f32 %v393, %v393
        %v410 = vmul.f32 %v394, %v394
        %v411 = vmul.f32 %v395, %v395
        %v412 = vmul.f32 %v396, %v396
        %v413 = vmul.f32 %v397, %v397
        %v414 = vmul.f32 %v398, %v398
        %v415 = vmul.f32 %v399, %v399
        %v416 = vmul.f32 %v400, %v400
        %v417 = vmul.f32 %v401, %v401
        %v418 = vmul.f32 %v402, %v402
        %v419 = vmul.f32 %v403, %v403
        %v420 = vmul.f32 %v404, %v404
        %v421 = vmul.f32 %v405, %v405
        %v422 = vmul.f32 %v406, %v406
        %v423 = vmul.f32 %v407, %v407
        %v424 = vsel %vm326, %v408, 0.0
        %425 = vadd.xlane.f32.xlu0 %v424
        %v426 = vpop.xlane.xlu0 %425
        %v427 = vsel %vm326, %v409, 0.0
        %428 = vadd.xlane.f32.xlu0 %v427
        %v429 = vpop.xlane.xlu0 %428
        %v430 = vsel %vm326, %v410, 0.0
        %431 = vadd.xlane.f32.xlu0 %v430
        %v432 = vpop.xlane.xlu0 %431
        %v433 = vsel %vm326, %v411, 0.0
        %434 = vadd.xlane.f32.xlu0 %v433
        %v435 = vpop.xlane.xlu0 %434
        %v436 = vsel %vm326, %v412, 0.0
        %437 = vadd.xlane.f32.xlu0 %v436
        %v438 = vpop.xlane.xlu0 %437
        %v439 = vsel %vm326, %v413, 0.0
        %440 = vadd.xlane.f32.xlu0 %v439
        %v441 = vpop.xlane.xlu0 %440
        %v442 = vsel %vm326, %v414, 0.0
        %443 = vadd.xlane.f32.xlu0 %v442
        %v444 = vpop.xlane.xlu0 %443
        %v445 = vsel %vm326, %v415, 0.0
        %446 = vadd.xlane.f32.xlu0 %v445
        %v447 = vpop.xlane.xlu0 %446
        %v448 = vsel %vm326, %v416, 0.0
        %449 = vadd.xlane.f32.xlu0 %v448
        %v450 = vpop.xlane.xlu0 %449
        %v451 = vsel %vm326, %v417, 0.0
        %452 = vadd.xlane.f32.xlu0 %v451
        %v453 = vpop.xlane.xlu0 %452
        %v454 = vsel %vm326, %v418, 0.0
        %455 = vadd.xlane.f32.xlu0 %v454
        %v456 = vpop.xlane.xlu0 %455
        %v457 = vsel %vm326, %v419, 0.0
        %458 = vadd.xlane.f32.xlu0 %v457
        %v459 = vpop.xlane.xlu0 %458
        %v460 = vsel %vm326, %v420, 0.0
        %461 = vadd.xlane.f32.xlu0 %v460
        %v462 = vpop.xlane.xlu0 %461
        %v463 = vsel %vm326, %v421, 0.0
        %464 = vadd.xlane.f32.xlu0 %v463
        %v465 = vpop.xlane.xlu0 %464
        %v466 = vsel %vm326, %v422, 0.0
        %467 = vadd.xlane.f32.xlu0 %v466
        %v468 = vpop.xlane.xlu0 %467
        %v469 = vsel %vm326, %v423, 0.0
        %470 = vadd.xlane.f32.xlu0 %v469
        %v471 = vpop.xlane.xlu0 %470
        %v472 = vmul.f32 %v426, %v375
        %v473 = vmul.f32 %v429, %v375
        %v474 = vmul.f32 %v432, %v375
        %v475 = vmul.f32 %v435, %v375
        %v476 = vmul.f32 %v438, %v375
        %v477 = vmul.f32 %v441, %v375
        %v478 = vmul.f32 %v444, %v375
        %v479 = vmul.f32 %v447, %v375
        %v480 = vmul.f32 %v450, %v375
        %v481 = vmul.f32 %v453, %v375
        %v482 = vmul.f32 %v456, %v375
        %v483 = vmul.f32 %v459, %v375
        %v484 = vmul.f32 %v462, %v375
        %v485 = vmul.f32 %v465, %v375
        %v486 = vmul.f32 %v468, %v375
        %v487 = vmul.f32 %v471, %v375
        %v488 = vadd.f32 %v472, 1e-06
        %v489 = vadd.f32 %v473, 1e-06
        %v490 = vadd.f32 %v474, 1e-06
        %v491 = vadd.f32 %v475, 1e-06
        %v492 = vadd.f32 %v476, 1e-06
        %v493 = vadd.f32 %v477, 1e-06
        %v494 = vadd.f32 %v478, 1e-06
        %v495 = vadd.f32 %v479, 1e-06
        %v496 = vadd.f32 %v480, 1e-06
        %v497 = vadd.f32 %v481, 1e-06
        %v498 = vadd.f32 %v482, 1e-06
        %v499 = vadd.f32 %v483, 1e-06
        %v500 = vadd.f32 %v484, 1e-06
        %v501 = vadd.f32 %v485, 1e-06
        %v502 = vadd.f32 %v486, 1e-06
        %v503 = vadd.f32 %v487, 1e-06
        %v504 = vrsqrt.pop %v488
        %v505 = vrsqrt.pop %v489
        %v506 = vrsqrt.pop %v490
        %v507 = vrsqrt.pop %v491
        %v508 = vrsqrt.pop %v492
        %v509 = vrsqrt.pop %v493
        %v510 = vrsqrt.pop %v494
        %v511 = vrsqrt.pop %v495
        %v512 = vrsqrt.pop %v496
        %v513 = vrsqrt.pop %v497
        %v514 = vrsqrt.pop %v498
        %v515 = vrsqrt.pop %v499
        %v516 = vrsqrt.pop %v500
        %v517 = vrsqrt.pop %v501
        %v518 = vrsqrt.pop %v502
        %v519 = vrsqrt.pop %v503
        %v520 = vmul.f32 %v392, %v504
        %v521 = vmul.f32 %v393, %v505
        %v522 = vmul.f32 %v394, %v506
        %v523 = vmul.f32 %v395, %v507
        %v524 = vmul.f32 %v396, %v508
        %v525 = vmul.f32 %v397, %v509
        %v526 = vmul.f32 %v398, %v510
        %v527 = vmul.f32 %v399, %v511
        %v528 = vmul.f32 %v400, %v512
        %v529 = vmul.f32 %v401, %v513
        %v530 = vmul.f32 %v402, %v514
        %v531 = vmul.f32 %v403, %v515
        %v532 = vmul.f32 %v404, %v516
        %v533 = vmul.f32 %v405, %v517
        %v534 = vmul.f32 %v406, %v518
        %v535 = vmul.f32 %v407, %v519
        %v536 = vmul.f32 %v520, %v301
        %v537 = vmul.f32 %v521, %v301
        %v538 = vmul.f32 %v522, %v301
        %v539 = vmul.f32 %v523, %v301
        %v540 = vmul.f32 %v524, %v301
        %v541 = vmul.f32 %v525, %v301
        %v542 = vmul.f32 %v526, %v301
        %v543 = vmul.f32 %v527, %v301
        %v544 = vmul.f32 %v528, %v301
        %v545 = vmul.f32 %v529, %v301
        %v546 = vmul.f32 %v530, %v301
        %v547 = vmul.f32 %v531, %v301
        %v548 = vmul.f32 %v532, %v301
        %v549 = vmul.f32 %v533, %v301
        %v550 = vmul.f32 %v534, %v301
        %v551 = vmul.f32 %v535, %v301
        %v552 = vadd.f32 %v536, %v302
        %v553 = vadd.f32 %v537, %v302
        %v554 = vadd.f32 %v538, %v302
        %v555 = vadd.f32 %v539, %v302
        %v556 = vadd.f32 %v540, %v302
        %v557 = vadd.f32 %v541, %v302
        %v558 = vadd.f32 %v542, %v302
        %v559 = vadd.f32 %v543, %v302
        %v560 = vadd.f32 %v544, %v302
        %v561 = vadd.f32 %v545, %v302
        %v562 = vadd.f32 %v546, %v302
        %v563 = vadd.f32 %v547, %v302
        %v564 = vadd.f32 %v548, %v302
        %v565 = vadd.f32 %v549, %v302
        %v566 = vadd.f32 %v550, %v302
        %v567 = vadd.f32 %v551, %v302
        %v568 = vpack.c.bf16 %v553, %v552
        %v569 = vpack.c.bf16 %v555, %v554
        %v570 = vpack.c.bf16 %v557, %v556
        %v571 = vpack.c.bf16 %v559, %v558
        %v572 = vpack.c.bf16 %v561, %v560
        %v573 = vpack.c.bf16 %v563, %v562
        %v574 = vpack.c.bf16 %v565, %v564
        %v575 = vpack.c.bf16 %v567, %v566
        %v576 = vld [vmem:[%s1] sm:$0xff]
        %v577 = vld [vmem:[%s1 + $0x8] sm:$0xff]
        %v578 = vld [vmem:[%s1 + $0x10] sm:$0xff]
        %v579 = vld [vmem:[%s1 + $0x18] sm:$0xff]
        %v580 = vld [vmem:[%s1 + $0x20] sm:$0xff]
        %v581 = vld [vmem:[%s1 + $0x28] sm:$0xff]
        %v582 = vld [vmem:[%s1 + $0x30] sm:$0xff]
        %v583 = vld [vmem:[%s1 + $0x38] sm:$0xff]
        %v585 = vlaneseq
        %v586 = vshrl.u32 %v585, 7
        %v587 = vsub.s32 0, %v586
        %v588 = vrot.slane %v304, %v587
        %v589 = vlaneseq
        %v590 = vshrl.u32 %v589, 7
        %v591 = vsub.s32 1, %v590
        %v592 = vrot.slane %v304, %v591
        %v603 = vunpack.c.l.b16 %v576
        %v604 = vunpack.c.h.b16 %v576
        %v605 = vunpack.c.l.b16 %v577
        %v606 = vunpack.c.h.b16 %v577
        %v607 = vunpack.c.l.b16 %v578
        %v608 = vunpack.c.h.b16 %v578
        %v609 = vunpack.c.l.b16 %v579
        %v610 = vunpack.c.h.b16 %v579
        %v611 = vunpack.c.l.b16 %v580
        %v612 = vunpack.c.h.b16 %v580
        %v613 = vunpack.c.l.b16 %v581
        %v614 = vunpack.c.h.b16 %v581
        %v615 = vunpack.c.l.b16 %v582
        %v616 = vunpack.c.h.b16 %v582
        %v617 = vunpack.c.l.b16 %v583
        %v618 = vunpack.c.h.b16 %v583
        %v619 = vpack.c.b16 %v605, %v603
        %v620 = vpack.c.b16 %v606, %v604
        %v621 = vpack.c.b16 %v609, %v607
        %v622 = vpack.c.b16 %v610, %v608
        %v623 = vpack.c.b16 %v613, %v611
        %v624 = vpack.c.b16 %v614, %v612
        %v625 = vpack.c.b16 %v617, %v615
        %v626 = vpack.c.b16 %v618, %v616
        %v636 = vsel %vm326, %v568, 0
        %v639 = vsel %vm326, %v569, 0
        %v642 = vsel %vm326, %v570, 0
        %v645 = vsel %vm326, %v571, 0
        %v648 = vsel %vm326, %v572, 0
        %v651 = vsel %vm326, %v573, 0
        %v654 = vsel %vm326, %v574, 0
        %v657 = vsel %vm326, %v575, 0
        %659 = vmatprep.subr.bf16.mxu0 0
        %660 = vmatpush1.bf16.msra.mxu0 0
        %661 = vmatprep.subr.bf16.mxu0 0
        %662 = vmatpush1.bf16.msra.mxu0 0
        %663 = vmatprep.subr.bf16.mxu0 0
        %664 = vmatpush1.bf16.msra.mxu0 0
        %665 = vmatprep.subr.bf16.mxu0 0
        %666 = vmatpush1.bf16.msra.mxu0 0
        %667 = vmatprep.subr.bf16.mxu0 %v626
        %668 = vmatpush1.bf16.msra.mxu0 %v625
        %669 = vmatprep.subr.bf16.mxu0 %v624
        %670 = vmatpush1.bf16.msra.mxu0 %v623
        %671 = vmatprep.subr.bf16.mxu0 %v622
        %672 = vmatpush1.bf16.msra.mxu0 %v621
        %673 = vmatprep.subr.bf16.mxu0 %v620
        %674 = vmatpush1.bf16.msra.mxu0 %v619
        %675 = vmatprep.subr.bf16.mxu0 0
        %676 = vmatpush2.bf16.msra.mxu0 0
        %677 = vmatprep.subr.bf16.mxu0 0
        %678 = vmatpush2.bf16.msra.mxu0 0
        %679 = vmatprep.subr.bf16.mxu0 0
        %680 = vmatpush2.bf16.msra.mxu0 0
        %681 = vmatprep.subr.bf16.mxu0 0
        %682 = vmatpush2.bf16.msra.mxu0 0
        %683 = vmatprep.subr.bf16.mxu0 0
        %684 = vmatpush2.bf16.msra.mxu0 0
        %685 = vmatprep.subr.bf16.mxu0 0
        %686 = vmatpush2.bf16.msra.mxu0 0
        %687 = vmatprep.subr.bf16.mxu0 0
        %688 = vmatpush2.bf16.msra.mxu0 0
        %689 = vmatprep.subr.bf16.mxu0 0
        %690 = vmatpush2.bf16.msra.mxu0 0
        %691 = vmatprep.mubr.bf16.mxu0 0
        %692 = vmatmul.mubr.bf16.gmra.mxu0 %v636
        %v693 = vpop.f32.mrf.mxu0
        %v694 = vadd.f32 %v588, %v693
        %v695 = vpop.f32.mrf.mxu0
        %v696 = vadd.f32 %v592, %v695
        %v697 = vpop.f32.mrf.mxu0
        %v698 = vadd.f32 %v588, %v697
        %v699 = vpop.f32.mrf.mxu0
        %v700 = vadd.f32 %v592, %v699
        %701 = vmatprep.mubr.bf16.mxu0 0
        %702 = vmatmul.mubr.bf16.gmra.mxu0 %v639
        %v703 = vpop.f32.mrf.mxu0
        %v704 = vadd.f32 %v588, %v703
        %v705 = vpop.f32.mrf.mxu0
        %v706 = vadd.f32 %v592, %v705
        %v707 = vpop.f32.mrf.mxu0
        %v708 = vadd.f32 %v588, %v707
        %v709 = vpop.f32.mrf.mxu0
        %v710 = vadd.f32 %v592, %v709
        %711 = vmatprep.mubr.bf16.mxu0 0
        %712 = vmatmul.mubr.bf16.gmra.mxu0 %v642
        %v713 = vpop.f32.mrf.mxu0
        %v714 = vadd.f32 %v588, %v713
        %v715 = vpop.f32.mrf.mxu0
        %v716 = vadd.f32 %v592, %v715
        %v717 = vpop.f32.mrf.mxu0
        %v718 = vadd.f32 %v588, %v717
        %v719 = vpop.f32.mrf.mxu0
        %v720 = vadd.f32 %v592, %v719
        %721 = vmatprep.mubr.bf16.mxu0 0
        %722 = vmatmul.mubr.bf16.gmra.mxu0 %v645
        %v723 = vpop.f32.mrf.mxu0
        %v724 = vadd.f32 %v588, %v723
        %v725 = vpop.f32.mrf.mxu0
        %v726 = vadd.f32 %v592, %v725
        %v727 = vpop.f32.mrf.mxu0
        %v728 = vadd.f32 %v588, %v727
        %v729 = vpop.f32.mrf.mxu0
        %v730 = vadd.f32 %v592, %v729
        %731 = vmatprep.mubr.bf16.mxu0 0
        %732 = vmatmul.mubr.bf16.gmra.mxu0 %v648
        %v733 = vpop.f32.mrf.mxu0
        %v734 = vadd.f32 %v588, %v733
        %v735 = vpop.f32.mrf.mxu0
        %v736 = vadd.f32 %v592, %v735
        %v737 = vpop.f32.mrf.mxu0
        %v738 = vadd.f32 %v588, %v737
        %v739 = vpop.f32.mrf.mxu0
        %v740 = vadd.f32 %v592, %v739
        %741 = vmatprep.mubr.bf16.mxu0 0
        %742 = vmatmul.mubr.bf16.gmra.mxu0 %v651
        %v743 = vpop.f32.mrf.mxu0
        %v744 = vadd.f32 %v588, %v743
        %v745 = vpop.f32.mrf.mxu0
        %v746 = vadd.f32 %v592, %v745
        %v747 = vpop.f32.mrf.mxu0
        %v748 = vadd.f32 %v588, %v747
        %v749 = vpop.f32.mrf.mxu0
        %v750 = vadd.f32 %v592, %v749
        %751 = vmatprep.mubr.bf16.mxu0 0
        %752 = vmatmul.mubr.bf16.gmra.mxu0 %v654
        %v753 = vpop.f32.mrf.mxu0
        %v754 = vadd.f32 %v588, %v753
        %v755 = vpop.f32.mrf.mxu0
        %v756 = vadd.f32 %v592, %v755
        %v757 = vpop.f32.mrf.mxu0
        %v758 = vadd.f32 %v588, %v757
        %v759 = vpop.f32.mrf.mxu0
        %v760 = vadd.f32 %v592, %v759
        %761 = vmatprep.mubr.bf16.mxu0 0
        %762 = vmatmul.mubr.bf16.gmra.mxu0 %v657
        %v763 = vpop.f32.mrf.mxu0
        %v764 = vadd.f32 %v588, %v763
        %v765 = vpop.f32.mrf.mxu0
        %v766 = vadd.f32 %v592, %v765
        %v767 = vpop.f32.mrf.mxu0
        %v768 = vadd.f32 %v588, %v767
        %v769 = vpop.f32.mrf.mxu0
        %v770 = vadd.f32 %v592, %v769
        %771 = vdwg.mxu0
        %v772 = vpack.c.bf16 %v698, %v694
        %v773 = vpack.c.bf16 %v700, %v696
        %v774 = vpack.c.bf16 %v708, %v704
        %v775 = vpack.c.bf16 %v710, %v706
        %v776 = vpack.c.bf16 %v718, %v714
        %v777 = vpack.c.bf16 %v720, %v716
        %v778 = vpack.c.bf16 %v728, %v724
        %v779 = vpack.c.bf16 %v730, %v726
        %v780 = vpack.c.bf16 %v738, %v734
        %v781 = vpack.c.bf16 %v740, %v736
        %v782 = vpack.c.bf16 %v748, %v744
        %v783 = vpack.c.bf16 %v750, %v746
        %v784 = vpack.c.bf16 %v758, %v754
        %v785 = vpack.c.bf16 %v760, %v756
        %v786 = vpack.c.bf16 %v768, %v764
        %v787 = vpack.c.bf16 %v770, %v766
        %790 = vrot.lane.b32.xlu0 %v772, 64
        %v791 = vpop.permute.xlu0 %790
        %792 = vrot.lane.b32.xlu0 %v774, 64
        %v793 = vpop.permute.xlu0 %792
        %vm794 = vcmask 261120
        %v796 = vsel %vm794, %v772, 0
        %v799 = vsel %vm794, %v774, 0
        %v802 = vsel %vm794, %v791, 0
        %v805 = vsel %vm794, %v793, 0
        %807 = vmatprep.subr.bf16.mxu0 0
        %808 = vmatpush1.bf16.xpose.msra.mxu0 0
        %809 = vmatprep.subr.bf16.mxu0 0
        %810 = vmatpush1.bf16.xpose.msra.mxu0 0
        %811 = vmatprep.subr.bf16.mxu0 0
        %812 = vmatpush1.bf16.xpose.msra.mxu0 0
        %813 = vmatprep.subr.bf16.mxu0 0
        %814 = vmatpush1.bf16.xpose.msra.mxu0 0
        %815 = vmatprep.subr.bf16.mxu0 0
        %816 = vmatpush1.bf16.xpose.msra.mxu0 0
        %817 = vmatprep.subr.bf16.mxu0 0
        %818 = vmatpush1.bf16.xpose.msra.mxu0 0
        %819 = vmatprep.subr.bf16.mxu0 0
        %820 = vmatpush1.bf16.xpose.msra.mxu0 %v805
        %821 = vmatprep.subr.bf16.mxu0 0
        %822 = vmatpush1.bf16.xpose.msra.mxu0 %v802
        %823 = vmatprep.subr.bf16.mxu0 0
        %824 = vmatpush2.bf16.xpose.msra.mxu0 0
        %825 = vmatprep.subr.bf16.mxu0 0
        %826 = vmatpush2.bf16.xpose.msra.mxu0 0
        %827 = vmatprep.subr.bf16.mxu0 0
        %828 = vmatpush2.bf16.xpose.msra.mxu0 0
        %829 = vmatprep.subr.bf16.mxu0 0
        %830 = vmatpush2.bf16.xpose.msra.mxu0 0
        %831 = vmatprep.subr.bf16.mxu0 0
        %832 = vmatpush2.bf16.xpose.msra.mxu0 0
        %833 = vmatprep.subr.bf16.mxu0 0
        %834 = vmatpush2.bf16.xpose.msra.mxu0 0
        %835 = vmatprep.subr.bf16.mxu0 0
        %836 = vmatpush2.bf16.xpose.msra.mxu0 0
        %837 = vmatprep.subr.bf16.mxu0 0
        %838 = vmatpush2.bf16.xpose.msra.mxu0 0
        %839 = vmatprep.mubr.bf16.mxu0 0
        %840 = vmatmul.mubr.bf16.gmra.mxu0 %v796
        %v841 = vpop.f32.mrf.mxu0
        %v842 = vadd.f32 0.0, %v841
        %v843 = vpop.f32.mrf.mxu0
        %v844 = vpop.f32.mrf.mxu0
        %v845 = vadd.f32 0.0, %v844
        %v846 = vpop.f32.mrf.mxu0
        %847 = vmatprep.mubr.bf16.mxu0 0
        %848 = vmatmul.mubr.bf16.gmra.mxu0 %v799
        %v849 = vpop.f32.mrf.mxu0
        %v850 = vadd.f32 0.0, %v849
        %v851 = vpop.f32.mrf.mxu0
        %v852 = vpop.f32.mrf.mxu0
        %v853 = vadd.f32 0.0, %v852
        %v854 = vpop.f32.mrf.mxu0
        %855 = vdwg.mxu0
        %858 = vrot.lane.b32.xlu0 %v776, 64
        %v859 = vpop.permute.xlu0 %858
        %860 = vrot.lane.b32.xlu0 %v778, 64
        %v861 = vpop.permute.xlu0 %860
        %v863 = vsel %vm794, %v776, 0
        %v866 = vsel %vm794, %v778, 0
        %v869 = vsel %vm794, %v859, 0
        %v872 = vsel %vm794, %v861, 0
        %874 = vmatprep.subr.bf16.mxu0 0
        %875 = vmatpush1.bf16.xpose.msra.mxu0 0
        %876 = vmatprep.subr.bf16.mxu0 0
        %877 = vmatpush1.bf16.xpose.msra.mxu0 0
        %878 = vmatprep.subr.bf16.mxu0 0
        %879 = vmatpush1.bf16.xpose.msra.mxu0 0
        %880 = vmatprep.subr.bf16.mxu0 0
        %881 = vmatpush1.bf16.xpose.msra.mxu0 0
        %882 = vmatprep.subr.bf16.mxu0 0
        %883 = vmatpush1.bf16.xpose.msra.mxu0 0
        %884 = vmatprep.subr.bf16.mxu0 0
        %885 = vmatpush1.bf16.xpose.msra.mxu0 0
        %886 = vmatprep.subr.bf16.mxu0 0
        %887 = vmatpush1.bf16.xpose.msra.mxu0 %v872
        %888 = vmatprep.subr.bf16.mxu0 0
        %889 = vmatpush1.bf16.xpose.msra.mxu0 %v869
        %890 = vmatprep.subr.bf16.mxu0 0
        %891 = vmatpush2.bf16.xpose.msra.mxu0 0
        %892 = vmatprep.subr.bf16.mxu0 0
        %893 = vmatpush2.bf16.xpose.msra.mxu0 0
        %894 = vmatprep.subr.bf16.mxu0 0
        %895 = vmatpush2.bf16.xpose.msra.mxu0 0
        %896 = vmatprep.subr.bf16.mxu0 0
        %897 = vmatpush2.bf16.xpose.msra.mxu0 0
        %898 = vmatprep.subr.bf16.mxu0 0
        %899 = vmatpush2.bf16.xpose.msra.mxu0 0
        %900 = vmatprep.subr.bf16.mxu0 0
        %901 = vmatpush2.bf16.xpose.msra.mxu0 0
        %902 = vmatprep.subr.bf16.mxu0 0
        %903 = vmatpush2.bf16.xpose.msra.mxu0 0
        %904 = vmatprep.subr.bf16.mxu0 0
        %905 = vmatpush2.bf16.xpose.msra.mxu0 0
        %906 = vmatprep.mubr.bf16.mxu0 0
        %907 = vmatmul.mubr.bf16.gmra.mxu0 %v863
        %v908 = vpop.f32.mrf.mxu0
        %v909 = vadd.f32 0.0, %v908
        %v910 = vpop.f32.mrf.mxu0
        %v911 = vpop.f32.mrf.mxu0
        %v912 = vadd.f32 0.0, %v911
        %v913 = vpop.f32.mrf.mxu0
        %914 = vmatprep.mubr.bf16.mxu0 0
        %915 = vmatmul.mubr.bf16.gmra.mxu0 %v866
        %v916 = vpop.f32.mrf.mxu0
        %v917 = vadd.f32 0.0, %v916
        %v918 = vpop.f32.mrf.mxu0
        %v919 = vpop.f32.mrf.mxu0
        %v920 = vadd.f32 0.0, %v919
        %v921 = vpop.f32.mrf.mxu0
        %922 = vdwg.mxu0
        %925 = vrot.lane.b32.xlu0 %v780, 64
        %v926 = vpop.permute.xlu0 %925
        %927 = vrot.lane.b32.xlu0 %v782, 64
        %v928 = vpop.permute.xlu0 %927
        %v930 = vsel %vm794, %v780, 0
        %v933 = vsel %vm794, %v782, 0
        %v936 = vsel %vm794, %v926, 0
        %v939 = vsel %vm794, %v928, 0
        %941 = vmatprep.subr.bf16.mxu0 0
        %942 = vmatpush1.bf16.xpose.msra.mxu0 0
        %943 = vmatprep.subr.bf16.mxu0 0
        %944 = vmatpush1.bf16.xpose.msra.mxu0 0
        %945 = vmatprep.subr.bf16.mxu0 0
        %946 = vmatpush1.bf16.xpose.msra.mxu0 0
        %947 = vmatprep.subr.bf16.mxu0 0
        %948 = vmatpush1.bf16.xpose.msra.mxu0 0
        %949 = vmatprep.subr.bf16.mxu0 0
        %950 = vmatpush1.bf16.xpose.msra.mxu0 0
        %951 = vmatprep.subr.bf16.mxu0 0
        %952 = vmatpush1.bf16.xpose.msra.mxu0 0
        %953 = vmatprep.subr.bf16.mxu0 0
        %954 = vmatpush1.bf16.xpose.msra.mxu0 %v939
        %955 = vmatprep.subr.bf16.mxu0 0
        %956 = vmatpush1.bf16.xpose.msra.mxu0 %v936
        %957 = vmatprep.subr.bf16.mxu0 0
        %958 = vmatpush2.bf16.xpose.msra.mxu0 0
        %959 = vmatprep.subr.bf16.mxu0 0
        %960 = vmatpush2.bf16.xpose.msra.mxu0 0
        %961 = vmatprep.subr.bf16.mxu0 0
        %962 = vmatpush2.bf16.xpose.msra.mxu0 0
        %963 = vmatprep.subr.bf16.mxu0 0
        %964 = vmatpush2.bf16.xpose.msra.mxu0 0
        %965 = vmatprep.subr.bf16.mxu0 0
        %966 = vmatpush2.bf16.xpose.msra.mxu0 0
        %967 = vmatprep.subr.bf16.mxu0 0
        %968 = vmatpush2.bf16.xpose.msra.mxu0 0
        %969 = vmatprep.subr.bf16.mxu0 0
        %970 = vmatpush2.bf16.xpose.msra.mxu0 0
        %971 = vmatprep.subr.bf16.mxu0 0
        %972 = vmatpush2.bf16.xpose.msra.mxu0 0
        %973 = vmatprep.mubr.bf16.mxu0 0
        %974 = vmatmul.mubr.bf16.gmra.mxu0 %v930
        %v975 = vpop.f32.mrf.mxu0
        %v976 = vadd.f32 0.0, %v975
        %v977 = vpop.f32.mrf.mxu0
        %v978 = vpop.f32.mrf.mxu0
        %v979 = vadd.f32 0.0, %v978
        %v980 = vpop.f32.mrf.mxu0
        %981 = vmatprep.mubr.bf16.mxu0 0
        %982 = vmatmul.mubr.bf16.gmra.mxu0 %v933
        %v983 = vpop.f32.mrf.mxu0
        %v984 = vadd.f32 0.0, %v983
        %v985 = vpop.f32.mrf.mxu0
        %v986 = vpop.f32.mrf.mxu0
        %v987 = vadd.f32 0.0, %v986
        %v988 = vpop.f32.mrf.mxu0
        %989 = vdwg.mxu0
        %992 = vrot.lane.b32.xlu0 %v784, 64
        %v993 = vpop.permute.xlu0 %992
        %994 = vrot.lane.b32.xlu0 %v786, 64
        %v995 = vpop.permute.xlu0 %994
        %v997 = vsel %vm794, %v784, 0
        %v1000 = vsel %vm794, %v786, 0
        %v1003 = vsel %vm794, %v993, 0
        %v1006 = vsel %vm794, %v995, 0
        %1008 = vmatprep.subr.bf16.mxu0 0
        %1009 = vmatpush1.bf16.xpose.msra.mxu0 0
        %1010 = vmatprep.subr.bf16.mxu0 0
        %1011 = vmatpush1.bf16.xpose.msra.mxu0 0
        %1012 = vmatprep.subr.bf16.mxu0 0
        %1013 = vmatpush1.bf16.xpose.msra.mxu0 0
        %1014 = vmatprep.subr.bf16.mxu0 0
        %1015 = vmatpush1.bf16.xpose.msra.mxu0 0
        %1016 = vmatprep.subr.bf16.mxu0 0
        %1017 = vmatpush1.bf16.xpose.msra.mxu0 0
        %1018 = vmatprep.subr.bf16.mxu0 0
        %1019 = vmatpush1.bf16.xpose.msra.mxu0 0
        %1020 = vmatprep.subr.bf16.mxu0 0
        %1021 = vmatpush1.bf16.xpose.msra.mxu0 %v1006
        %1022 = vmatprep.subr.bf16.mxu0 0
        %1023 = vmatpush1.bf16.xpose.msra.mxu0 %v1003
        %1024 = vmatprep.subr.bf16.mxu0 0
        %1025 = vmatpush2.bf16.xpose.msra.mxu0 0
        %1026 = vmatprep.subr.bf16.mxu0 0
        %1027 = vmatpush2.bf16.xpose.msra.mxu0 0
        %1028 = vmatprep.subr.bf16.mxu0 0
        %1029 = vmatpush2.bf16.xpose.msra.mxu0 0
        %1030 = vmatprep.subr.bf16.mxu0 0
        %1031 = vmatpush2.bf16.xpose.msra.mxu0 0
        %1032 = vmatprep.subr.bf16.mxu0 0
        %1033 = vmatpush2.bf16.xpose.msra.mxu0 0
        %1034 = vmatprep.subr.bf16.mxu0 0
        %1035 = vmatpush2.bf16.xpose.msra.mxu0 0
        %1036 = vmatprep.subr.bf16.mxu0 0
        %1037 = vmatpush2.bf16.xpose.msra.mxu0 0
        %1038 = vmatprep.subr.bf16.mxu0 0
        %1039 = vmatpush2.bf16.xpose.msra.mxu0 0
        %1040 = vmatprep.mubr.bf16.mxu0 0
        %1041 = vmatmul.mubr.bf16.gmra.mxu0 %v997
        %v1042 = vpop.f32.mrf.mxu0
        %v1043 = vadd.f32 0.0, %v1042
        %v1044 = vpop.f32.mrf.mxu0
        %v1045 = vpop.f32.mrf.mxu0
        %v1046 = vadd.f32 0.0, %v1045
        %v1047 = vpop.f32.mrf.mxu0
        %1048 = vmatprep.mubr.bf16.mxu0 0
        %1049 = vmatmul.mubr.bf16.gmra.mxu0 %v1000
        %v1050 = vpop.f32.mrf.mxu0
        %v1051 = vadd.f32 0.0, %v1050
        %v1052 = vpop.f32.mrf.mxu0
        %v1053 = vpop.f32.mrf.mxu0
        %v1054 = vadd.f32 0.0, %v1053
        %v1055 = vpop.f32.mrf.mxu0
        %1056 = vdwg.mxu0
        %v1057 = vmul.f32 %v842, 0.17677669
        %v1058 = vmul.f32 %v845, 0.17677669
        %v1059 = vmul.f32 %v850, 0.17677669
        %v1060 = vmul.f32 %v853, 0.17677669
        %v1061 = vmul.f32 %v909, 0.17677669
        %v1062 = vmul.f32 %v912, 0.17677669
        %v1063 = vmul.f32 %v917, 0.17677669
        %v1064 = vmul.f32 %v920, 0.17677669
        %v1065 = vmul.f32 %v976, 0.17677669
        %v1066 = vmul.f32 %v979, 0.17677669
        %v1067 = vmul.f32 %v984, 0.17677669
        %v1068 = vmul.f32 %v987, 0.17677669
        %v1069 = vmul.f32 %v1043, 0.17677669
        %v1070 = vmul.f32 %v1046, 0.17677669
        %v1071 = vmul.f32 %v1051, 0.17677669
        %v1072 = vmul.f32 %v1054, 0.17677669
        %v1073 = vsel %vm794, %v1057, -inf
        %1074 = vmax.xlane.f32.xlu0 %v1073
        %v1075 = vpop.xlane.xlu0 %1074
        %v1076 = vsel %vm794, %v1058, -inf
        %1077 = vmax.xlane.f32.xlu0 %v1076
        %v1078 = vpop.xlane.xlu0 %1077
        %v1079 = vsel %vm794, %v1059, -inf
        %1080 = vmax.xlane.f32.xlu0 %v1079
        %v1081 = vpop.xlane.xlu0 %1080
        %v1082 = vsel %vm794, %v1060, -inf
        %1083 = vmax.xlane.f32.xlu0 %v1082
        %v1084 = vpop.xlane.xlu0 %1083
        %v1085 = vsel %vm794, %v1061, -inf
        %1086 = vmax.xlane.f32.xlu0 %v1085
        %v1087 = vpop.xlane.xlu0 %1086
        %v1088 = vsel %vm794, %v1062, -inf
        %1089 = vmax.xlane.f32.xlu0 %v1088
        %v1090 = vpop.xlane.xlu0 %1089
        %v1091 = vsel %vm794, %v1063, -inf
        %1092 = vmax.xlane.f32.xlu0 %v1091
        %v1093 = vpop.xlane.xlu0 %1092
        %v1094 = vsel %vm794, %v1064, -inf
        %1095 = vmax.xlane.f32.xlu0 %v1094
        %v1096 = vpop.xlane.xlu0 %1095
        %v1097 = vsel %vm794, %v1065, -inf
        %1098 = vmax.xlane.f32.xlu0 %v1097
        %v1099 = vpop.xlane.xlu0 %1098
        %v1100 = vsel %vm794, %v1066, -inf
        %1101 = vmax.xlane.f32.xlu0 %v1100
        %v1102 = vpop.xlane.xlu0 %1101
        %v1103 = vsel %vm794, %v1067, -inf
        %1104 = vmax.xlane.f32.xlu0 %v1103
        %v1105 = vpop.xlane.xlu0 %1104
        %v1106 = vsel %vm794, %v1068, -inf
        %1107 = vmax.xlane.f32.xlu0 %v1106
        %v1108 = vpop.xlane.xlu0 %1107
        %v1109 = vsel %vm794, %v1069, -inf
        %1110 = vmax.xlane.f32.xlu0 %v1109
        %v1111 = vpop.xlane.xlu0 %1110
        %v1112 = vsel %vm794, %v1070, -inf
        %1113 = vmax.xlane.f32.xlu0 %v1112
        %v1114 = vpop.xlane.xlu0 %1113
        %v1115 = vsel %vm794, %v1071, -inf
        %1116 = vmax.xlane.f32.xlu0 %v1115
        %v1117 = vpop.xlane.xlu0 %1116
        %v1118 = vsel %vm794, %v1072, -inf
        %1119 = vmax.xlane.f32.xlu0 %v1118
        %v1120 = vpop.xlane.xlu0 %1119
        %v1121 = vsub.f32 %v1057, %v1075
        %v1122 = vsub.f32 %v1058, %v1078
        %v1123 = vsub.f32 %v1059, %v1081
        %v1124 = vsub.f32 %v1060, %v1084
        %v1125 = vsub.f32 %v1061, %v1087
        %v1126 = vsub.f32 %v1062, %v1090
        %v1127 = vsub.f32 %v1063, %v1093
        %v1128 = vsub.f32 %v1064, %v1096
        %v1129 = vsub.f32 %v1065, %v1099
        %v1130 = vsub.f32 %v1066, %v1102
        %v1131 = vsub.f32 %v1067, %v1105
        %v1132 = vsub.f32 %v1068, %v1108
        %v1133 = vsub.f32 %v1069, %v1111
        %v1134 = vsub.f32 %v1070, %v1114
        %v1135 = vsub.f32 %v1071, %v1117
        %v1136 = vsub.f32 %v1072, %v1120
        %v1137 = vmul.f32 %v1121, 1.442695
        %v1138 = vpow.pop %v1137
        %v1139 = vmul.f32 %v1122, 1.442695
        %v1140 = vpow.pop %v1139
        %v1141 = vmul.f32 %v1123, 1.442695
        %v1142 = vpow.pop %v1141
        %v1143 = vmul.f32 %v1124, 1.442695
        %v1144 = vpow.pop %v1143
        %v1145 = vmul.f32 %v1125, 1.442695
        %v1146 = vpow.pop %v1145
        %v1147 = vmul.f32 %v1126, 1.442695
        %v1148 = vpow.pop %v1147
        %v1149 = vmul.f32 %v1127, 1.442695
        %v1150 = vpow.pop %v1149
        %v1151 = vmul.f32 %v1128, 1.442695
        %v1152 = vpow.pop %v1151
        %v1153 = vmul.f32 %v1129, 1.442695
        %v1154 = vpow.pop %v1153
        %v1155 = vmul.f32 %v1130, 1.442695
        %v1156 = vpow.pop %v1155
        %v1157 = vmul.f32 %v1131, 1.442695
        %v1158 = vpow.pop %v1157
        %v1159 = vmul.f32 %v1132, 1.442695
        %v1160 = vpow.pop %v1159
        %v1161 = vmul.f32 %v1133, 1.442695
        %v1162 = vpow.pop %v1161
        %v1163 = vmul.f32 %v1134, 1.442695
        %v1164 = vpow.pop %v1163
        %v1165 = vmul.f32 %v1135, 1.442695
        %v1166 = vpow.pop %v1165
        %v1167 = vmul.f32 %v1136, 1.442695
        %v1168 = vpow.pop %v1167
        %v1169 = vsel %vm794, %v1138, 0.0
        %1170 = vadd.xlane.f32.xlu0 %v1169
        %v1171 = vpop.xlane.xlu0 %1170
        %v1172 = vsel %vm794, %v1140, 0.0
        %1173 = vadd.xlane.f32.xlu0 %v1172
        %v1174 = vpop.xlane.xlu0 %1173
        %v1175 = vsel %vm794, %v1142, 0.0
        %1176 = vadd.xlane.f32.xlu0 %v1175
        %v1177 = vpop.xlane.xlu0 %1176
        %v1178 = vsel %vm794, %v1144, 0.0
        %1179 = vadd.xlane.f32.xlu0 %v1178
        %v1180 = vpop.xlane.xlu0 %1179
        %v1181 = vsel %vm794, %v1146, 0.0
        %1182 = vadd.xlane.f32.xlu0 %v1181
        %v1183 = vpop.xlane.xlu0 %1182
        %v1184 = vsel %vm794, %v1148, 0.0
        %1185 = vadd.xlane.f32.xlu0 %v1184
        %v1186 = vpop.xlane.xlu0 %1185
        %v1187 = vsel %vm794, %v1150, 0.0
        %1188 = vadd.xlane.f32.xlu0 %v1187
        %v1189 = vpop.xlane.xlu0 %1188
        %v1190 = vsel %vm794, %v1152, 0.0
        %1191 = vadd.xlane.f32.xlu0 %v1190
        %v1192 = vpop.xlane.xlu0 %1191
        %v1193 = vsel %vm794, %v1154, 0.0
        %1194 = vadd.xlane.f32.xlu0 %v1193
        %v1195 = vpop.xlane.xlu0 %1194
        %v1196 = vsel %vm794, %v1156, 0.0
        %1197 = vadd.xlane.f32.xlu0 %v1196
        %v1198 = vpop.xlane.xlu0 %1197
        %v1199 = vsel %vm794, %v1158, 0.0
        %1200 = vadd.xlane.f32.xlu0 %v1199
        %v1201 = vpop.xlane.xlu0 %1200
        %v1202 = vsel %vm794, %v1160, 0.0
        %1203 = vadd.xlane.f32.xlu0 %v1202
        %v1204 = vpop.xlane.xlu0 %1203
        %v1205 = vsel %vm794, %v1162, 0.0
        %1206 = vadd.xlane.f32.xlu0 %v1205
        %v1207 = vpop.xlane.xlu0 %1206
        %v1208 = vsel %vm794, %v1164, 0.0
        %1209 = vadd.xlane.f32.xlu0 %v1208
        %v1210 = vpop.xlane.xlu0 %1209
        %v1211 = vsel %vm794, %v1166, 0.0
        %1212 = vadd.xlane.f32.xlu0 %v1211
        %v1213 = vpop.xlane.xlu0 %1212
        %v1214 = vsel %vm794, %v1168, 0.0
        %1215 = vadd.xlane.f32.xlu0 %v1214
        %v1216 = vpop.xlane.xlu0 %1215
        %v1217 = vpack.c.bf16 %v1140, %v1138
        %v1218 = vpack.c.bf16 %v1144, %v1142
        %v1219 = vpack.c.bf16 %v1148, %v1146
        %v1220 = vpack.c.bf16 %v1152, %v1150
        %v1221 = vpack.c.bf16 %v1156, %v1154
        %v1222 = vpack.c.bf16 %v1160, %v1158
        %v1223 = vpack.c.bf16 %v1164, %v1162
        %v1224 = vpack.c.bf16 %v1168, %v1166
        %v1226 = vsel %vm794, %v1217, 0
        %v1229 = vsel %vm794, %v1218, 0
        %1231 = vmatprep.subr.bf16.mxu0 0
        %1232 = vmatpush1.bf16.msra.mxu0 0
        %1233 = vmatprep.subr.bf16.mxu0 0
        %1234 = vmatpush1.bf16.msra.mxu0 0
        %1235 = vmatprep.subr.bf16.mxu0 0
        %1236 = vmatpush1.bf16.msra.mxu0 0
        %1237 = vmatprep.subr.bf16.mxu0 0
        %1238 = vmatpush1.bf16.msra.mxu0 0
        %1239 = vmatprep.subr.bf16.mxu0 0
        %1240 = vmatpush1.bf16.msra.mxu0 0
        %1241 = vmatprep.subr.bf16.mxu0 0
        %1242 = vmatpush1.bf16.msra.mxu0 0
        %1243 = vmatprep.subr.bf16.mxu0 0
        %1244 = vmatpush1.bf16.msra.mxu0 %v775
        %1245 = vmatprep.subr.bf16.mxu0 0
        %1246 = vmatpush1.bf16.msra.mxu0 %v773
        %1247 = vmatprep.subr.bf16.mxu0 0
        %1248 = vmatpush2.bf16.msra.mxu0 0
        %1249 = vmatprep.subr.bf16.mxu0 0
        %1250 = vmatpush2.bf16.msra.mxu0 0
        %1251 = vmatprep.subr.bf16.mxu0 0
        %1252 = vmatpush2.bf16.msra.mxu0 0
        %1253 = vmatprep.subr.bf16.mxu0 0
        %1254 = vmatpush2.bf16.msra.mxu0 0
        %1255 = vmatprep.subr.bf16.mxu0 0
        %1256 = vmatpush2.bf16.msra.mxu0 0
        %1257 = vmatprep.subr.bf16.mxu0 0
        %1258 = vmatpush2.bf16.msra.mxu0 0
        %1259 = vmatprep.subr.bf16.mxu0 0
        %1260 = vmatpush2.bf16.msra.mxu0 0
        %1261 = vmatprep.subr.bf16.mxu0 0
        %1262 = vmatpush2.bf16.msra.mxu0 0
        %1263 = vmatprep.mubr.bf16.mxu0 0
        %1264 = vmatmul.mubr.bf16.gmra.mxu0 %v1226
        %v1265 = vpop.f32.mrf.mxu0
        %v1266 = vadd.f32 0.0, %v1265
        %v1267 = vpop.f32.mrf.mxu0
        %v1268 = vpop.f32.mrf.mxu0
        %v1269 = vadd.f32 0.0, %v1268
        %v1270 = vpop.f32.mrf.mxu0
        %1271 = vmatprep.mubr.bf16.mxu0 0
        %1272 = vmatmul.mubr.bf16.gmra.mxu0 %v1229
        %v1273 = vpop.f32.mrf.mxu0
        %v1274 = vadd.f32 0.0, %v1273
        %v1275 = vpop.f32.mrf.mxu0
        %v1276 = vpop.f32.mrf.mxu0
        %v1277 = vadd.f32 0.0, %v1276
        %v1278 = vpop.f32.mrf.mxu0
        %1279 = vdwg.mxu0
        %v1281 = vsel %vm794, %v1219, 0
        %v1284 = vsel %vm794, %v1220, 0
        %1286 = vmatprep.subr.bf16.mxu0 0
        %1287 = vmatpush1.bf16.msra.mxu0 0
        %1288 = vmatprep.subr.bf16.mxu0 0
        %1289 = vmatpush1.bf16.msra.mxu0 0
        %1290 = vmatprep.subr.bf16.mxu0 0
        %1291 = vmatpush1.bf16.msra.mxu0 0
        %1292 = vmatprep.subr.bf16.mxu0 0
        %1293 = vmatpush1.bf16.msra.mxu0 0
        %1294 = vmatprep.subr.bf16.mxu0 0
        %1295 = vmatpush1.bf16.msra.mxu0 0
        %1296 = vmatprep.subr.bf16.mxu0 0
        %1297 = vmatpush1.bf16.msra.mxu0 0
        %1298 = vmatprep.subr.bf16.mxu0 0
        %1299 = vmatpush1.bf16.msra.mxu0 %v779
        %1300 = vmatprep.subr.bf16.mxu0 0
        %1301 = vmatpush1.bf16.msra.mxu0 %v777
        %1302 = vmatprep.subr.bf16.mxu0 0
        %1303 = vmatpush2.bf16.msra.mxu0 0
        %1304 = vmatprep.subr.bf16.mxu0 0
        %1305 = vmatpush2.bf16.msra.mxu0 0
        %1306 = vmatprep.subr.bf16.mxu0 0
        %1307 = vmatpush2.bf16.msra.mxu0 0
        %1308 = vmatprep.subr.bf16.mxu0 0
        %1309 = vmatpush2.bf16.msra.mxu0 0
        %1310 = vmatprep.subr.bf16.mxu0 0
        %1311 = vmatpush2.bf16.msra.mxu0 0
        %1312 = vmatprep.subr.bf16.mxu0 0
        %1313 = vmatpush2.bf16.msra.mxu0 0
        %1314 = vmatprep.subr.bf16.mxu0 0
        %1315 = vmatpush2.bf16.msra.mxu0 0
        %1316 = vmatprep.subr.bf16.mxu0 0
        %1317 = vmatpush2.bf16.msra.mxu0 0
        %1318 = vmatprep.mubr.bf16.mxu0 0
        %1319 = vmatmul.mubr.bf16.gmra.mxu0 %v1281
        %v1320 = vpop.f32.mrf.mxu0
        %v1321 = vadd.f32 0.0, %v1320
        %v1322 = vpop.f32.mrf.mxu0
        %v1323 = vpop.f32.mrf.mxu0
        %v1324 = vadd.f32 0.0, %v1323
        %v1325 = vpop.f32.mrf.mxu0
        %1326 = vmatprep.mubr.bf16.mxu0 0
        %1327 = vmatmul.mubr.bf16.gmra.mxu0 %v1284
        %v1328 = vpop.f32.mrf.mxu0
        %v1329 = vadd.f32 0.0, %v1328
        %v1330 = vpop.f32.mrf.mxu0
        %v1331 = vpop.f32.mrf.mxu0
        %v1332 = vadd.f32 0.0, %v1331
        %v1333 = vpop.f32.mrf.mxu0
        %1334 = vdwg.mxu0
        %v1336 = vsel %vm794, %v1221, 0
        %v1339 = vsel %vm794, %v1222, 0
        %1341 = vmatprep.subr.bf16.mxu0 0
        %1342 = vmatpush1.bf16.msra.mxu0 0
        %1343 = vmatprep.subr.bf16.mxu0 0
        %1344 = vmatpush1.bf16.msra.mxu0 0
        %1345 = vmatprep.subr.bf16.mxu0 0
        %1346 = vmatpush1.bf16.msra.mxu0 0
        %1347 = vmatprep.subr.bf16.mxu0 0
        %1348 = vmatpush1.bf16.msra.mxu0 0
        %1349 = vmatprep.subr.bf16.mxu0 0
        %1350 = vmatpush1.bf16.msra.mxu0 0
        %1351 = vmatprep.subr.bf16.mxu0 0
        %1352 = vmatpush1.bf16.msra.mxu0 0
        %1353 = vmatprep.subr.bf16.mxu0 0
        %1354 = vmatpush1.bf16.msra.mxu0 %v783
        %1355 = vmatprep.subr.bf16.mxu0 0
        %1356 = vmatpush1.bf16.msra.mxu0 %v781
        %1357 = vmatprep.subr.bf16.mxu0 0
        %1358 = vmatpush2.bf16.msra.mxu0 0
        %1359 = vmatprep.subr.bf16.mxu0 0
        %1360 = vmatpush2.bf16.msra.mxu0 0
        %1361 = vmatprep.subr.bf16.mxu0 0
        %1362 = vmatpush2.bf16.msra.mxu0 0
        %1363 = vmatprep.subr.bf16.mxu0 0
        %1364 = vmatpush2.bf16.msra.mxu0 0
        %1365 = vmatprep.subr.bf16.mxu0 0
        %1366 = vmatpush2.bf16.msra.mxu0 0
        %1367 = vmatprep.subr.bf16.mxu0 0
        %1368 = vmatpush2.bf16.msra.mxu0 0
        %1369 = vmatprep.subr.bf16.mxu0 0
        %1370 = vmatpush2.bf16.msra.mxu0 0
        %1371 = vmatprep.subr.bf16.mxu0 0
        %1372 = vmatpush2.bf16.msra.mxu0 0
        %1373 = vmatprep.mubr.bf16.mxu0 0
        %1374 = vmatmul.mubr.bf16.gmra.mxu0 %v1336
        %v1375 = vpop.f32.mrf.mxu0
        %v1376 = vadd.f32 0.0, %v1375
        %v1377 = vpop.f32.mrf.mxu0
        %v1378 = vpop.f32.mrf.mxu0
        %v1379 = vadd.f32 0.0, %v1378
        %v1380 = vpop.f32.mrf.mxu0
        %1381 = vmatprep.mubr.bf16.mxu0 0
        %1382 = vmatmul.mubr.bf16.gmra.mxu0 %v1339
        %v1383 = vpop.f32.mrf.mxu0
        %v1384 = vadd.f32 0.0, %v1383
        %v1385 = vpop.f32.mrf.mxu0
        %v1386 = vpop.f32.mrf.mxu0
        %v1387 = vadd.f32 0.0, %v1386
        %v1388 = vpop.f32.mrf.mxu0
        %1389 = vdwg.mxu0
        %v1391 = vsel %vm794, %v1223, 0
        %v1394 = vsel %vm794, %v1224, 0
        %1396 = vmatprep.subr.bf16.mxu0 0
        %1397 = vmatpush1.bf16.msra.mxu0 0
        %1398 = vmatprep.subr.bf16.mxu0 0
        %1399 = vmatpush1.bf16.msra.mxu0 0
        %1400 = vmatprep.subr.bf16.mxu0 0
        %1401 = vmatpush1.bf16.msra.mxu0 0
        %1402 = vmatprep.subr.bf16.mxu0 0
        %1403 = vmatpush1.bf16.msra.mxu0 0
        %1404 = vmatprep.subr.bf16.mxu0 0
        %1405 = vmatpush1.bf16.msra.mxu0 0
        %1406 = vmatprep.subr.bf16.mxu0 0
        %1407 = vmatpush1.bf16.msra.mxu0 0
        %1408 = vmatprep.subr.bf16.mxu0 0
        %1409 = vmatpush1.bf16.msra.mxu0 %v787
        %1410 = vmatprep.subr.bf16.mxu0 0
        %1411 = vmatpush1.bf16.msra.mxu0 %v785
        %1412 = vmatprep.subr.bf16.mxu0 0
        %1413 = vmatpush2.bf16.msra.mxu0 0
        %1414 = vmatprep.subr.bf16.mxu0 0
        %1415 = vmatpush2.bf16.msra.mxu0 0
        %1416 = vmatprep.subr.bf16.mxu0 0
        %1417 = vmatpush2.bf16.msra.mxu0 0
        %1418 = vmatprep.subr.bf16.mxu0 0
        %1419 = vmatpush2.bf16.msra.mxu0 0
        %1420 = vmatprep.subr.bf16.mxu0 0
        %1421 = vmatpush2.bf16.msra.mxu0 0
        %1422 = vmatprep.subr.bf16.mxu0 0
        %1423 = vmatpush2.bf16.msra.mxu0 0
        %1424 = vmatprep.subr.bf16.mxu0 0
        %1425 = vmatpush2.bf16.msra.mxu0 0
        %1426 = vmatprep.subr.bf16.mxu0 0
        %1427 = vmatpush2.bf16.msra.mxu0 0
        %1428 = vmatprep.mubr.bf16.mxu0 0
        %1429 = vmatmul.mubr.bf16.gmra.mxu0 %v1391
        %v1430 = vpop.f32.mrf.mxu0
        %v1431 = vadd.f32 0.0, %v1430
        %v1432 = vpop.f32.mrf.mxu0
        %v1433 = vpop.f32.mrf.mxu0
        %v1434 = vadd.f32 0.0, %v1433
        %v1435 = vpop.f32.mrf.mxu0
        %1436 = vmatprep.mubr.bf16.mxu0 0
        %1437 = vmatmul.mubr.bf16.gmra.mxu0 %v1394
        %v1438 = vpop.f32.mrf.mxu0
        %v1439 = vadd.f32 0.0, %v1438
        %v1440 = vpop.f32.mrf.mxu0
        %v1441 = vpop.f32.mrf.mxu0
        %v1442 = vadd.f32 0.0, %v1441
        %v1443 = vpop.f32.mrf.mxu0
        %1444 = vdwg.mxu0
        %v1445 = vrcp.pop %v1171
        %v1446 = vrcp.pop %v1174
        %v1447 = vrcp.pop %v1177
        %v1448 = vrcp.pop %v1180
        %v1449 = vrcp.pop %v1183
        %v1450 = vrcp.pop %v1186
        %v1451 = vrcp.pop %v1189
        %v1452 = vrcp.pop %v1192
        %v1453 = vrcp.pop %v1195
        %v1454 = vrcp.pop %v1198
        %v1455 = vrcp.pop %v1201
        %v1456 = vrcp.pop %v1204
        %v1457 = vrcp.pop %v1207
        %v1458 = vrcp.pop %v1210
        %v1459 = vrcp.pop %v1213
        %v1460 = vrcp.pop %v1216
        %v1461 = vmul.f32 %v1266, %v1445
        %v1462 = vmul.f32 %v1269, %v1446
        %v1463 = vmul.f32 %v1274, %v1447
        %v1464 = vmul.f32 %v1277, %v1448
        %v1465 = vmul.f32 %v1321, %v1449
        %v1466 = vmul.f32 %v1324, %v1450
        %v1467 = vmul.f32 %v1329, %v1451
        %v1468 = vmul.f32 %v1332, %v1452
        %v1469 = vmul.f32 %v1376, %v1453
        %v1470 = vmul.f32 %v1379, %v1454
        %v1471 = vmul.f32 %v1384, %v1455
        %v1472 = vmul.f32 %v1387, %v1456
        %v1473 = vmul.f32 %v1431, %v1457
        %v1474 = vmul.f32 %v1434, %v1458
        %v1475 = vmul.f32 %v1439, %v1459
        %v1476 = vmul.f32 %v1442, %v1460
        %v1477 = vpack.c.bf16 %v1462, %v1461
        %v1478 = vpack.c.bf16 %v1464, %v1463
        %v1479 = vpack.c.bf16 %v1466, %v1465
        %v1480 = vpack.c.bf16 %v1468, %v1467
        %v1481 = vpack.c.bf16 %v1470, %v1469
        %v1482 = vpack.c.bf16 %v1472, %v1471
        %v1483 = vpack.c.bf16 %v1474, %v1473
        %v1484 = vpack.c.bf16 %v1476, %v1475
        %v1485 = vld [vmem:[%s2] sm:$0xf]
        %v1486 = vld [vmem:[%s2 + $0x4] sm:$0xf]
        %v1487 = vld [vmem:[%s2 + $0x8] sm:$0xf]
        %v1488 = vld [vmem:[%s2 + $0xc] sm:$0xf]
        %1489 = vrot.lane.b32.xlu0 %v772, 96
        %v1490 = vpop.permute.xlu0 %1489
        %1491 = vrot.lane.b32.xlu0 %v774, 96
        %v1492 = vpop.permute.xlu0 %1491
        %1493 = vrot.lane.b32.xlu0 %v772, 32
        %v1494 = vpop.permute.xlu0 %1493
        %1495 = vrot.lane.b32.xlu0 %v774, 32
        %v1496 = vpop.permute.xlu0 %1495
        %v1498 = vsel %vm794, %v1490, 0
        %v1501 = vsel %vm794, %v1492, 0
        %v1504 = vsel %vm794, %v1494, 0
        %v1507 = vsel %vm794, %v1496, 0
        %1509 = vmatprep.subr.bf16.mxu0 0
        %1510 = vmatpush1.bf16.xpose.msra.mxu0 0
        %1511 = vmatprep.subr.bf16.mxu0 0
        %1512 = vmatpush1.bf16.xpose.msra.mxu0 0
        %1513 = vmatprep.subr.bf16.mxu0 0
        %1514 = vmatpush1.bf16.xpose.msra.mxu0 0
        %1515 = vmatprep.subr.bf16.mxu0 0
        %1516 = vmatpush1.bf16.xpose.msra.mxu0 0
        %1517 = vmatprep.subr.bf16.mxu0 0
        %1518 = vmatpush1.bf16.xpose.msra.mxu0 0
        %1519 = vmatprep.subr.bf16.mxu0 0
        %1520 = vmatpush1.bf16.xpose.msra.mxu0 0
        %1521 = vmatprep.subr.bf16.mxu0 0
        %1522 = vmatpush1.bf16.xpose.msra.mxu0 %v1507
        %1523 = vmatprep.subr.bf16.mxu0 0
        %1524 = vmatpush1.bf16.xpose.msra.mxu0 %v1504
        %1525 = vmatprep.subr.bf16.mxu0 0
        %1526 = vmatpush2.bf16.xpose.msra.mxu0 0
        %1527 = vmatprep.subr.bf16.mxu0 0
        %1528 = vmatpush2.bf16.xpose.msra.mxu0 0
        %1529 = vmatprep.subr.bf16.mxu0 0
        %1530 = vmatpush2.bf16.xpose.msra.mxu0 0
        %1531 = vmatprep.subr.bf16.mxu0 0
        %1532 = vmatpush2.bf16.xpose.msra.mxu0 0
        %1533 = vmatprep.subr.bf16.mxu0 0
        %1534 = vmatpush2.bf16.xpose.msra.mxu0 0
        %1535 = vmatprep.subr.bf16.mxu0 0
        %1536 = vmatpush2.bf16.xpose.msra.mxu0 0
        %1537 = vmatprep.subr.bf16.mxu0 0
        %1538 = vmatpush2.bf16.xpose.msra.mxu0 0
        %1539 = vmatprep.subr.bf16.mxu0 0
        %1540 = vmatpush2.bf16.xpose.msra.mxu0 0
        %1541 = vmatprep.mubr.bf16.mxu0 0
        %1542 = vmatmul.mubr.bf16.gmra.mxu0 %v1498
        %v1543 = vpop.f32.mrf.mxu0
        %v1544 = vadd.f32 0.0, %v1543
        %v1545 = vpop.f32.mrf.mxu0
        %v1546 = vpop.f32.mrf.mxu0
        %v1547 = vadd.f32 0.0, %v1546
        %v1548 = vpop.f32.mrf.mxu0
        %1549 = vmatprep.mubr.bf16.mxu0 0
        %1550 = vmatmul.mubr.bf16.gmra.mxu0 %v1501
        %v1551 = vpop.f32.mrf.mxu0
        %v1552 = vadd.f32 0.0, %v1551
        %v1553 = vpop.f32.mrf.mxu0
        %v1554 = vpop.f32.mrf.mxu0
        %v1555 = vadd.f32 0.0, %v1554
        %v1556 = vpop.f32.mrf.mxu0
        %1557 = vdwg.mxu0
        %1558 = vrot.lane.b32.xlu0 %v776, 96
        %v1559 = vpop.permute.xlu0 %1558
        %1560 = vrot.lane.b32.xlu0 %v778, 96
        %v1561 = vpop.permute.xlu0 %1560
        %1562 = vrot.lane.b32.xlu0 %v776, 32
        %v1563 = vpop.permute.xlu0 %1562
        %1564 = vrot.lane.b32.xlu0 %v778, 32
        %v1565 = vpop.permute.xlu0 %1564
        %v1567 = vsel %vm794, %v1559, 0
        %v1570 = vsel %vm794, %v1561, 0
        %v1573 = vsel %vm794, %v1563, 0
        %v1576 = vsel %vm794, %v1565, 0
        %1578 = vmatprep.subr.bf16.mxu0 0
        %1579 = vmatpush1.bf16.xpose.msra.mxu0 0
        %1580 = vmatprep.subr.bf16.mxu0 0
        %1581 = vmatpush1.bf16.xpose.msra.mxu0 0
        %1582 = vmatprep.subr.bf16.mxu0 0
        %1583 = vmatpush1.bf16.xpose.msra.mxu0 0
        %1584 = vmatprep.subr.bf16.mxu0 0
        %1585 = vmatpush1.bf16.xpose.msra.mxu0 0
        %1586 = vmatprep.subr.bf16.mxu0 0
        %1587 = vmatpush1.bf16.xpose.msra.mxu0 0
        %1588 = vmatprep.subr.bf16.mxu0 0
        %1589 = vmatpush1.bf16.xpose.msra.mxu0 0
        %1590 = vmatprep.subr.bf16.mxu0 0
        %1591 = vmatpush1.bf16.xpose.msra.mxu0 %v1576
        %1592 = vmatprep.subr.bf16.mxu0 0
        %1593 = vmatpush1.bf16.xpose.msra.mxu0 %v1573
        %1594 = vmatprep.subr.bf16.mxu0 0
        %1595 = vmatpush2.bf16.xpose.msra.mxu0 0
        %1596 = vmatprep.subr.bf16.mxu0 0
        %1597 = vmatpush2.bf16.xpose.msra.mxu0 0
        %1598 = vmatprep.subr.bf16.mxu0 0
        %1599 = vmatpush2.bf16.xpose.msra.mxu0 0
        %1600 = vmatprep.subr.bf16.mxu0 0
        %1601 = vmatpush2.bf16.xpose.msra.mxu0 0
        %1602 = vmatprep.subr.bf16.mxu0 0
        %1603 = vmatpush2.bf16.xpose.msra.mxu0 0
        %1604 = vmatprep.subr.bf16.mxu0 0
        %1605 = vmatpush2.bf16.xpose.msra.mxu0 0
        %1606 = vmatprep.subr.bf16.mxu0 0
        %1607 = vmatpush2.bf16.xpose.msra.mxu0 0
        %1608 = vmatprep.subr.bf16.mxu0 0
        %1609 = vmatpush2.bf16.xpose.msra.mxu0 0
        %1610 = vmatprep.mubr.bf16.mxu0 0
        %1611 = vmatmul.mubr.bf16.gmra.mxu0 %v1567
        %v1612 = vpop.f32.mrf.mxu0
        %v1613 = vadd.f32 0.0, %v1612
        %v1614 = vpop.f32.mrf.mxu0
        %v1615 = vpop.f32.mrf.mxu0
        %v1616 = vadd.f32 0.0, %v1615
        %v1617 = vpop.f32.mrf.mxu0
        %1618 = vmatprep.mubr.bf16.mxu0 0
        %1619 = vmatmul.mubr.bf16.gmra.mxu0 %v1570
        %v1620 = vpop.f32.mrf.mxu0
        %v1621 = vadd.f32 0.0, %v1620
        %v1622 = vpop.f32.mrf.mxu0
        %v1623 = vpop.f32.mrf.mxu0
        %v1624 = vadd.f32 0.0, %v1623
        %v1625 = vpop.f32.mrf.mxu0
        %1626 = vdwg.mxu0
        %1627 = vrot.lane.b32.xlu0 %v780, 96
        %v1628 = vpop.permute.xlu0 %1627
        %1629 = vrot.lane.b32.xlu0 %v782, 96
        %v1630 = vpop.permute.xlu0 %1629
        %1631 = vrot.lane.b32.xlu0 %v780, 32
        %v1632 = vpop.permute.xlu0 %1631
        %1633 = vrot.lane.b32.xlu0 %v782, 32
        %v1634 = vpop.permute.xlu0 %1633
        %v1636 = vsel %vm794, %v1628, 0
        %v1639 = vsel %vm794, %v1630, 0
        %v1642 = vsel %vm794, %v1632, 0
        %v1645 = vsel %vm794, %v1634, 0
        %1647 = vmatprep.subr.bf16.mxu0 0
        %1648 = vmatpush1.bf16.xpose.msra.mxu0 0
        %1649 = vmatprep.subr.bf16.mxu0 0
        %1650 = vmatpush1.bf16.xpose.msra.mxu0 0
        %1651 = vmatprep.subr.bf16.mxu0 0
        %1652 = vmatpush1.bf16.xpose.msra.mxu0 0
        %1653 = vmatprep.subr.bf16.mxu0 0
        %1654 = vmatpush1.bf16.xpose.msra.mxu0 0
        %1655 = vmatprep.subr.bf16.mxu0 0
        %1656 = vmatpush1.bf16.xpose.msra.mxu0 0
        %1657 = vmatprep.subr.bf16.mxu0 0
        %1658 = vmatpush1.bf16.xpose.msra.mxu0 0
        %1659 = vmatprep.subr.bf16.mxu0 0
        %1660 = vmatpush1.bf16.xpose.msra.mxu0 %v1645
        %1661 = vmatprep.subr.bf16.mxu0 0
        %1662 = vmatpush1.bf16.xpose.msra.mxu0 %v1642
        %1663 = vmatprep.subr.bf16.mxu0 0
        %1664 = vmatpush2.bf16.xpose.msra.mxu0 0
        %1665 = vmatprep.subr.bf16.mxu0 0
        %1666 = vmatpush2.bf16.xpose.msra.mxu0 0
        %1667 = vmatprep.subr.bf16.mxu0 0
        %1668 = vmatpush2.bf16.xpose.msra.mxu0 0
        %1669 = vmatprep.subr.bf16.mxu0 0
        %1670 = vmatpush2.bf16.xpose.msra.mxu0 0
        %1671 = vmatprep.subr.bf16.mxu0 0
        %1672 = vmatpush2.bf16.xpose.msra.mxu0 0
        %1673 = vmatprep.subr.bf16.mxu0 0
        %1674 = vmatpush2.bf16.xpose.msra.mxu0 0
        %1675 = vmatprep.subr.bf16.mxu0 0
        %1676 = vmatpush2.bf16.xpose.msra.mxu0 0
        %1677 = vmatprep.subr.bf16.mxu0 0
        %1678 = vmatpush2.bf16.xpose.msra.mxu0 0
        %1679 = vmatprep.mubr.bf16.mxu0 0
        %1680 = vmatmul.mubr.bf16.gmra.mxu0 %v1636
        %v1681 = vpop.f32.mrf.mxu0
        %v1682 = vadd.f32 0.0, %v1681
        %v1683 = vpop.f32.mrf.mxu0
        %v1684 = vpop.f32.mrf.mxu0
        %v1685 = vadd.f32 0.0, %v1684
        %v1686 = vpop.f32.mrf.mxu0
        %1687 = vmatprep.mubr.bf16.mxu0 0
        %1688 = vmatmul.mubr.bf16.gmra.mxu0 %v1639
        %v1689 = vpop.f32.mrf.mxu0
        %v1690 = vadd.f32 0.0, %v1689
        %v1691 = vpop.f32.mrf.mxu0
        %v1692 = vpop.f32.mrf.mxu0
        %v1693 = vadd.f32 0.0, %v1692
        %v1694 = vpop.f32.mrf.mxu0
        %1695 = vdwg.mxu0
        %1696 = vrot.lane.b32.xlu0 %v784, 96
        %v1697 = vpop.permute.xlu0 %1696
        %1698 = vrot.lane.b32.xlu0 %v786, 96
        %v1699 = vpop.permute.xlu0 %1698
        %1700 = vrot.lane.b32.xlu0 %v784, 32
        %v1701 = vpop.permute.xlu0 %1700
        %1702 = vrot.lane.b32.xlu0 %v786, 32
        %v1703 = vpop.permute.xlu0 %1702
        %v1705 = vsel %vm794, %v1697, 0
        %v1708 = vsel %vm794, %v1699, 0
        %v1711 = vsel %vm794, %v1701, 0
        %v1714 = vsel %vm794, %v1703, 0
        %1716 = vmatprep.subr.bf16.mxu0 0
        %1717 = vmatpush1.bf16.xpose.msra.mxu0 0
        %1718 = vmatprep.subr.bf16.mxu0 0
        %1719 = vmatpush1.bf16.xpose.msra.mxu0 0
        %1720 = vmatprep.subr.bf16.mxu0 0
        %1721 = vmatpush1.bf16.xpose.msra.mxu0 0
        %1722 = vmatprep.subr.bf16.mxu0 0
        %1723 = vmatpush1.bf16.xpose.msra.mxu0 0
        %1724 = vmatprep.subr.bf16.mxu0 0
        %1725 = vmatpush1.bf16.xpose.msra.mxu0 0
        %1726 = vmatprep.subr.bf16.mxu0 0
        %1727 = vmatpush1.bf16.xpose.msra.mxu0 0
        %1728 = vmatprep.subr.bf16.mxu0 0
        %1729 = vmatpush1.bf16.xpose.msra.mxu0 %v1714
        %1730 = vmatprep.subr.bf16.mxu0 0
        %1731 = vmatpush1.bf16.xpose.msra.mxu0 %v1711
        %1732 = vmatprep.subr.bf16.mxu0 0
        %1733 = vmatpush2.bf16.xpose.msra.mxu0 0
        %1734 = vmatprep.subr.bf16.mxu0 0
        %1735 = vmatpush2.bf16.xpose.msra.mxu0 0
        %1736 = vmatprep.subr.bf16.mxu0 0
        %1737 = vmatpush2.bf16.xpose.msra.mxu0 0
        %1738 = vmatprep.subr.bf16.mxu0 0
        %1739 = vmatpush2.bf16.xpose.msra.mxu0 0
        %1740 = vmatprep.subr.bf16.mxu0 0
        %1741 = vmatpush2.bf16.xpose.msra.mxu0 0
        %1742 = vmatprep.subr.bf16.mxu0 0
        %1743 = vmatpush2.bf16.xpose.msra.mxu0 0
        %1744 = vmatprep.subr.bf16.mxu0 0
        %1745 = vmatpush2.bf16.xpose.msra.mxu0 0
        %1746 = vmatprep.subr.bf16.mxu0 0
        %1747 = vmatpush2.bf16.xpose.msra.mxu0 0
        %1748 = vmatprep.mubr.bf16.mxu0 0
        %1749 = vmatmul.mubr.bf16.gmra.mxu0 %v1705
        %v1750 = vpop.f32.mrf.mxu0
        %v1751 = vadd.f32 0.0, %v1750
        %v1752 = vpop.f32.mrf.mxu0
        %v1753 = vpop.f32.mrf.mxu0
        %v1754 = vadd.f32 0.0, %v1753
        %v1755 = vpop.f32.mrf.mxu0
        %1756 = vmatprep.mubr.bf16.mxu0 0
        %1757 = vmatmul.mubr.bf16.gmra.mxu0 %v1708
        %v1758 = vpop.f32.mrf.mxu0
        %v1759 = vadd.f32 0.0, %v1758
        %v1760 = vpop.f32.mrf.mxu0
        %v1761 = vpop.f32.mrf.mxu0
        %v1762 = vadd.f32 0.0, %v1761
        %v1763 = vpop.f32.mrf.mxu0
        %1764 = vdwg.mxu0
        %v1765 = vmul.f32 %v1544, 0.17677669
        %v1766 = vmul.f32 %v1547, 0.17677669
        %v1767 = vmul.f32 %v1552, 0.17677669
        %v1768 = vmul.f32 %v1555, 0.17677669
        %v1769 = vmul.f32 %v1613, 0.17677669
        %v1770 = vmul.f32 %v1616, 0.17677669
        %v1771 = vmul.f32 %v1621, 0.17677669
        %v1772 = vmul.f32 %v1624, 0.17677669
        %v1773 = vmul.f32 %v1682, 0.17677669
        %v1774 = vmul.f32 %v1685, 0.17677669
        %v1775 = vmul.f32 %v1690, 0.17677669
        %v1776 = vmul.f32 %v1693, 0.17677669
        %v1777 = vmul.f32 %v1751, 0.17677669
        %v1778 = vmul.f32 %v1754, 0.17677669
        %v1779 = vmul.f32 %v1759, 0.17677669
        %v1780 = vmul.f32 %v1762, 0.17677669
        %v1781 = vsel %vm794, %v1765, -inf
        %1782 = vmax.xlane.f32.xlu0 %v1781
        %v1783 = vpop.xlane.xlu0 %1782
        %v1784 = vsel %vm794, %v1766, -inf
        %1785 = vmax.xlane.f32.xlu0 %v1784
        %v1786 = vpop.xlane.xlu0 %1785
        %v1787 = vsel %vm794, %v1767, -inf
        %1788 = vmax.xlane.f32.xlu0 %v1787
        %v1789 = vpop.xlane.xlu0 %1788
        %v1790 = vsel %vm794, %v1768, -inf
        %1791 = vmax.xlane.f32.xlu0 %v1790
        %v1792 = vpop.xlane.xlu0 %1791
        %v1793 = vsel %vm794, %v1769, -inf
        %1794 = vmax.xlane.f32.xlu0 %v1793
        %v1795 = vpop.xlane.xlu0 %1794
        %v1796 = vsel %vm794, %v1770, -inf
        %1797 = vmax.xlane.f32.xlu0 %v1796
        %v1798 = vpop.xlane.xlu0 %1797
        %v1799 = vsel %vm794, %v1771, -inf
        %1800 = vmax.xlane.f32.xlu0 %v1799
        %v1801 = vpop.xlane.xlu0 %1800
        %v1802 = vsel %vm794, %v1772, -inf
        %1803 = vmax.xlane.f32.xlu0 %v1802
        %v1804 = vpop.xlane.xlu0 %1803
        %v1805 = vsel %vm794, %v1773, -inf
        %1806 = vmax.xlane.f32.xlu0 %v1805
        %v1807 = vpop.xlane.xlu0 %1806
        %v1808 = vsel %vm794, %v1774, -inf
        %1809 = vmax.xlane.f32.xlu0 %v1808
        %v1810 = vpop.xlane.xlu0 %1809
        %v1811 = vsel %vm794, %v1775, -inf
        %1812 = vmax.xlane.f32.xlu0 %v1811
        %v1813 = vpop.xlane.xlu0 %1812
        %v1814 = vsel %vm794, %v1776, -inf
        %1815 = vmax.xlane.f32.xlu0 %v1814
        %v1816 = vpop.xlane.xlu0 %1815
        %v1817 = vsel %vm794, %v1777, -inf
        %1818 = vmax.xlane.f32.xlu0 %v1817
        %v1819 = vpop.xlane.xlu0 %1818
        %v1820 = vsel %vm794, %v1778, -inf
        %1821 = vmax.xlane.f32.xlu0 %v1820
        %v1822 = vpop.xlane.xlu0 %1821
        %v1823 = vsel %vm794, %v1779, -inf
        %1824 = vmax.xlane.f32.xlu0 %v1823
        %v1825 = vpop.xlane.xlu0 %1824
        %v1826 = vsel %vm794, %v1780, -inf
        %1827 = vmax.xlane.f32.xlu0 %v1826
        %v1828 = vpop.xlane.xlu0 %1827
        %v1829 = vsub.f32 %v1765, %v1783
        %v1830 = vsub.f32 %v1766, %v1786
        %v1831 = vsub.f32 %v1767, %v1789
        %v1832 = vsub.f32 %v1768, %v1792
        %v1833 = vsub.f32 %v1769, %v1795
        %v1834 = vsub.f32 %v1770, %v1798
        %v1835 = vsub.f32 %v1771, %v1801
        %v1836 = vsub.f32 %v1772, %v1804
        %v1837 = vsub.f32 %v1773, %v1807
        %v1838 = vsub.f32 %v1774, %v1810
        %v1839 = vsub.f32 %v1775, %v1813
        %v1840 = vsub.f32 %v1776, %v1816
        %v1841 = vsub.f32 %v1777, %v1819
        %v1842 = vsub.f32 %v1778, %v1822
        %v1843 = vsub.f32 %v1779, %v1825
        %v1844 = vsub.f32 %v1780, %v1828
        %v1845 = vmul.f32 %v1829, 1.442695
        %v1846 = vpow.pop %v1845
        %v1847 = vmul.f32 %v1830, 1.442695
        %v1848 = vpow.pop %v1847
        %v1849 = vmul.f32 %v1831, 1.442695
        %v1850 = vpow.pop %v1849
        %v1851 = vmul.f32 %v1832, 1.442695
        %v1852 = vpow.pop %v1851
        %v1853 = vmul.f32 %v1833, 1.442695
        %v1854 = vpow.pop %v1853
        %v1855 = vmul.f32 %v1834, 1.442695
        %v1856 = vpow.pop %v1855
        %v1857 = vmul.f32 %v1835, 1.442695
        %v1858 = vpow.pop %v1857
        %v1859 = vmul.f32 %v1836, 1.442695
        %v1860 = vpow.pop %v1859
        %v1861 = vmul.f32 %v1837, 1.442695
        %v1862 = vpow.pop %v1861
        %v1863 = vmul.f32 %v1838, 1.442695
        %v1864 = vpow.pop %v1863
        %v1865 = vmul.f32 %v1839, 1.442695
        %v1866 = vpow.pop %v1865
        %v1867 = vmul.f32 %v1840, 1.442695
        %v1868 = vpow.pop %v1867
        %v1869 = vmul.f32 %v1841, 1.442695
        %v1870 = vpow.pop %v1869
        %v1871 = vmul.f32 %v1842, 1.442695
        %v1872 = vpow.pop %v1871
        %v1873 = vmul.f32 %v1843, 1.442695
        %v1874 = vpow.pop %v1873
        %v1875 = vmul.f32 %v1844, 1.442695
        %v1876 = vpow.pop %v1875
        %v1877 = vsel %vm794, %v1846, 0.0
        %1878 = vadd.xlane.f32.xlu0 %v1877
        %v1879 = vpop.xlane.xlu0 %1878
        %v1880 = vsel %vm794, %v1848, 0.0
        %1881 = vadd.xlane.f32.xlu0 %v1880
        %v1882 = vpop.xlane.xlu0 %1881
        %v1883 = vsel %vm794, %v1850, 0.0
        %1884 = vadd.xlane.f32.xlu0 %v1883
        %v1885 = vpop.xlane.xlu0 %1884
        %v1886 = vsel %vm794, %v1852, 0.0
        %1887 = vadd.xlane.f32.xlu0 %v1886
        %v1888 = vpop.xlane.xlu0 %1887
        %v1889 = vsel %vm794, %v1854, 0.0
        %1890 = vadd.xlane.f32.xlu0 %v1889
        %v1891 = vpop.xlane.xlu0 %1890
        %v1892 = vsel %vm794, %v1856, 0.0
        %1893 = vadd.xlane.f32.xlu0 %v1892
        %v1894 = vpop.xlane.xlu0 %1893
        %v1895 = vsel %vm794, %v1858, 0.0
        %1896 = vadd.xlane.f32.xlu0 %v1895
        %v1897 = vpop.xlane.xlu0 %1896
        %v1898 = vsel %vm794, %v1860, 0.0
        %1899 = vadd.xlane.f32.xlu0 %v1898
        %v1900 = vpop.xlane.xlu0 %1899
        %v1901 = vsel %vm794, %v1862, 0.0
        %1902 = vadd.xlane.f32.xlu0 %v1901
        %v1903 = vpop.xlane.xlu0 %1902
        %v1904 = vsel %vm794, %v1864, 0.0
        %1905 = vadd.xlane.f32.xlu0 %v1904
        %v1906 = vpop.xlane.xlu0 %1905
        %v1907 = vsel %vm794, %v1866, 0.0
        %1908 = vadd.xlane.f32.xlu0 %v1907
        %v1909 = vpop.xlane.xlu0 %1908
        %v1910 = vsel %vm794, %v1868, 0.0
        %1911 = vadd.xlane.f32.xlu0 %v1910
        %v1912 = vpop.xlane.xlu0 %1911
        %v1913 = vsel %vm794, %v1870, 0.0
        %1914 = vadd.xlane.f32.xlu0 %v1913
        %v1915 = vpop.xlane.xlu0 %1914
        %v1916 = vsel %vm794, %v1872, 0.0
        %1917 = vadd.xlane.f32.xlu0 %v1916
        %v1918 = vpop.xlane.xlu0 %1917
        %v1919 = vsel %vm794, %v1874, 0.0
        %1920 = vadd.xlane.f32.xlu0 %v1919
        %v1921 = vpop.xlane.xlu0 %1920
        %v1922 = vsel %vm794, %v1876, 0.0
        %1923 = vadd.xlane.f32.xlu0 %v1922
        %v1924 = vpop.xlane.xlu0 %1923
        %v1925 = vpack.c.bf16 %v1848, %v1846
        %v1926 = vpack.c.bf16 %v1852, %v1850
        %v1927 = vpack.c.bf16 %v1856, %v1854
        %v1928 = vpack.c.bf16 %v1860, %v1858
        %v1929 = vpack.c.bf16 %v1864, %v1862
        %v1930 = vpack.c.bf16 %v1868, %v1866
        %v1931 = vpack.c.bf16 %v1872, %v1870
        %v1932 = vpack.c.bf16 %v1876, %v1874
        %1935 = vrot.lane.b32.xlu0 %v773, 96
        %v1936 = vpop.permute.xlu0 %1935
        %1937 = vrot.lane.b32.xlu0 %v775, 96
        %v1938 = vpop.permute.xlu0 %1937
        %v1942 = vsel %vm794, %v1925, 0
        %v1945 = vsel %vm794, %v1926, 0
        %1947 = vmatprep.subr.bf16.mxu0 0
        %1948 = vmatpush1.bf16.msra.mxu0 0
        %1949 = vmatprep.subr.bf16.mxu0 0
        %1950 = vmatpush1.bf16.msra.mxu0 0
        %1951 = vmatprep.subr.bf16.mxu0 0
        %1952 = vmatpush1.bf16.msra.mxu0 0
        %1953 = vmatprep.subr.bf16.mxu0 0
        %1954 = vmatpush1.bf16.msra.mxu0 0
        %1955 = vmatprep.subr.bf16.mxu0 0
        %1956 = vmatpush1.bf16.msra.mxu0 0
        %1957 = vmatprep.subr.bf16.mxu0 0
        %1958 = vmatpush1.bf16.msra.mxu0 0
        %1959 = vmatprep.subr.bf16.mxu0 0
        %1960 = vmatpush1.bf16.msra.mxu0 %v1938
        %1961 = vmatprep.subr.bf16.mxu0 0
        %1962 = vmatpush1.bf16.msra.mxu0 %v1936
        %1963 = vmatprep.subr.bf16.mxu0 0
        %1964 = vmatpush2.bf16.msra.mxu0 0
        %1965 = vmatprep.subr.bf16.mxu0 0
        %1966 = vmatpush2.bf16.msra.mxu0 0
        %1967 = vmatprep.subr.bf16.mxu0 0
        %1968 = vmatpush2.bf16.msra.mxu0 0
        %1969 = vmatprep.subr.bf16.mxu0 0
        %1970 = vmatpush2.bf16.msra.mxu0 0
        %1971 = vmatprep.subr.bf16.mxu0 0
        %1972 = vmatpush2.bf16.msra.mxu0 0
        %1973 = vmatprep.subr.bf16.mxu0 0
        %1974 = vmatpush2.bf16.msra.mxu0 0
        %1975 = vmatprep.subr.bf16.mxu0 0
        %1976 = vmatpush2.bf16.msra.mxu0 0
        %1977 = vmatprep.subr.bf16.mxu0 0
        %1978 = vmatpush2.bf16.msra.mxu0 0
        %1979 = vmatprep.mubr.bf16.mxu0 0
        %1980 = vmatmul.mubr.bf16.gmra.mxu0 %v1942
        %v1981 = vpop.f32.mrf.mxu0
        %v1982 = vadd.f32 0.0, %v1981
        %v1983 = vpop.f32.mrf.mxu0
        %v1984 = vpop.f32.mrf.mxu0
        %v1985 = vadd.f32 0.0, %v1984
        %v1986 = vpop.f32.mrf.mxu0
        %1987 = vmatprep.mubr.bf16.mxu0 0
        %1988 = vmatmul.mubr.bf16.gmra.mxu0 %v1945
        %v1989 = vpop.f32.mrf.mxu0
        %v1990 = vadd.f32 0.0, %v1989
        %v1991 = vpop.f32.mrf.mxu0
        %v1992 = vpop.f32.mrf.mxu0
        %v1993 = vadd.f32 0.0, %v1992
        %v1994 = vpop.f32.mrf.mxu0
        %1995 = vdwg.mxu0
        %1998 = vrot.lane.b32.xlu0 %v777, 96
        %v1999 = vpop.permute.xlu0 %1998
        %2000 = vrot.lane.b32.xlu0 %v779, 96
        %v2001 = vpop.permute.xlu0 %2000
        %v2005 = vsel %vm794, %v1927, 0
        %v2008 = vsel %vm794, %v1928, 0
        %2010 = vmatprep.subr.bf16.mxu0 0
        %2011 = vmatpush1.bf16.msra.mxu0 0
        %2012 = vmatprep.subr.bf16.mxu0 0
        %2013 = vmatpush1.bf16.msra.mxu0 0
        %2014 = vmatprep.subr.bf16.mxu0 0
        %2015 = vmatpush1.bf16.msra.mxu0 0
        %2016 = vmatprep.subr.bf16.mxu0 0
        %2017 = vmatpush1.bf16.msra.mxu0 0
        %2018 = vmatprep.subr.bf16.mxu0 0
        %2019 = vmatpush1.bf16.msra.mxu0 0
        %2020 = vmatprep.subr.bf16.mxu0 0
        %2021 = vmatpush1.bf16.msra.mxu0 0
        %2022 = vmatprep.subr.bf16.mxu0 0
        %2023 = vmatpush1.bf16.msra.mxu0 %v2001
        %2024 = vmatprep.subr.bf16.mxu0 0
        %2025 = vmatpush1.bf16.msra.mxu0 %v1999
        %2026 = vmatprep.subr.bf16.mxu0 0
        %2027 = vmatpush2.bf16.msra.mxu0 0
        %2028 = vmatprep.subr.bf16.mxu0 0
        %2029 = vmatpush2.bf16.msra.mxu0 0
        %2030 = vmatprep.subr.bf16.mxu0 0
        %2031 = vmatpush2.bf16.msra.mxu0 0
        %2032 = vmatprep.subr.bf16.mxu0 0
        %2033 = vmatpush2.bf16.msra.mxu0 0
        %2034 = vmatprep.subr.bf16.mxu0 0
        %2035 = vmatpush2.bf16.msra.mxu0 0
        %2036 = vmatprep.subr.bf16.mxu0 0
        %2037 = vmatpush2.bf16.msra.mxu0 0
        %2038 = vmatprep.subr.bf16.mxu0 0
        %2039 = vmatpush2.bf16.msra.mxu0 0
        %2040 = vmatprep.subr.bf16.mxu0 0
        %2041 = vmatpush2.bf16.msra.mxu0 0
        %2042 = vmatprep.mubr.bf16.mxu0 0
        %2043 = vmatmul.mubr.bf16.gmra.mxu0 %v2005
        %v2044 = vpop.f32.mrf.mxu0
        %v2045 = vadd.f32 0.0, %v2044
        %v2046 = vpop.f32.mrf.mxu0
        %v2047 = vpop.f32.mrf.mxu0
        %v2048 = vadd.f32 0.0, %v2047
        %v2049 = vpop.f32.mrf.mxu0
        %2050 = vmatprep.mubr.bf16.mxu0 0
        %2051 = vmatmul.mubr.bf16.gmra.mxu0 %v2008
        %v2052 = vpop.f32.mrf.mxu0
        %v2053 = vadd.f32 0.0, %v2052
        %v2054 = vpop.f32.mrf.mxu0
        %v2055 = vpop.f32.mrf.mxu0
        %v2056 = vadd.f32 0.0, %v2055
        %v2057 = vpop.f32.mrf.mxu0
        %2058 = vdwg.mxu0
        %2061 = vrot.lane.b32.xlu0 %v781, 96
        %v2062 = vpop.permute.xlu0 %2061
        %2063 = vrot.lane.b32.xlu0 %v783, 96
        %v2064 = vpop.permute.xlu0 %2063
        %v2068 = vsel %vm794, %v1929, 0
        %v2071 = vsel %vm794, %v1930, 0
        %2073 = vmatprep.subr.bf16.mxu0 0
        %2074 = vmatpush1.bf16.msra.mxu0 0
        %2075 = vmatprep.subr.bf16.mxu0 0
        %2076 = vmatpush1.bf16.msra.mxu0 0
        %2077 = vmatprep.subr.bf16.mxu0 0
        %2078 = vmatpush1.bf16.msra.mxu0 0
        %2079 = vmatprep.subr.bf16.mxu0 0
        %2080 = vmatpush1.bf16.msra.mxu0 0
        %2081 = vmatprep.subr.bf16.mxu0 0
        %2082 = vmatpush1.bf16.msra.mxu0 0
        %2083 = vmatprep.subr.bf16.mxu0 0
        %2084 = vmatpush1.bf16.msra.mxu0 0
        %2085 = vmatprep.subr.bf16.mxu0 0
        %2086 = vmatpush1.bf16.msra.mxu0 %v2064
        %2087 = vmatprep.subr.bf16.mxu0 0
        %2088 = vmatpush1.bf16.msra.mxu0 %v2062
        %2089 = vmatprep.subr.bf16.mxu0 0
        %2090 = vmatpush2.bf16.msra.mxu0 0
        %2091 = vmatprep.subr.bf16.mxu0 0
        %2092 = vmatpush2.bf16.msra.mxu0 0
        %2093 = vmatprep.subr.bf16.mxu0 0
        %2094 = vmatpush2.bf16.msra.mxu0 0
        %2095 = vmatprep.subr.bf16.mxu0 0
        %2096 = vmatpush2.bf16.msra.mxu0 0
        %2097 = vmatprep.subr.bf16.mxu0 0
        %2098 = vmatpush2.bf16.msra.mxu0 0
        %2099 = vmatprep.subr.bf16.mxu0 0
        %2100 = vmatpush2.bf16.msra.mxu0 0
        %2101 = vmatprep.subr.bf16.mxu0 0
        %2102 = vmatpush2.bf16.msra.mxu0 0
        %2103 = vmatprep.subr.bf16.mxu0 0
        %2104 = vmatpush2.bf16.msra.mxu0 0
        %2105 = vmatprep.mubr.bf16.mxu0 0
        %2106 = vmatmul.mubr.bf16.gmra.mxu0 %v2068
        %v2107 = vpop.f32.mrf.mxu0
        %v2108 = vadd.f32 0.0, %v2107
        %v2109 = vpop.f32.mrf.mxu0
        %v2110 = vpop.f32.mrf.mxu0
        %v2111 = vadd.f32 0.0, %v2110
        %v2112 = vpop.f32.mrf.mxu0
        %2113 = vmatprep.mubr.bf16.mxu0 0
        %2114 = vmatmul.mubr.bf16.gmra.mxu0 %v2071
        %v2115 = vpop.f32.mrf.mxu0
        %v2116 = vadd.f32 0.0, %v2115
        %v2117 = vpop.f32.mrf.mxu0
        %v2118 = vpop.f32.mrf.mxu0
        %v2119 = vadd.f32 0.0, %v2118
        %v2120 = vpop.f32.mrf.mxu0
        %2121 = vdwg.mxu0
        %2124 = vrot.lane.b32.xlu0 %v785, 96
        %v2125 = vpop.permute.xlu0 %2124
        %2126 = vrot.lane.b32.xlu0 %v787, 96
        %v2127 = vpop.permute.xlu0 %2126
        %v2131 = vsel %vm794, %v1931, 0
        %v2134 = vsel %vm794, %v1932, 0
        %2136 = vmatprep.subr.bf16.mxu0 0
        %2137 = vmatpush1.bf16.msra.mxu0 0
        %2138 = vmatprep.subr.bf16.mxu0 0
        %2139 = vmatpush1.bf16.msra.mxu0 0
        %2140 = vmatprep.subr.bf16.mxu0 0
        %2141 = vmatpush1.bf16.msra.mxu0 0
        %2142 = vmatprep.subr.bf16.mxu0 0
        %2143 = vmatpush1.bf16.msra.mxu0 0
        %2144 = vmatprep.subr.bf16.mxu0 0
        %2145 = vmatpush1.bf16.msra.mxu0 0
        %2146 = vmatprep.subr.bf16.mxu0 0
        %2147 = vmatpush1.bf16.msra.mxu0 0
        %2148 = vmatprep.subr.bf16.mxu0 0
        %2149 = vmatpush1.bf16.msra.mxu0 %v2127
        %2150 = vmatprep.subr.bf16.mxu0 0
        %2151 = vmatpush1.bf16.msra.mxu0 %v2125
        %2152 = vmatprep.subr.bf16.mxu0 0
        %2153 = vmatpush2.bf16.msra.mxu0 0
        %2154 = vmatprep.subr.bf16.mxu0 0
        %2155 = vmatpush2.bf16.msra.mxu0 0
        %2156 = vmatprep.subr.bf16.mxu0 0
        %2157 = vmatpush2.bf16.msra.mxu0 0
        %2158 = vmatprep.subr.bf16.mxu0 0
        %2159 = vmatpush2.bf16.msra.mxu0 0
        %2160 = vmatprep.subr.bf16.mxu0 0
        %2161 = vmatpush2.bf16.msra.mxu0 0
        %2162 = vmatprep.subr.bf16.mxu0 0
        %2163 = vmatpush2.bf16.msra.mxu0 0
        %2164 = vmatprep.subr.bf16.mxu0 0
        %2165 = vmatpush2.bf16.msra.mxu0 0
        %2166 = vmatprep.subr.bf16.mxu0 0
        %2167 = vmatpush2.bf16.msra.mxu0 0
        %2168 = vmatprep.mubr.bf16.mxu0 0
        %2169 = vmatmul.mubr.bf16.gmra.mxu0 %v2131
        %v2170 = vpop.f32.mrf.mxu0
        %v2171 = vadd.f32 0.0, %v2170
        %v2172 = vpop.f32.mrf.mxu0
        %v2173 = vpop.f32.mrf.mxu0
        %v2174 = vadd.f32 0.0, %v2173
        %v2175 = vpop.f32.mrf.mxu0
        %2176 = vmatprep.mubr.bf16.mxu0 0
        %2177 = vmatmul.mubr.bf16.gmra.mxu0 %v2134
        %v2178 = vpop.f32.mrf.mxu0
        %v2179 = vadd.f32 0.0, %v2178
        %v2180 = vpop.f32.mrf.mxu0
        %v2181 = vpop.f32.mrf.mxu0
        %v2182 = vadd.f32 0.0, %v2181
        %v2183 = vpop.f32.mrf.mxu0
        %2184 = vdwg.mxu0
        %v2185 = vrcp.pop %v1879
        %v2186 = vrcp.pop %v1882
        %v2187 = vrcp.pop %v1885
        %v2188 = vrcp.pop %v1888
        %v2189 = vrcp.pop %v1891
        %v2190 = vrcp.pop %v1894
        %v2191 = vrcp.pop %v1897
        %v2192 = vrcp.pop %v1900
        %v2193 = vrcp.pop %v1903
        %v2194 = vrcp.pop %v1906
        %v2195 = vrcp.pop %v1909
        %v2196 = vrcp.pop %v1912
        %v2197 = vrcp.pop %v1915
        %v2198 = vrcp.pop %v1918
        %v2199 = vrcp.pop %v1921
        %v2200 = vrcp.pop %v1924
        %v2201 = vmul.f32 %v1982, %v2185
        %v2202 = vmul.f32 %v1985, %v2186
        %v2203 = vmul.f32 %v1990, %v2187
        %v2204 = vmul.f32 %v1993, %v2188
        %v2205 = vmul.f32 %v2045, %v2189
        %v2206 = vmul.f32 %v2048, %v2190
        %v2207 = vmul.f32 %v2053, %v2191
        %v2208 = vmul.f32 %v2056, %v2192
        %v2209 = vmul.f32 %v2108, %v2193
        %v2210 = vmul.f32 %v2111, %v2194
        %v2211 = vmul.f32 %v2116, %v2195
        %v2212 = vmul.f32 %v2119, %v2196
        %v2213 = vmul.f32 %v2171, %v2197
        %v2214 = vmul.f32 %v2174, %v2198
        %v2215 = vmul.f32 %v2179, %v2199
        %v2216 = vmul.f32 %v2182, %v2200
        %v2217 = vpack.c.bf16 %v2202, %v2201
        %v2218 = vpack.c.bf16 %v2204, %v2203
        %v2219 = vpack.c.bf16 %v2206, %v2205
        %v2220 = vpack.c.bf16 %v2208, %v2207
        %v2221 = vpack.c.bf16 %v2210, %v2209
        %v2222 = vpack.c.bf16 %v2212, %v2211
        %v2223 = vpack.c.bf16 %v2214, %v2213
        %v2224 = vpack.c.bf16 %v2216, %v2215
        %s2225 = scalar_lea.vmem %s2, 16
        %v2226 = vld [vmem:[%s2225] sm:$0xf]
        %v2227 = vld [vmem:[%s2225 + $0x4] sm:$0xf]
        %v2228 = vld [vmem:[%s2225 + $0x8] sm:$0xf]
        %v2229 = vld [vmem:[%s2225 + $0xc] sm:$0xf]
        %v2234 = vunpack.c.l.b16 %v2226
        %v2235 = vunpack.c.l.b16 %v2227
        %v2236 = vunpack.c.l.b16 %v2228
        %v2237 = vunpack.c.l.b16 %v2229
        %v2238 = vpack.c.b16 %v2235, %v2234
        %v2239 = vpack.c.b16 %v2237, %v2236
        %v2243 = vsel %vm794, %v2217, 0
        %v2246 = vsel %vm794, %v2218, 0
        %v2249 = vsel %vm794, %v2219, 0
        %v2252 = vsel %vm794, %v2220, 0
        %v2255 = vsel %vm794, %v2221, 0
        %v2258 = vsel %vm794, %v2222, 0
        %v2261 = vsel %vm794, %v2223, 0
        %v2264 = vsel %vm794, %v2224, 0
        %2266 = vmatprep.subr.bf16.mxu0 0
        %2267 = vmatpush1.bf16.msra.mxu0 0
        %2268 = vmatprep.subr.bf16.mxu0 0
        %2269 = vmatpush1.bf16.msra.mxu0 0
        %2270 = vmatprep.subr.bf16.mxu0 0
        %2271 = vmatpush1.bf16.msra.mxu0 0
        %2272 = vmatprep.subr.bf16.mxu0 0
        %2273 = vmatpush1.bf16.msra.mxu0 0
        %2274 = vmatprep.subr.bf16.mxu0 0
        %2275 = vmatpush1.bf16.msra.mxu0 0
        %2276 = vmatprep.subr.bf16.mxu0 0
        %2277 = vmatpush1.bf16.msra.mxu0 0
        %2278 = vmatprep.subr.bf16.mxu0 0
        %2279 = vmatpush1.bf16.msra.mxu0 %v2239
        %2280 = vmatprep.subr.bf16.mxu0 0
        %2281 = vmatpush1.bf16.msra.mxu0 %v2238
        %2282 = vmatprep.subr.bf16.mxu0 0
        %2283 = vmatpush2.bf16.msra.mxu0 0
        %2284 = vmatprep.subr.bf16.mxu0 0
        %2285 = vmatpush2.bf16.msra.mxu0 0
        %2286 = vmatprep.subr.bf16.mxu0 0
        %2287 = vmatpush2.bf16.msra.mxu0 0
        %2288 = vmatprep.subr.bf16.mxu0 0
        %2289 = vmatpush2.bf16.msra.mxu0 0
        %2290 = vmatprep.subr.bf16.mxu0 0
        %2291 = vmatpush2.bf16.msra.mxu0 0
        %2292 = vmatprep.subr.bf16.mxu0 0
        %2293 = vmatpush2.bf16.msra.mxu0 0
        %2294 = vmatprep.subr.bf16.mxu0 0
        %2295 = vmatpush2.bf16.msra.mxu0 0
        %2296 = vmatprep.subr.bf16.mxu0 0
        %2297 = vmatpush2.bf16.msra.mxu0 0
        %2298 = vmatprep.mubr.bf16.mxu0 0
        %2299 = vmatmul.mubr.bf16.gmra.mxu0 %v2243
        %v2300 = vpop.f32.mrf.mxu0
        %v2301 = vadd.f32 0.0, %v2300
        %v2302 = vpop.f32.mrf.mxu0
        %v2303 = vpop.f32.mrf.mxu0
        %v2304 = vadd.f32 0.0, %v2303
        %v2305 = vpop.f32.mrf.mxu0
        %2306 = vmatprep.mubr.bf16.mxu0 0
        %2307 = vmatmul.mubr.bf16.gmra.mxu0 %v2246
        %v2308 = vpop.f32.mrf.mxu0
        %v2309 = vadd.f32 0.0, %v2308
        %v2310 = vpop.f32.mrf.mxu0
        %v2311 = vpop.f32.mrf.mxu0
        %v2312 = vadd.f32 0.0, %v2311
        %v2313 = vpop.f32.mrf.mxu0
        %2314 = vmatprep.mubr.bf16.mxu0 0
        %2315 = vmatmul.mubr.bf16.gmra.mxu0 %v2249
        %v2316 = vpop.f32.mrf.mxu0
        %v2317 = vadd.f32 0.0, %v2316
        %v2318 = vpop.f32.mrf.mxu0
        %v2319 = vpop.f32.mrf.mxu0
        %v2320 = vadd.f32 0.0, %v2319
        %v2321 = vpop.f32.mrf.mxu0
        %2322 = vmatprep.mubr.bf16.mxu0 0
        %2323 = vmatmul.mubr.bf16.gmra.mxu0 %v2252
        %v2324 = vpop.f32.mrf.mxu0
        %v2325 = vadd.f32 0.0, %v2324
        %v2326 = vpop.f32.mrf.mxu0
        %v2327 = vpop.f32.mrf.mxu0
        %v2328 = vadd.f32 0.0, %v2327
        %v2329 = vpop.f32.mrf.mxu0
        %2330 = vmatprep.mubr.bf16.mxu0 0
        %2331 = vmatmul.mubr.bf16.gmra.mxu0 %v2255
        %v2332 = vpop.f32.mrf.mxu0
        %v2333 = vadd.f32 0.0, %v2332
        %v2334 = vpop.f32.mrf.mxu0
        %v2335 = vpop.f32.mrf.mxu0
        %v2336 = vadd.f32 0.0, %v2335
        %v2337 = vpop.f32.mrf.mxu0
        %2338 = vmatprep.mubr.bf16.mxu0 0
        %2339 = vmatmul.mubr.bf16.gmra.mxu0 %v2258
        %v2340 = vpop.f32.mrf.mxu0
        %v2341 = vadd.f32 0.0, %v2340
        %v2342 = vpop.f32.mrf.mxu0
        %v2343 = vpop.f32.mrf.mxu0
        %v2344 = vadd.f32 0.0, %v2343
        %v2345 = vpop.f32.mrf.mxu0
        %2346 = vmatprep.mubr.bf16.mxu0 0
        %2347 = vmatmul.mubr.bf16.gmra.mxu0 %v2261
        %v2348 = vpop.f32.mrf.mxu0
        %v2349 = vadd.f32 0.0, %v2348
        %v2350 = vpop.f32.mrf.mxu0
        %v2351 = vpop.f32.mrf.mxu0
        %v2352 = vadd.f32 0.0, %v2351
        %v2353 = vpop.f32.mrf.mxu0
        %2354 = vmatprep.mubr.bf16.mxu0 0
        %2355 = vmatmul.mubr.bf16.gmra.mxu0 %v2264
        %v2356 = vpop.f32.mrf.mxu0
        %v2357 = vadd.f32 0.0, %v2356
        %v2358 = vpop.f32.mrf.mxu0
        %v2359 = vpop.f32.mrf.mxu0
        %v2360 = vadd.f32 0.0, %v2359
        %v2361 = vpop.f32.mrf.mxu0
        %2362 = vdwg.mxu0
        %v2367 = vunpack.c.l.b16 %v1485
        %v2368 = vunpack.c.l.b16 %v1486
        %v2369 = vunpack.c.l.b16 %v1487
        %v2370 = vunpack.c.l.b16 %v1488
        %v2371 = vpack.c.b16 %v2368, %v2367
        %v2372 = vpack.c.b16 %v2370, %v2369
        %v2376 = vsel %vm794, %v1477, 0
        %v2379 = vsel %vm794, %v1478, 0
        %v2382 = vsel %vm794, %v1479, 0
        %v2385 = vsel %vm794, %v1480, 0
        %v2388 = vsel %vm794, %v1481, 0
        %v2391 = vsel %vm794, %v1482, 0
        %v2394 = vsel %vm794, %v1483, 0
        %v2397 = vsel %vm794, %v1484, 0
        %2399 = vmatprep.subr.bf16.mxu0 0
        %2400 = vmatpush1.bf16.msra.mxu0 0
        %2401 = vmatprep.subr.bf16.mxu0 0
        %2402 = vmatpush1.bf16.msra.mxu0 0
        %2403 = vmatprep.subr.bf16.mxu0 0
        %2404 = vmatpush1.bf16.msra.mxu0 0
        %2405 = vmatprep.subr.bf16.mxu0 0
        %2406 = vmatpush1.bf16.msra.mxu0 0
        %2407 = vmatprep.subr.bf16.mxu0 0
        %2408 = vmatpush1.bf16.msra.mxu0 0
        %2409 = vmatprep.subr.bf16.mxu0 0
        %2410 = vmatpush1.bf16.msra.mxu0 0
        %2411 = vmatprep.subr.bf16.mxu0 0
        %2412 = vmatpush1.bf16.msra.mxu0 %v2372
        %2413 = vmatprep.subr.bf16.mxu0 0
        %2414 = vmatpush1.bf16.msra.mxu0 %v2371
        %2415 = vmatprep.subr.bf16.mxu0 0
        %2416 = vmatpush2.bf16.msra.mxu0 0
        %2417 = vmatprep.subr.bf16.mxu0 0
        %2418 = vmatpush2.bf16.msra.mxu0 0
        %2419 = vmatprep.subr.bf16.mxu0 0
        %2420 = vmatpush2.bf16.msra.mxu0 0
        %2421 = vmatprep.subr.bf16.mxu0 0
        %2422 = vmatpush2.bf16.msra.mxu0 0
        %2423 = vmatprep.subr.bf16.mxu0 0
        %2424 = vmatpush2.bf16.msra.mxu0 0
        %2425 = vmatprep.subr.bf16.mxu0 0
        %2426 = vmatpush2.bf16.msra.mxu0 0
        %2427 = vmatprep.subr.bf16.mxu0 0
        %2428 = vmatpush2.bf16.msra.mxu0 0
        %2429 = vmatprep.subr.bf16.mxu0 0
        %2430 = vmatpush2.bf16.msra.mxu0 0
        %2431 = vmatprep.mubr.bf16.mxu0 0
        %2432 = vmatmul.mubr.bf16.gmra.mxu0 %v2376
        %v2433 = vpop.f32.mrf.mxu0
        %v2434 = vadd.f32 %v2301, %v2433
        %v2435 = vpop.f32.mrf.mxu0
        %v2436 = vpop.f32.mrf.mxu0
        %v2437 = vadd.f32 %v2304, %v2436
        %v2438 = vpop.f32.mrf.mxu0
        %2439 = vmatprep.mubr.bf16.mxu0 0
        %2440 = vmatmul.mubr.bf16.gmra.mxu0 %v2379
        %v2441 = vpop.f32.mrf.mxu0
        %v2442 = vadd.f32 %v2309, %v2441
        %v2443 = vpop.f32.mrf.mxu0
        %v2444 = vpop.f32.mrf.mxu0
        %v2445 = vadd.f32 %v2312, %v2444
        %v2446 = vpop.f32.mrf.mxu0
        %2447 = vmatprep.mubr.bf16.mxu0 0
        %2448 = vmatmul.mubr.bf16.gmra.mxu0 %v2382
        %v2449 = vpop.f32.mrf.mxu0
        %v2450 = vadd.f32 %v2317, %v2449
        %v2451 = vpop.f32.mrf.mxu0
        %v2452 = vpop.f32.mrf.mxu0
        %v2453 = vadd.f32 %v2320, %v2452
        %v2454 = vpop.f32.mrf.mxu0
        %2455 = vmatprep.mubr.bf16.mxu0 0
        %2456 = vmatmul.mubr.bf16.gmra.mxu0 %v2385
        %v2457 = vpop.f32.mrf.mxu0
        %v2458 = vadd.f32 %v2325, %v2457
        %v2459 = vpop.f32.mrf.mxu0
        %v2460 = vpop.f32.mrf.mxu0
        %v2461 = vadd.f32 %v2328, %v2460
        %v2462 = vpop.f32.mrf.mxu0
        %2463 = vmatprep.mubr.bf16.mxu0 0
        %2464 = vmatmul.mubr.bf16.gmra.mxu0 %v2388
        %v2465 = vpop.f32.mrf.mxu0
        %v2466 = vadd.f32 %v2333, %v2465
        %v2467 = vpop.f32.mrf.mxu0
        %v2468 = vpop.f32.mrf.mxu0
        %v2469 = vadd.f32 %v2336, %v2468
        %v2470 = vpop.f32.mrf.mxu0
        %2471 = vmatprep.mubr.bf16.mxu0 0
        %2472 = vmatmul.mubr.bf16.gmra.mxu0 %v2391
        %v2473 = vpop.f32.mrf.mxu0
        %v2474 = vadd.f32 %v2341, %v2473
        %v2475 = vpop.f32.mrf.mxu0
        %v2476 = vpop.f32.mrf.mxu0
        %v2477 = vadd.f32 %v2344, %v2476
        %v2478 = vpop.f32.mrf.mxu0
        %2479 = vmatprep.mubr.bf16.mxu0 0
        %2480 = vmatmul.mubr.bf16.gmra.mxu0 %v2394
        %v2481 = vpop.f32.mrf.mxu0
        %v2482 = vadd.f32 %v2349, %v2481
        %v2483 = vpop.f32.mrf.mxu0
        %v2484 = vpop.f32.mrf.mxu0
        %v2485 = vadd.f32 %v2352, %v2484
        %v2486 = vpop.f32.mrf.mxu0
        %2487 = vmatprep.mubr.bf16.mxu0 0
        %2488 = vmatmul.mubr.bf16.gmra.mxu0 %v2397
        %v2489 = vpop.f32.mrf.mxu0
        %v2490 = vadd.f32 %v2357, %v2489
        %v2491 = vpop.f32.mrf.mxu0
        %v2492 = vpop.f32.mrf.mxu0
        %v2493 = vadd.f32 %v2360, %v2492
        %v2494 = vpop.f32.mrf.mxu0
        %2495 = vdwg.mxu0
        %v2496 = vadd.f32 %v2434, %v305
        %v2497 = vadd.f32 %v2437, %v305
        %v2498 = vadd.f32 %v2442, %v305
        %v2499 = vadd.f32 %v2445, %v305
        %v2500 = vadd.f32 %v2450, %v305
        %v2501 = vadd.f32 %v2453, %v305
        %v2502 = vadd.f32 %v2458, %v305
        %v2503 = vadd.f32 %v2461, %v305
        %v2504 = vadd.f32 %v2466, %v305
        %v2505 = vadd.f32 %v2469, %v305
        %v2506 = vadd.f32 %v2474, %v305
        %v2507 = vadd.f32 %v2477, %v305
        %v2508 = vadd.f32 %v2482, %v305
        %v2509 = vadd.f32 %v2485, %v305
        %v2510 = vadd.f32 %v2490, %v305
        %v2511 = vadd.f32 %v2493, %v305
        %v2512 = vadd.f32 %v2496, %v310
        %v2513 = vadd.f32 %v2497, %v311
        %v2514 = vadd.f32 %v2498, %v312
        %v2515 = vadd.f32 %v2499, %v313
        %v2516 = vadd.f32 %v2500, %v314
        %v2517 = vadd.f32 %v2501, %v315
        %v2518 = vadd.f32 %v2502, %v316
        %v2519 = vadd.f32 %v2503, %v317
        %v2520 = vadd.f32 %v2504, %v318
        %v2521 = vadd.f32 %v2505, %v319
        %v2522 = vadd.f32 %v2506, %v320
        %v2523 = vadd.f32 %v2507, %v321
        %v2524 = vadd.f32 %v2508, %v322
        %v2525 = vadd.f32 %v2509, %v323
        %v2526 = vadd.f32 %v2510, %v324
        %v2527 = vadd.f32 %v2511, %v325
        %v2528 = vsel %vm326, %v2512, 0.0
        %2529 = vadd.xlane.f32.xlu0 %v2528
        %v2530 = vpop.xlane.xlu0 %2529
        %v2531 = vsel %vm326, %v2513, 0.0
        %2532 = vadd.xlane.f32.xlu0 %v2531
        %v2533 = vpop.xlane.xlu0 %2532
        %v2534 = vsel %vm326, %v2514, 0.0
        %2535 = vadd.xlane.f32.xlu0 %v2534
        %v2536 = vpop.xlane.xlu0 %2535
        %v2537 = vsel %vm326, %v2515, 0.0
        %2538 = vadd.xlane.f32.xlu0 %v2537
        %v2539 = vpop.xlane.xlu0 %2538
        %v2540 = vsel %vm326, %v2516, 0.0
        %2541 = vadd.xlane.f32.xlu0 %v2540
        %v2542 = vpop.xlane.xlu0 %2541
        %v2543 = vsel %vm326, %v2517, 0.0
        %2544 = vadd.xlane.f32.xlu0 %v2543
        %v2545 = vpop.xlane.xlu0 %2544
        %v2546 = vsel %vm326, %v2518, 0.0
        %2547 = vadd.xlane.f32.xlu0 %v2546
        %v2548 = vpop.xlane.xlu0 %2547
        %v2549 = vsel %vm326, %v2519, 0.0
        %2550 = vadd.xlane.f32.xlu0 %v2549
        %v2551 = vpop.xlane.xlu0 %2550
        %v2552 = vsel %vm326, %v2520, 0.0
        %2553 = vadd.xlane.f32.xlu0 %v2552
        %v2554 = vpop.xlane.xlu0 %2553
        %v2555 = vsel %vm326, %v2521, 0.0
        %2556 = vadd.xlane.f32.xlu0 %v2555
        %v2557 = vpop.xlane.xlu0 %2556
        %v2558 = vsel %vm326, %v2522, 0.0
        %2559 = vadd.xlane.f32.xlu0 %v2558
        %v2560 = vpop.xlane.xlu0 %2559
        %v2561 = vsel %vm326, %v2523, 0.0
        %2562 = vadd.xlane.f32.xlu0 %v2561
        %v2563 = vpop.xlane.xlu0 %2562
        %v2564 = vsel %vm326, %v2524, 0.0
        %2565 = vadd.xlane.f32.xlu0 %v2564
        %v2566 = vpop.xlane.xlu0 %2565
        %v2567 = vsel %vm326, %v2525, 0.0
        %2568 = vadd.xlane.f32.xlu0 %v2567
        %v2569 = vpop.xlane.xlu0 %2568
        %v2570 = vsel %vm326, %v2526, 0.0
        %2571 = vadd.xlane.f32.xlu0 %v2570
        %v2572 = vpop.xlane.xlu0 %2571
        %v2573 = vsel %vm326, %v2527, 0.0
        %2574 = vadd.xlane.f32.xlu0 %v2573
        %v2575 = vpop.xlane.xlu0 %2574
        %v2576 = vmul.f32 %v2530, %v375
        %v2577 = vmul.f32 %v2533, %v375
        %v2578 = vmul.f32 %v2536, %v375
        %v2579 = vmul.f32 %v2539, %v375
        %v2580 = vmul.f32 %v2542, %v375
        %v2581 = vmul.f32 %v2545, %v375
        %v2582 = vmul.f32 %v2548, %v375
        %v2583 = vmul.f32 %v2551, %v375
        %v2584 = vmul.f32 %v2554, %v375
        %v2585 = vmul.f32 %v2557, %v375
        %v2586 = vmul.f32 %v2560, %v375
        %v2587 = vmul.f32 %v2563, %v375
        %v2588 = vmul.f32 %v2566, %v375
        %v2589 = vmul.f32 %v2569, %v375
        %v2590 = vmul.f32 %v2572, %v375
        %v2591 = vmul.f32 %v2575, %v375
        %v2592 = vsub.f32 %v2512, %v2576
        %v2593 = vsub.f32 %v2513, %v2577
        %v2594 = vsub.f32 %v2514, %v2578
        %v2595 = vsub.f32 %v2515, %v2579
        %v2596 = vsub.f32 %v2516, %v2580
        %v2597 = vsub.f32 %v2517, %v2581
        %v2598 = vsub.f32 %v2518, %v2582
        %v2599 = vsub.f32 %v2519, %v2583
        %v2600 = vsub.f32 %v2520, %v2584
        %v2601 = vsub.f32 %v2521, %v2585
        %v2602 = vsub.f32 %v2522, %v2586
        %v2603 = vsub.f32 %v2523, %v2587
        %v2604 = vsub.f32 %v2524, %v2588
        %v2605 = vsub.f32 %v2525, %v2589
        %v2606 = vsub.f32 %v2526, %v2590
        %v2607 = vsub.f32 %v2527, %v2591
        %v2608 = vmul.f32 %v2592, %v2592
        %v2609 = vmul.f32 %v2593, %v2593
        %v2610 = vmul.f32 %v2594, %v2594
        %v2611 = vmul.f32 %v2595, %v2595
        %v2612 = vmul.f32 %v2596, %v2596
        %v2613 = vmul.f32 %v2597, %v2597
        %v2614 = vmul.f32 %v2598, %v2598
        %v2615 = vmul.f32 %v2599, %v2599
        %v2616 = vmul.f32 %v2600, %v2600
        %v2617 = vmul.f32 %v2601, %v2601
        %v2618 = vmul.f32 %v2602, %v2602
        %v2619 = vmul.f32 %v2603, %v2603
        %v2620 = vmul.f32 %v2604, %v2604
        %v2621 = vmul.f32 %v2605, %v2605
        %v2622 = vmul.f32 %v2606, %v2606
        %v2623 = vmul.f32 %v2607, %v2607
        %v2624 = vsel %vm326, %v2608, 0.0
        %2625 = vadd.xlane.f32.xlu0 %v2624
        %v2626 = vpop.xlane.xlu0 %2625
        %v2627 = vsel %vm326, %v2609, 0.0
        %2628 = vadd.xlane.f32.xlu0 %v2627
        %v2629 = vpop.xlane.xlu0 %2628
        %v2630 = vsel %vm326, %v2610, 0.0
        %2631 = vadd.xlane.f32.xlu0 %v2630
        %v2632 = vpop.xlane.xlu0 %2631
        %v2633 = vsel %vm326, %v2611, 0.0
        %2634 = vadd.xlane.f32.xlu0 %v2633
        %v2635 = vpop.xlane.xlu0 %2634
        %v2636 = vsel %vm326, %v2612, 0.0
        %2637 = vadd.xlane.f32.xlu0 %v2636
        %v2638 = vpop.xlane.xlu0 %2637
        %v2639 = vsel %vm326, %v2613, 0.0
        %2640 = vadd.xlane.f32.xlu0 %v2639
        %v2641 = vpop.xlane.xlu0 %2640
        %v2642 = vsel %vm326, %v2614, 0.0
        %2643 = vadd.xlane.f32.xlu0 %v2642
        %v2644 = vpop.xlane.xlu0 %2643
        %v2645 = vsel %vm326, %v2615, 0.0
        %2646 = vadd.xlane.f32.xlu0 %v2645
        %v2647 = vpop.xlane.xlu0 %2646
        %v2648 = vsel %vm326, %v2616, 0.0
        %2649 = vadd.xlane.f32.xlu0 %v2648
        %v2650 = vpop.xlane.xlu0 %2649
        %v2651 = vsel %vm326, %v2617, 0.0
        %2652 = vadd.xlane.f32.xlu0 %v2651
        %v2653 = vpop.xlane.xlu0 %2652
        %v2654 = vsel %vm326, %v2618, 0.0
        %2655 = vadd.xlane.f32.xlu0 %v2654
        %v2656 = vpop.xlane.xlu0 %2655
        %v2657 = vsel %vm326, %v2619, 0.0
        %2658 = vadd.xlane.f32.xlu0 %v2657
        %v2659 = vpop.xlane.xlu0 %2658
        %v2660 = vsel %vm326, %v2620, 0.0
        %2661 = vadd.xlane.f32.xlu0 %v2660
        %v2662 = vpop.xlane.xlu0 %2661
        %v2663 = vsel %vm326, %v2621, 0.0
        %2664 = vadd.xlane.f32.xlu0 %v2663
        %v2665 = vpop.xlane.xlu0 %2664
        %v2666 = vsel %vm326, %v2622, 0.0
        %2667 = vadd.xlane.f32.xlu0 %v2666
        %v2668 = vpop.xlane.xlu0 %2667
        %v2669 = vsel %vm326, %v2623, 0.0
        %2670 = vadd.xlane.f32.xlu0 %v2669
        %v2671 = vpop.xlane.xlu0 %2670
        %v2672 = vmul.f32 %v2626, %v375
        %v2673 = vmul.f32 %v2629, %v375
        %v2674 = vmul.f32 %v2632, %v375
        %v2675 = vmul.f32 %v2635, %v375
        %v2676 = vmul.f32 %v2638, %v375
        %v2677 = vmul.f32 %v2641, %v375
        %v2678 = vmul.f32 %v2644, %v375
        %v2679 = vmul.f32 %v2647, %v375
        %v2680 = vmul.f32 %v2650, %v375
        %v2681 = vmul.f32 %v2653, %v375
        %v2682 = vmul.f32 %v2656, %v375
        %v2683 = vmul.f32 %v2659, %v375
        %v2684 = vmul.f32 %v2662, %v375
        %v2685 = vmul.f32 %v2665, %v375
        %v2686 = vmul.f32 %v2668, %v375
        %v2687 = vmul.f32 %v2671, %v375
        %v2688 = vadd.f32 %v2672, 1e-06
        %v2689 = vadd.f32 %v2673, 1e-06
        %v2690 = vadd.f32 %v2674, 1e-06
        %v2691 = vadd.f32 %v2675, 1e-06
        %v2692 = vadd.f32 %v2676, 1e-06
        %v2693 = vadd.f32 %v2677, 1e-06
        %v2694 = vadd.f32 %v2678, 1e-06
        %v2695 = vadd.f32 %v2679, 1e-06
        %v2696 = vadd.f32 %v2680, 1e-06
        %v2697 = vadd.f32 %v2681, 1e-06
        %v2698 = vadd.f32 %v2682, 1e-06
        %v2699 = vadd.f32 %v2683, 1e-06
        %v2700 = vadd.f32 %v2684, 1e-06
        %v2701 = vadd.f32 %v2685, 1e-06
        %v2702 = vadd.f32 %v2686, 1e-06
        %v2703 = vadd.f32 %v2687, 1e-06
        %v2704 = vrsqrt.pop %v2688
        %v2705 = vrsqrt.pop %v2689
        %v2706 = vrsqrt.pop %v2690
        %v2707 = vrsqrt.pop %v2691
        %v2708 = vrsqrt.pop %v2692
        %v2709 = vrsqrt.pop %v2693
        %v2710 = vrsqrt.pop %v2694
        %v2711 = vrsqrt.pop %v2695
        %v2712 = vrsqrt.pop %v2696
        %v2713 = vrsqrt.pop %v2697
        %v2714 = vrsqrt.pop %v2698
        %v2715 = vrsqrt.pop %v2699
        %v2716 = vrsqrt.pop %v2700
        %v2717 = vrsqrt.pop %v2701
        %v2718 = vrsqrt.pop %v2702
        %v2719 = vrsqrt.pop %v2703
        %v2720 = vmul.f32 %v2592, %v2704
        %v2721 = vmul.f32 %v2593, %v2705
        %v2722 = vmul.f32 %v2594, %v2706
        %v2723 = vmul.f32 %v2595, %v2707
        %v2724 = vmul.f32 %v2596, %v2708
        %v2725 = vmul.f32 %v2597, %v2709
        %v2726 = vmul.f32 %v2598, %v2710
        %v2727 = vmul.f32 %v2599, %v2711
        %v2728 = vmul.f32 %v2600, %v2712
        %v2729 = vmul.f32 %v2601, %v2713
        %v2730 = vmul.f32 %v2602, %v2714
        %v2731 = vmul.f32 %v2603, %v2715
        %v2732 = vmul.f32 %v2604, %v2716
        %v2733 = vmul.f32 %v2605, %v2717
        %v2734 = vmul.f32 %v2606, %v2718
        %v2735 = vmul.f32 %v2607, %v2719
        %v2736 = vmul.f32 %v2720, %v306
        %v2737 = vmul.f32 %v2721, %v306
        %v2738 = vmul.f32 %v2722, %v306
        %v2739 = vmul.f32 %v2723, %v306
        %v2740 = vmul.f32 %v2724, %v306
        %v2741 = vmul.f32 %v2725, %v306
        %v2742 = vmul.f32 %v2726, %v306
        %v2743 = vmul.f32 %v2727, %v306
        %v2744 = vmul.f32 %v2728, %v306
        %v2745 = vmul.f32 %v2729, %v306
        %v2746 = vmul.f32 %v2730, %v306
        %v2747 = vmul.f32 %v2731, %v306
        %v2748 = vmul.f32 %v2732, %v306
        %v2749 = vmul.f32 %v2733, %v306
        %v2750 = vmul.f32 %v2734, %v306
        %v2751 = vmul.f32 %v2735, %v306
        %v2752 = vadd.f32 %v2736, %v307
        %v2753 = vadd.f32 %v2737, %v307
        %v2754 = vadd.f32 %v2738, %v307
        %v2755 = vadd.f32 %v2739, %v307
        %v2756 = vadd.f32 %v2740, %v307
        %v2757 = vadd.f32 %v2741, %v307
        %v2758 = vadd.f32 %v2742, %v307
        %v2759 = vadd.f32 %v2743, %v307
        %v2760 = vadd.f32 %v2744, %v307
        %v2761 = vadd.f32 %v2745, %v307
        %v2762 = vadd.f32 %v2746, %v307
        %v2763 = vadd.f32 %v2747, %v307
        %v2764 = vadd.f32 %v2748, %v307
        %v2765 = vadd.f32 %v2749, %v307
        %v2766 = vadd.f32 %v2750, %v307
        %v2767 = vadd.f32 %v2751, %v307
        %v2768 = vpack.c.bf16 %v2753, %v2752
        %v2769 = vpack.c.bf16 %v2755, %v2754
        %v2770 = vpack.c.bf16 %v2757, %v2756
        %v2771 = vpack.c.bf16 %v2759, %v2758
        %v2772 = vpack.c.bf16 %v2761, %v2760
        %v2773 = vpack.c.bf16 %v2763, %v2762
        %v2774 = vpack.c.bf16 %v2765, %v2764
        %v2775 = vpack.c.bf16 %v2767, %v2766
        %v2776 = vld [vmem:[#allocation5] sm:$0xf]
        %v2777 = vld [vmem:[#allocation5 + $0x4] sm:$0xf]
        %v2778 = vld [vmem:[#allocation5 + $0x8] sm:$0xf]
        %v2779 = vld [vmem:[#allocation5 + $0xc] sm:$0xf]
        %v2780 = vld [vmem:[#allocation5 + $0x10] sm:$0xf]
        %v2781 = vld [vmem:[#allocation5 + $0x14] sm:$0xf]
        %v2782 = vld [vmem:[#allocation5 + $0x18] sm:$0xf]
        %v2783 = vld [vmem:[#allocation5 + $0x1c] sm:$0xf]
        %v2792 = vunpack.c.l.b16 %v2776
        %v2793 = vunpack.c.l.b16 %v2777
        %v2794 = vunpack.c.l.b16 %v2778
        %v2795 = vunpack.c.l.b16 %v2779
        %v2796 = vunpack.c.l.b16 %v2780
        %v2797 = vunpack.c.l.b16 %v2781
        %v2798 = vunpack.c.l.b16 %v2782
        %v2799 = vunpack.c.l.b16 %v2783
        %v2800 = vpack.c.b16 %v2793, %v2792
        %v2801 = vpack.c.b16 %v2795, %v2794
        %v2802 = vpack.c.b16 %v2797, %v2796
        %v2803 = vpack.c.b16 %v2799, %v2798
        %v2809 = vsel %vm326, %v2768, 0
        %v2812 = vsel %vm326, %v2769, 0
        %v2815 = vsel %vm326, %v2770, 0
        %v2818 = vsel %vm326, %v2771, 0
        %v2821 = vsel %vm326, %v2772, 0
        %v2824 = vsel %vm326, %v2773, 0
        %v2827 = vsel %vm326, %v2774, 0
        %v2830 = vsel %vm326, %v2775, 0
        %2832 = vmatprep.subr.bf16.mxu0 0
        %2833 = vmatpush1.bf16.msra.mxu0 0
        %2834 = vmatprep.subr.bf16.mxu0 0
        %2835 = vmatpush1.bf16.msra.mxu0 0
        %2836 = vmatprep.subr.bf16.mxu0 0
        %2837 = vmatpush1.bf16.msra.mxu0 0
        %2838 = vmatprep.subr.bf16.mxu0 0
        %2839 = vmatpush1.bf16.msra.mxu0 0
        %2840 = vmatprep.subr.bf16.mxu0 0
        %2841 = vmatpush1.bf16.msra.mxu0 %v2803
        %2842 = vmatprep.subr.bf16.mxu0 0
        %2843 = vmatpush1.bf16.msra.mxu0 %v2802
        %2844 = vmatprep.subr.bf16.mxu0 0
        %2845 = vmatpush1.bf16.msra.mxu0 %v2801
        %2846 = vmatprep.subr.bf16.mxu0 0
        %2847 = vmatpush1.bf16.msra.mxu0 %v2800
        %2848 = vmatprep.subr.bf16.mxu0 0
        %2849 = vmatpush2.bf16.msra.mxu0 0
        %2850 = vmatprep.subr.bf16.mxu0 0
        %2851 = vmatpush2.bf16.msra.mxu0 0
        %2852 = vmatprep.subr.bf16.mxu0 0
        %2853 = vmatpush2.bf16.msra.mxu0 0
        %2854 = vmatprep.subr.bf16.mxu0 0
        %2855 = vmatpush2.bf16.msra.mxu0 0
        %2856 = vmatprep.subr.bf16.mxu0 0
        %2857 = vmatpush2.bf16.msra.mxu0 0
        %2858 = vmatprep.subr.bf16.mxu0 0
        %2859 = vmatpush2.bf16.msra.mxu0 0
        %2860 = vmatprep.subr.bf16.mxu0 0
        %2861 = vmatpush2.bf16.msra.mxu0 0
        %2862 = vmatprep.subr.bf16.mxu0 0
        %2863 = vmatpush2.bf16.msra.mxu0 0
        %2864 = vmatprep.mubr.bf16.mxu0 0
        %2865 = vmatmul.mubr.bf16.gmra.mxu0 %v2809
        %v2866 = vpop.f32.mrf.mxu0
        %v2867 = vadd.f32 %v308, %v2866
        %v2868 = vpop.f32.mrf.mxu0
        %v2869 = vpop.f32.mrf.mxu0
        %v2870 = vadd.f32 %v308, %v2869
        %v2871 = vpop.f32.mrf.mxu0
        %2872 = vmatprep.mubr.bf16.mxu0 0
        %2873 = vmatmul.mubr.bf16.gmra.mxu0 %v2812
        %v2874 = vpop.f32.mrf.mxu0
        %v2875 = vadd.f32 %v308, %v2874
        %v2876 = vpop.f32.mrf.mxu0
        %v2877 = vpop.f32.mrf.mxu0
        %v2878 = vadd.f32 %v308, %v2877
        %v2879 = vpop.f32.mrf.mxu0
        %2880 = vmatprep.mubr.bf16.mxu0 0
        %2881 = vmatmul.mubr.bf16.gmra.mxu0 %v2815
        %v2882 = vpop.f32.mrf.mxu0
        %v2883 = vadd.f32 %v308, %v2882
        %v2884 = vpop.f32.mrf.mxu0
        %v2885 = vpop.f32.mrf.mxu0
        %v2886 = vadd.f32 %v308, %v2885
        %v2887 = vpop.f32.mrf.mxu0
        %2888 = vmatprep.mubr.bf16.mxu0 0
        %2889 = vmatmul.mubr.bf16.gmra.mxu0 %v2818
        %v2890 = vpop.f32.mrf.mxu0
        %v2891 = vadd.f32 %v308, %v2890
        %v2892 = vpop.f32.mrf.mxu0
        %v2893 = vpop.f32.mrf.mxu0
        %v2894 = vadd.f32 %v308, %v2893
        %v2895 = vpop.f32.mrf.mxu0
        %2896 = vmatprep.mubr.bf16.mxu0 0
        %2897 = vmatmul.mubr.bf16.gmra.mxu0 %v2821
        %v2898 = vpop.f32.mrf.mxu0
        %v2899 = vadd.f32 %v308, %v2898
        %v2900 = vpop.f32.mrf.mxu0
        %v2901 = vpop.f32.mrf.mxu0
        %v2902 = vadd.f32 %v308, %v2901
        %v2903 = vpop.f32.mrf.mxu0
        %2904 = vmatprep.mubr.bf16.mxu0 0
        %2905 = vmatmul.mubr.bf16.gmra.mxu0 %v2824
        %v2906 = vpop.f32.mrf.mxu0
        %v2907 = vadd.f32 %v308, %v2906
        %v2908 = vpop.f32.mrf.mxu0
        %v2909 = vpop.f32.mrf.mxu0
        %v2910 = vadd.f32 %v308, %v2909
        %v2911 = vpop.f32.mrf.mxu0
        %2912 = vmatprep.mubr.bf16.mxu0 0
        %2913 = vmatmul.mubr.bf16.gmra.mxu0 %v2827
        %v2914 = vpop.f32.mrf.mxu0
        %v2915 = vadd.f32 %v308, %v2914
        %v2916 = vpop.f32.mrf.mxu0
        %v2917 = vpop.f32.mrf.mxu0
        %v2918 = vadd.f32 %v308, %v2917
        %v2919 = vpop.f32.mrf.mxu0
        %2920 = vmatprep.mubr.bf16.mxu0 0
        %2921 = vmatmul.mubr.bf16.gmra.mxu0 %v2830
        %v2922 = vpop.f32.mrf.mxu0
        %v2923 = vadd.f32 %v308, %v2922
        %v2924 = vpop.f32.mrf.mxu0
        %v2925 = vpop.f32.mrf.mxu0
        %v2926 = vadd.f32 %v308, %v2925
        %v2927 = vpop.f32.mrf.mxu0
        %2928 = vdwg.mxu0
        %v2929 = vmul.f32 %v2867, 0.5
        %v2930 = vmul.f32 %v2870, 0.5
        %v2931 = vmul.f32 %v2875, 0.5
        %v2932 = vmul.f32 %v2878, 0.5
        %v2933 = vmul.f32 %v2883, 0.5
        %v2934 = vmul.f32 %v2886, 0.5
        %v2935 = vmul.f32 %v2891, 0.5
        %v2936 = vmul.f32 %v2894, 0.5
        %v2937 = vmul.f32 %v2899, 0.5
        %v2938 = vmul.f32 %v2902, 0.5
        %v2939 = vmul.f32 %v2907, 0.5
        %v2940 = vmul.f32 %v2910, 0.5
        %v2941 = vmul.f32 %v2915, 0.5
        %v2942 = vmul.f32 %v2918, 0.5
        %v2943 = vmul.f32 %v2923, 0.5
        %v2944 = vmul.f32 %v2926, 0.5
        %v2945 = vmul.f32 %v2867, 0.044715
        %v2946 = vmul.f32 %v2870, 0.044715
        %v2947 = vmul.f32 %v2875, 0.044715
        %v2948 = vmul.f32 %v2878, 0.044715
        %v2949 = vmul.f32 %v2883, 0.044715
        %v2950 = vmul.f32 %v2886, 0.044715
        %v2951 = vmul.f32 %v2891, 0.044715
        %v2952 = vmul.f32 %v2894, 0.044715
        %v2953 = vmul.f32 %v2899, 0.044715
        %v2954 = vmul.f32 %v2902, 0.044715
        %v2955 = vmul.f32 %v2907, 0.044715
        %v2956 = vmul.f32 %v2910, 0.044715
        %v2957 = vmul.f32 %v2915, 0.044715
        %v2958 = vmul.f32 %v2918, 0.044715
        %v2959 = vmul.f32 %v2923, 0.044715
        %v2960 = vmul.f32 %v2926, 0.044715
        %v2961 = vmul.f32 %v2945, %v2867
        %v2962 = vmul.f32 %v2946, %v2870
        %v2963 = vmul.f32 %v2947, %v2875
        %v2964 = vmul.f32 %v2948, %v2878
        %v2965 = vmul.f32 %v2949, %v2883
        %v2966 = vmul.f32 %v2950, %v2886
        %v2967 = vmul.f32 %v2951, %v2891
        %v2968 = vmul.f32 %v2952, %v2894
        %v2969 = vmul.f32 %v2953, %v2899
        %v2970 = vmul.f32 %v2954, %v2902
        %v2971 = vmul.f32 %v2955, %v2907
        %v2972 = vmul.f32 %v2956, %v2910
        %v2973 = vmul.f32 %v2957, %v2915
        %v2974 = vmul.f32 %v2958, %v2918
        %v2975 = vmul.f32 %v2959, %v2923
        %v2976 = vmul.f32 %v2960, %v2926
        %v2977 = vmul.f32 %v2961, %v2867
        %v2978 = vmul.f32 %v2962, %v2870
        %v2979 = vmul.f32 %v2963, %v2875
        %v2980 = vmul.f32 %v2964, %v2878
        %v2981 = vmul.f32 %v2965, %v2883
        %v2982 = vmul.f32 %v2966, %v2886
        %v2983 = vmul.f32 %v2967, %v2891
        %v2984 = vmul.f32 %v2968, %v2894
        %v2985 = vmul.f32 %v2969, %v2899
        %v2986 = vmul.f32 %v2970, %v2902
        %v2987 = vmul.f32 %v2971, %v2907
        %v2988 = vmul.f32 %v2972, %v2910
        %v2989 = vmul.f32 %v2973, %v2915
        %v2990 = vmul.f32 %v2974, %v2918
        %v2991 = vmul.f32 %v2975, %v2923
        %v2992 = vmul.f32 %v2976, %v2926
        %v2993 = vadd.f32 %v2867, %v2977
        %v2994 = vadd.f32 %v2870, %v2978
        %v2995 = vadd.f32 %v2875, %v2979
        %v2996 = vadd.f32 %v2878, %v2980
        %v2997 = vadd.f32 %v2883, %v2981
        %v2998 = vadd.f32 %v2886, %v2982
        %v2999 = vadd.f32 %v2891, %v2983
        %v3000 = vadd.f32 %v2894, %v2984
        %v3001 = vadd.f32 %v2899, %v2985
        %v3002 = vadd.f32 %v2902, %v2986
        %v3003 = vadd.f32 %v2907, %v2987
        %v3004 = vadd.f32 %v2910, %v2988
        %v3005 = vadd.f32 %v2915, %v2989
        %v3006 = vadd.f32 %v2918, %v2990
        %v3007 = vadd.f32 %v2923, %v2991
        %v3008 = vadd.f32 %v2926, %v2992
        %v3009 = vmul.f32 %v2993, 0.7978846
        %v3010 = vmul.f32 %v2994, 0.7978846
        %v3011 = vmul.f32 %v2995, 0.7978846
        %v3012 = vmul.f32 %v2996, 0.7978846
        %v3013 = vmul.f32 %v2997, 0.7978846
        %v3014 = vmul.f32 %v2998, 0.7978846
        %v3015 = vmul.f32 %v2999, 0.7978846
        %v3016 = vmul.f32 %v3000, 0.7978846
        %v3017 = vmul.f32 %v3001, 0.7978846
        %v3018 = vmul.f32 %v3002, 0.7978846
        %v3019 = vmul.f32 %v3003, 0.7978846
        %v3020 = vmul.f32 %v3004, 0.7978846
        %v3021 = vmul.f32 %v3005, 0.7978846
        %v3022 = vmul.f32 %v3006, 0.7978846
        %v3023 = vmul.f32 %v3007, 0.7978846
        %v3024 = vmul.f32 %v3008, 0.7978846
        %v3025 = vtanh.pop %v3009
        %v3026 = vtanh.pop %v3010
        %v3027 = vtanh.pop %v3011
        %v3028 = vtanh.pop %v3012
        %v3029 = vtanh.pop %v3013
        %v3030 = vtanh.pop %v3014
        %v3031 = vtanh.pop %v3015
        %v3032 = vtanh.pop %v3016
        %v3033 = vtanh.pop %v3017
        %v3034 = vtanh.pop %v3018
        %v3035 = vtanh.pop %v3019
        %v3036 = vtanh.pop %v3020
        %v3037 = vtanh.pop %v3021
        %v3038 = vtanh.pop %v3022
        %v3039 = vtanh.pop %v3023
        %v3040 = vtanh.pop %v3024
        %v3041 = vadd.f32 %v3025, 1.0
        %v3042 = vadd.f32 %v3026, 1.0
        %v3043 = vadd.f32 %v3027, 1.0
        %v3044 = vadd.f32 %v3028, 1.0
        %v3045 = vadd.f32 %v3029, 1.0
        %v3046 = vadd.f32 %v3030, 1.0
        %v3047 = vadd.f32 %v3031, 1.0
        %v3048 = vadd.f32 %v3032, 1.0
        %v3049 = vadd.f32 %v3033, 1.0
        %v3050 = vadd.f32 %v3034, 1.0
        %v3051 = vadd.f32 %v3035, 1.0
        %v3052 = vadd.f32 %v3036, 1.0
        %v3053 = vadd.f32 %v3037, 1.0
        %v3054 = vadd.f32 %v3038, 1.0
        %v3055 = vadd.f32 %v3039, 1.0
        %v3056 = vadd.f32 %v3040, 1.0
        %v3057 = vmul.f32 %v2929, %v3041
        %v3058 = vmul.f32 %v2930, %v3042
        %v3059 = vmul.f32 %v2931, %v3043
        %v3060 = vmul.f32 %v2932, %v3044
        %v3061 = vmul.f32 %v2933, %v3045
        %v3062 = vmul.f32 %v2934, %v3046
        %v3063 = vmul.f32 %v2935, %v3047
        %v3064 = vmul.f32 %v2936, %v3048
        %v3065 = vmul.f32 %v2937, %v3049
        %v3066 = vmul.f32 %v2938, %v3050
        %v3067 = vmul.f32 %v2939, %v3051
        %v3068 = vmul.f32 %v2940, %v3052
        %v3069 = vmul.f32 %v2941, %v3053
        %v3070 = vmul.f32 %v2942, %v3054
        %v3071 = vmul.f32 %v2943, %v3055
        %v3072 = vmul.f32 %v2944, %v3056
        %v3073 = vpack.c.bf16 %v3058, %v3057
        %v3074 = vpack.c.bf16 %v3060, %v3059
        %v3075 = vpack.c.bf16 %v3062, %v3061
        %v3076 = vpack.c.bf16 %v3064, %v3063
        %v3077 = vpack.c.bf16 %v3066, %v3065
        %v3078 = vpack.c.bf16 %v3068, %v3067
        %v3079 = vpack.c.bf16 %v3070, %v3069
        %v3080 = vpack.c.bf16 %v3072, %v3071
        %v3081 = vld [vmem:[%s4] sm:$0xf]
        %v3082 = vld [vmem:[%s4 + $0x4] sm:$0xf]
        %v3083 = vld [vmem:[%s4 + $0x8] sm:$0xf]
        %v3084 = vld [vmem:[%s4 + $0xc] sm:$0xf]
        %v3085 = vld [vmem:[%s4 + $0x10] sm:$0xf]
        %v3086 = vld [vmem:[%s4 + $0x14] sm:$0xf]
        %v3087 = vld [vmem:[%s4 + $0x18] sm:$0xf]
        %v3088 = vld [vmem:[%s4 + $0x1c] sm:$0xf]
        %v3089 = vld [vmem:[%s4 + $0x20] sm:$0xf]
        %v3090 = vld [vmem:[%s4 + $0x24] sm:$0xf]
        %v3091 = vld [vmem:[%s4 + $0x28] sm:$0xf]
        %v3092 = vld [vmem:[%s4 + $0x2c] sm:$0xf]
        %v3093 = vld [vmem:[%s4 + $0x30] sm:$0xf]
        %v3094 = vld [vmem:[%s4 + $0x34] sm:$0xf]
        %v3095 = vld [vmem:[%s4 + $0x38] sm:$0xf]
        %v3096 = vld [vmem:[%s4 + $0x3c] sm:$0xf]
        %v3113 = vunpack.c.l.b16 %v3081
        %v3114 = vunpack.c.l.b16 %v3082
        %v3115 = vunpack.c.l.b16 %v3083
        %v3116 = vunpack.c.l.b16 %v3084
        %v3117 = vunpack.c.l.b16 %v3085
        %v3118 = vunpack.c.l.b16 %v3086
        %v3119 = vunpack.c.l.b16 %v3087
        %v3120 = vunpack.c.l.b16 %v3088
        %v3121 = vunpack.c.l.b16 %v3089
        %v3122 = vunpack.c.l.b16 %v3090
        %v3123 = vunpack.c.l.b16 %v3091
        %v3124 = vunpack.c.l.b16 %v3092
        %v3125 = vunpack.c.l.b16 %v3093
        %v3126 = vunpack.c.l.b16 %v3094
        %v3127 = vunpack.c.l.b16 %v3095
        %v3128 = vunpack.c.l.b16 %v3096
        %v3129 = vpack.c.b16 %v3114, %v3113
        %v3130 = vpack.c.b16 %v3116, %v3115
        %v3131 = vpack.c.b16 %v3118, %v3117
        %v3132 = vpack.c.b16 %v3120, %v3119
        %v3133 = vpack.c.b16 %v3122, %v3121
        %v3134 = vpack.c.b16 %v3124, %v3123
        %v3135 = vpack.c.b16 %v3126, %v3125
        %v3136 = vpack.c.b16 %v3128, %v3127
        %3145 = vmatprep.subr.bf16.mxu0 0
        %3146 = vmatpush1.bf16.msra.mxu0 %v3136
        %3147 = vmatprep.subr.bf16.mxu0 0
        %3148 = vmatpush1.bf16.msra.mxu0 %v3135
        %3149 = vmatprep.subr.bf16.mxu0 0
        %3150 = vmatpush1.bf16.msra.mxu0 %v3134
        %3151 = vmatprep.subr.bf16.mxu0 0
        %3152 = vmatpush1.bf16.msra.mxu0 %v3133
        %3153 = vmatprep.subr.bf16.mxu0 0
        %3154 = vmatpush1.bf16.msra.mxu0 %v3132
        %3155 = vmatprep.subr.bf16.mxu0 0
        %3156 = vmatpush1.bf16.msra.mxu0 %v3131
        %3157 = vmatprep.subr.bf16.mxu0 0
        %3158 = vmatpush1.bf16.msra.mxu0 %v3130
        %3159 = vmatprep.subr.bf16.mxu0 0
        %3160 = vmatpush1.bf16.msra.mxu0 %v3129
        %3161 = vmatprep.subr.bf16.mxu0 0
        %3162 = vmatpush2.bf16.msra.mxu0 0
        %3163 = vmatprep.subr.bf16.mxu0 0
        %3164 = vmatpush2.bf16.msra.mxu0 0
        %3165 = vmatprep.subr.bf16.mxu0 0
        %3166 = vmatpush2.bf16.msra.mxu0 0
        %3167 = vmatprep.subr.bf16.mxu0 0
        %3168 = vmatpush2.bf16.msra.mxu0 0
        %3169 = vmatprep.subr.bf16.mxu0 0
        %3170 = vmatpush2.bf16.msra.mxu0 0
        %3171 = vmatprep.subr.bf16.mxu0 0
        %3172 = vmatpush2.bf16.msra.mxu0 0
        %3173 = vmatprep.subr.bf16.mxu0 0
        %3174 = vmatpush2.bf16.msra.mxu0 0
        %3175 = vmatprep.subr.bf16.mxu0 0
        %3176 = vmatpush2.bf16.msra.mxu0 0
        %3177 = vmatprep.mubr.bf16.mxu0 0
        %3178 = vmatmul.mubr.bf16.gmra.mxu0 %v3073
        %v3179 = vpop.f32.mrf.mxu0
        %v3180 = vadd.f32 %v309, %v3179
        %v3181 = vpop.f32.mrf.mxu0
        %v3182 = vpop.f32.mrf.mxu0
        %v3183 = vadd.f32 %v309, %v3182
        %v3184 = vpop.f32.mrf.mxu0
        %3185 = vmatprep.mubr.bf16.mxu0 0
        %3186 = vmatmul.mubr.bf16.gmra.mxu0 %v3074
        %v3187 = vpop.f32.mrf.mxu0
        %v3188 = vadd.f32 %v309, %v3187
        %v3189 = vpop.f32.mrf.mxu0
        %v3190 = vpop.f32.mrf.mxu0
        %v3191 = vadd.f32 %v309, %v3190
        %v3192 = vpop.f32.mrf.mxu0
        %3193 = vmatprep.mubr.bf16.mxu0 0
        %3194 = vmatmul.mubr.bf16.gmra.mxu0 %v3075
        %v3195 = vpop.f32.mrf.mxu0
        %v3196 = vadd.f32 %v309, %v3195
        %v3197 = vpop.f32.mrf.mxu0
        %v3198 = vpop.f32.mrf.mxu0
        %v3199 = vadd.f32 %v309, %v3198
        %v3200 = vpop.f32.mrf.mxu0
        %3201 = vmatprep.mubr.bf16.mxu0 0
        %3202 = vmatmul.mubr.bf16.gmra.mxu0 %v3076
        %v3203 = vpop.f32.mrf.mxu0
        %v3204 = vadd.f32 %v309, %v3203
        %v3205 = vpop.f32.mrf.mxu0
        %v3206 = vpop.f32.mrf.mxu0
        %v3207 = vadd.f32 %v309, %v3206
        %v3208 = vpop.f32.mrf.mxu0
        %3209 = vmatprep.mubr.bf16.mxu0 0
        %3210 = vmatmul.mubr.bf16.gmra.mxu0 %v3077
        %v3211 = vpop.f32.mrf.mxu0
        %v3212 = vadd.f32 %v309, %v3211
        %v3213 = vpop.f32.mrf.mxu0
        %v3214 = vpop.f32.mrf.mxu0
        %v3215 = vadd.f32 %v309, %v3214
        %v3216 = vpop.f32.mrf.mxu0
        %3217 = vmatprep.mubr.bf16.mxu0 0
        %3218 = vmatmul.mubr.bf16.gmra.mxu0 %v3078
        %v3219 = vpop.f32.mrf.mxu0
        %v3220 = vadd.f32 %v309, %v3219
        %v3221 = vpop.f32.mrf.mxu0
        %v3222 = vpop.f32.mrf.mxu0
        %v3223 = vadd.f32 %v309, %v3222
        %v3224 = vpop.f32.mrf.mxu0
        %3225 = vmatprep.mubr.bf16.mxu0 0
        %3226 = vmatmul.mubr.bf16.gmra.mxu0 %v3079
        %v3227 = vpop.f32.mrf.mxu0
        %v3228 = vadd.f32 %v309, %v3227
        %v3229 = vpop.f32.mrf.mxu0
        %v3230 = vpop.f32.mrf.mxu0
        %v3231 = vadd.f32 %v309, %v3230
        %v3232 = vpop.f32.mrf.mxu0
        %3233 = vmatprep.mubr.bf16.mxu0 0
        %3234 = vmatmul.mubr.bf16.gmra.mxu0 %v3080
        %v3235 = vpop.f32.mrf.mxu0
        %v3236 = vadd.f32 %v309, %v3235
        %v3237 = vpop.f32.mrf.mxu0
        %v3238 = vpop.f32.mrf.mxu0
        %v3239 = vadd.f32 %v309, %v3238
        %v3240 = vpop.f32.mrf.mxu0
        %3241 = vdwg.mxu0
        %v3242 = vadd.f32 %v3180, %v2512
        %v3243 = vadd.f32 %v3183, %v2513
        %v3244 = vadd.f32 %v3188, %v2514
        %v3245 = vadd.f32 %v3191, %v2515
        %v3246 = vadd.f32 %v3196, %v2516
        %v3247 = vadd.f32 %v3199, %v2517
        %v3248 = vadd.f32 %v3204, %v2518
        %v3249 = vadd.f32 %v3207, %v2519
        %v3250 = vadd.f32 %v3212, %v2520
        %v3251 = vadd.f32 %v3215, %v2521
        %v3252 = vadd.f32 %v3220, %v2522
        %v3253 = vadd.f32 %v3223, %v2523
        %v3254 = vadd.f32 %v3228, %v2524
        %v3255 = vadd.f32 %v3231, %v2525
        %v3256 = vadd.f32 %v3236, %v2526
        %v3257 = vadd.f32 %v3239, %v2527
        %3258 = vst.msk [vmem:[%s297] sm:$0xff] %vm326, %v3242
        %3259 = vst.msk [vmem:[%s297 + $0x8] sm:$0xff] %vm326, %v3243
        %3260 = vst.msk [vmem:[%s297 + $0x10] sm:$0xff] %vm326, %v3244
        %3261 = vst.msk [vmem:[%s297 + $0x18] sm:$0xff] %vm326, %v3245
        %3262 = vst.msk [vmem:[%s297 + $0x20] sm:$0xff] %vm326, %v3246
        %3263 = vst.msk [vmem:[%s297 + $0x28] sm:$0xff] %vm326, %v3247
        %3264 = vst.msk [vmem:[%s297 + $0x30] sm:$0xff] %vm326, %v3248
        %3265 = vst.msk [vmem:[%s297 + $0x38] sm:$0xff] %vm326, %v3249
        %3266 = vst.msk [vmem:[%s297 + $0x40] sm:$0xff] %vm326, %v3250
        %3267 = vst.msk [vmem:[%s297 + $0x48] sm:$0xff] %vm326, %v3251
        %3268 = vst.msk [vmem:[%s297 + $0x50] sm:$0xff] %vm326, %v3252
        %3269 = vst.msk [vmem:[%s297 + $0x58] sm:$0xff] %vm326, %v3253
        %3270 = vst.msk [vmem:[%s297 + $0x60] sm:$0xff] %vm326, %v3254
        %3271 = vst.msk [vmem:[%s297 + $0x68] sm:$0xff] %vm326, %v3255
        %3272 = vst.msk [vmem:[%s297 + $0x70] sm:$0xff] %vm326, %v3256
        %3273 = vst.msk [vmem:[%s297 + $0x78] sm:$0xff] %vm326, %v3257
        %s3274 = sand.u32 %s163, 1
        %s3275 = scalar_lea.sflag [#allocation4], %s3274
        %s3276 = sand.u32 %s163, 1
        %s3277 = smul.addr %s3276, 128
        %s3278 = scalar_lea.vmem [#allocation8], %s3277
        // Predicated region
        $region57: #{tpu_custom_call.1} parent=43 // pred_check
          %p3279 = pneg %p173
        $region58: #{tpu_custom_call.1} parent=43 // pred_check_branch
          %3281 = sbr.rel (%p3279) target = $region60
        $region59: #{tpu_custom_call.1} parent=43 // pred_region
          %s3282 = smul.u32 4, %s24
          %s3284 = ssub.s32 2048, 2048
          %3285 = vsyncadd %s3275, %s3284
          %s3286 = smul.addr %s3282, 4
          %s3287 = smul.addr %s3286, 128
          %s3288 = scalar_lea.hbm %s6, %s3287
          %s3289 = sshll.u32 %s3278, 4
          %s3290 = int_to_ptr.vmem [resolvable:$true] %s3289
          %3295 = dma.vmem_to_hbm [thread:$0]  %s3290, 2048, %s3288, %s3275, 128, 128, 8
        $region60: #{tpu_custom_call.1} parent=43 // pred_fallthru
          _
      $region44: #{tpu_custom_call.1} parent=5 // pred_fallthru
        _
      %p3296 = scmp.le.s32.totalorder 2, %s19
      // Predicated region
      $region61: #{tpu_custom_call.1} parent=5 // pred_check
        %p3297 = pneg %p3296
      $region62: #{tpu_custom_call.1} parent=5 // pred_check_branch
        %3299 = sbr.rel (%p3297) target = $region64
      $region63: #{tpu_custom_call.1} parent=5 // pred_region
        %s3300 = ssub.s32 %s19, 2
        // Predicated region
        $region65: #{tpu_custom_call.1} parent=63 // pred_check
          %p3301 = pneg %p179
        $region66: #{tpu_custom_call.1} parent=63 // pred_check_branch
          %3303 = sbr.rel (%p3301) target = $region68
        $region67: #{tpu_custom_call.1} parent=63 // pred_region
          %s3304 = sand.u32 %s164, 1
          %s3305 = scalar_lea.sflag [#allocation4], %s3304
          %s3306 = sand.u32 %s164, 1
          %s3307 = smul.addr %s3306, 128
          %s3308 = scalar_lea.vmem [#allocation8], %s3307
          %3309 = dma.done %s3305, 2048
        $region68: #{tpu_custom_call.1} parent=63 // pred_fallthru
          _
      $region64: #{tpu_custom_call.1} parent=5 // pred_fallthru
        _
    $region6: #{tpu_custom_call.1} parent=1 // loop_footer
      %s23 = sadd.s32 1, %s19
    $region7: #{tpu_custom_call.1} parent=1 // loop_footer_branch
      %18 = sbr.rel target = $region3
    $region8: #{tpu_custom_call.1} parent=1 // loop_exit
      _
    %3310 = vsyncpa [#allocation3], 1
    %s3311 = scalar_lea.sflag [#allocation3], 1
    %3312 = vsyncpa %s3311, 1
    %3313 = vsyncpa [#allocation6], 1
    %3314 = vsyncpa [#allocation4], 1
    %s3315 = scalar_lea.sflag [#allocation4], 1
    %3316 = vsyncpa %s3315, 1

</llo_original>
